<compile_context>
chip_gen: v6e
topology: v6e:2x2x1
jax: 0.10.0
libtpu: 0.0.40
codegen_flags: <defaults>
</compile_context>

<pallas_src>
import functools
import math

import jax
import jax.numpy as jnp
import numpy as np
from jax.experimental import pallas as pl
from jax.experimental.pallas import tpu as pltpu

NC_PAD_LANES = 128
NEG_INF = -1e30


def _leaky_relu(x, slope=0.01):
    return jnp.where(x >= 0, x, slope * x)


# ----------------------------------------------------------------------------- kernel
def fused_kernel(idx_ref, adj_ref, ego_ref, gcw_ref, gcb_ref, biw_ref, bib_ref,
                 whc_ref, bhc_ref, w1bd_ref, b1c_ref, w2bd_ref, b2c_ref,
                 wq_ref, bq_ref, wk_ref, bk_ref, wv_ref, bv_ref,
                 sk_ref, d1w_ref, d1b_ref, d2w_ref, d2b_ref, wp_ref, bp_ref,
                 out_ref, esum_ref, xg_ref, *,
                 num_layers, n_level, latent_dim, leaf_dim, m_rows):
    """Entire NGCF_DISCO forward: propagation + gather + both paths + head."""
    f32 = jnp.float32
    L, D, F, M = n_level, latent_dim, leaf_dim, m_rows

    # ---- NGCF propagation: static loop over layers, E carried as a value ----
    e = ego_ref[...]                                                   # (N, D)
    e_sum = e
    for layer in range(num_layers):
        side = jnp.dot(adj_ref[...], e, preferred_element_type=f32)
        sum_emb = _leaky_relu(
            jnp.dot(side, gcw_ref[layer], preferred_element_type=f32) + gcb_ref[layer])
        bi_emb = _leaky_relu(
            jnp.dot(e * side, biw_ref[layer], preferred_element_type=f32) + bib_ref[layer])
        ego = sum_emb + bi_emb
        # dropout (train mode in torch) -> identity here
        sumsq = jnp.sum(ego * ego, axis=1, keepdims=True)
        e = ego * jax.lax.rsqrt(jnp.maximum(sumsq, 1e-24))             # F.normalize
        e_sum = e_sum + e
    esum_ref[...] = e_sum

    # ---- row gather via SMEM indices: user rows [0,M), item rows [M,2M) ----
    for r in range(2 * M):
        xg_ref[pl.ds(r, 1), :] = esum_ref[pl.ds(idx_ref[r], 1), :]

    # ---- u / i paths: hier proj + block-diag encoders + SAM level attention ----
    scale = 1.0 / math.sqrt(F)
    d_paths = []
    for p in range(2):
        x = xg_ref[p * M:(p + 1) * M, :]                               # (M, D)
        rep_all = jnp.tanh(
            jnp.dot(x, whc_ref[p], preferred_element_type=f32) + bhc_ref[p])       # (M, L*D)
        h_all = jnp.tanh(
            jnp.dot(rep_all, w1bd_ref[p], preferred_element_type=f32) + b1c_ref[p])  # (M, L*H)
        rec_all = (jnp.dot(h_all, w2bd_ref[p], preferred_element_type=f32)
                   + b2c_ref[p])                                       # (M, L*F)

        # shared SAM q/k/v as replicated block-diagonal matmuls (row layout kept)
        q_all = jnp.dot(rec_all, wq_ref[...], preferred_element_type=f32) + bq_ref[...]
        k_all = jnp.dot(rec_all, wk_ref[...], preferred_element_type=f32) + bk_ref[...]
        v_all = jnp.dot(rec_all, wv_ref[...], preferred_element_type=f32) + bv_ref[...]
        qs = [q_all[:, lv * F:(lv + 1) * F] for lv in range(L)]
        ks = [k_all[:, lv * F:(lv + 1) * F] for lv in range(L)]
        vs = [v_all[:, lv * F:(lv + 1) * F] for lv in range(L)]

        att_levels = []
        for s in range(L):
            scores = jnp.concatenate(
                [jnp.sum(qs[s] * ks[t], axis=-1, keepdims=True) for t in range(L)],
                axis=-1) * scale                                       # (M, L)
            mx = jnp.max(scores, axis=-1, keepdims=True)
            ex = jnp.exp(scores - mx)
            w = ex * pl.reciprocal(jnp.sum(ex, axis=-1, keepdims=True), approx=True)
            acc = w[:, 0:1] * vs[0]
            for t in range(1, L):
                acc = acc + w[:, t:t + 1] * vs[t]
            att_levels.append(acc)                                     # (M, F)
        d_paths.append(jnp.concatenate(att_levels, axis=-1))           # (M, L*F)

    # ---- diagnosis head ----
    diag = (jax.nn.sigmoid(d_paths[0]) - jax.nn.sigmoid(d_paths[1])) * sk_ref[...]
    h = jnp.tanh(jnp.dot(diag, d1w_ref[...], preferred_element_type=f32) + d1b_ref[...])
    # dropout (train mode in torch) -> identity here
    h = jnp.dot(h, d2w_ref[...], preferred_element_type=f32) + d2b_ref[...]
    logits = jnp.dot(h, wp_ref[...], preferred_element_type=f32) + bp_ref[...]  # (M, 128)
    mx = jnp.max(logits, axis=-1, keepdims=True)
    ex = jnp.exp(logits - mx)        # padded lanes carry a -1e30 bias -> exp == 0
    out_ref[...] = ex / jnp.sum(ex, axis=-1, keepdims=True)   # exact divide on head


# ----------------------------------------------------------------------------- params
def _init_linear(key, fan_in, fan_out):
    kw, kb = jax.random.split(key)
    lim = math.sqrt(6.0 / (fan_in + fan_out))
    w = jax.random.uniform(kw, (fan_in, fan_out), jnp.float32, -lim, lim)
    b = jax.random.uniform(kb, (1, fan_out), jnp.float32, -lim, lim)
    return w, b


def make_params(key, *, user_num, item_num, latent_dim, num_layers,
                n_level, leaf_dim, hidden_size, n_classes):
    keys = iter(jax.random.split(key, 64))
    N = user_num + item_num
    D, H, F, L = latent_dim, hidden_size, leaf_dim, n_level
    lim = math.sqrt(6.0 / (N + D))

    def stacked(count, fan_in, fan_out):
        ws, bs = [], []
        for _ in range(count):
            w, b = _init_linear(next(keys), fan_in, fan_out)
            ws.append(w); bs.append(b)
        return jnp.stack(ws, 0), jnp.stack(bs, 0)

    gc_w, gc_b = stacked(num_layers, D, D)
    bi_w, bi_b = stacked(num_layers, D, D)

    # hier weights: per (path, level) Linear(D, D), lane-concatenated over levels
    hier_wcat, hier_bcat = [], []
    for _p in range(2):
        ws, bs = [], []
        for _l in range(L):
            w, b = _init_linear(next(keys), D, D)
            ws.append(w); bs.append(b)
        hier_wcat.append(jnp.concatenate(ws, axis=1))      # (D, L*D)
        hier_bcat.append(jnp.concatenate(bs, axis=1))      # (1, L*D)
    hier_wcat = jnp.stack(hier_wcat, 0)                    # (2, D, L*D)
    hier_bcat = jnp.stack(hier_bcat, 0)                    # (2, 1, L*D)

    # disentangling encoders: per (path, level) Linear(D,H)+Tanh+Linear(H,F),
    # stored per-level (reference) and block-diagonally fused (kernel).
    enc_w1, enc_b1, enc_w2, enc_b2 = [], [], [], []
    enc_w1_bd, enc_b1_cat, enc_w2_bd, enc_b2_cat = [], [], [], []
    for _p in range(2):
        w1s, b1s, w2s, b2s = [], [], [], []
        for _l in range(L):
            w1, b1 = _init_linear(next(keys), D, H)
            w2, b2 = _init_linear(next(keys), H, F)
            w1s.append(w1); b1s.append(b1); w2s.append(w2); b2s.append(b2)
        enc_w1.append(jnp.stack(w1s, 0)); enc_b1.append(jnp.stack(b1s, 0))
        enc_w2.append(jnp.stack(w2s, 0)); enc_b2.append(jnp.stack(b2s, 0))
        w1_bd = jnp.zeros((L * D, L * H), jnp.float32)
        w2_bd = jnp.zeros((L * H, L * F), jnp.float32)
        for l in range(L):
            w1_bd = w1_bd.at[l * D:(l + 1) * D, l * H:(l + 1) * H].set(w1s[l])
            w2_bd = w2_bd.at[l * H:(l + 1) * H, l * F:(l + 1) * F].set(w2s[l])
        enc_w1_bd.append(w1_bd); enc_w2_bd.append(w2_bd)
        enc_b1_cat.append(jnp.concatenate(b1s, axis=1))
        enc_b2_cat.append(jnp.concatenate(b2s, axis=1))
    enc_w1 = jnp.stack(enc_w1, 0)           # (2, L, D, H)
    enc_b1 = jnp.stack(enc_b1, 0)
    enc_w2 = jnp.stack(enc_w2, 0)           # (2, L, H, F)
    enc_b2 = jnp.stack(enc_b2, 0)
    enc_w1_bd = jnp.stack(enc_w1_bd, 0)     # (2, L*D, L*H)
    enc_b1_cat = jnp.stack(enc_b1_cat, 0)   # (2, 1, L*H)
    enc_w2_bd = jnp.stack(enc_w2_bd, 0)     # (2, L*H, L*F)
    enc_b2_cat = jnp.stack(enc_b2_cat, 0)   # (2, 1, L*F)

    # shared SAM q/k/v, plus replicated block-diagonal layout for the kernel
    wq, bq = _init_linear(next(keys), F, F)
    wk, bk = _init_linear(next(keys), F, F)
    wv, bv = _init_linear(next(keys), F, F)

    def rep_blockdiag(w):
        m = jnp.zeros((L * F, L * F), jnp.float32)
        for l in range(L):
            m = m.at[l * F:(l + 1) * F, l * F:(l + 1) * F].set(w)
        return m

    diag1_w, diag1_b = _init_linear(next(keys), L * F, D)
    diag2_w, diag2_b = _init_linear(next(keys), D, D)
    pred_w, pred_b = _init_linear(next(keys), D, n_classes)

    # predict layer padded once to a lane-dense 128 tile (hoisted out of forward)
    nc_pad = max(NC_PAD_LANES,
                 ((n_classes + NC_PAD_LANES - 1) // NC_PAD_LANES) * NC_PAD_LANES)
    pred_w_pad = jnp.zeros((D, nc_pad), jnp.float32).at[:, :n_classes].set(pred_w)
    pred_b_pad = jnp.full((1, nc_pad), NEG_INF, jnp.float32).at[:, :n_classes].set(pred_b)

    return {
        "ego_emb": jax.random.uniform(next(keys), (N, D), jnp.float32, -lim, lim),
        "gc_w": gc_w, "gc_b": gc_b, "bi_w": bi_w, "bi_b": bi_b,
        "hier_wcat": hier_wcat, "hier_bcat": hier_bcat,
        # canonical (reference) encoder / SAM params
        "enc_w1": enc_w1, "enc_b1": enc_b1, "enc_w2": enc_w2, "enc_b2": enc_b2,
        "sam_wq": wq, "sam_bq": bq, "sam_wk": wk, "sam_bk": bk,
        "sam_wv": wv, "sam_bv": bv,
        # kernel-layout (fused) params
        "enc_w1_bd": enc_w1_bd, "enc_b1_cat": enc_b1_cat,
        "enc_w2_bd": enc_w2_bd, "enc_b2_cat": enc_b2_cat,
        "sam_wq_bd": rep_blockdiag(wq), "sam_bq_rep": jnp.tile(bq, (1, L)),
        "sam_wk_bd": rep_blockdiag(wk), "sam_bk_rep": jnp.tile(bk, (1, L)),
        "sam_wv_bd": rep_blockdiag(wv), "sam_bv_rep": jnp.tile(bv, (1, L)),
        "diag1_w": diag1_w, "diag1_b": diag1_b,
        "diag2_w": diag2_w, "diag2_b": diag2_b,
        "pred_w": pred_w, "pred_b": pred_b,
        "pred_w_pad": pred_w_pad, "pred_b_pad": pred_b_pad,
    }


# ----------------------------------------------------------------------------- forward
def ngcf_disco_forward(params, adj, user_id, item_id, hier_skills, *,
                       user_num, num_layers, n_level, leaf_dim, n_classes):
    f32 = jnp.float32
    N, D = params["ego_emb"].shape
    L, F = n_level, leaf_dim
    B, S = user_id.shape
    M = B * S
    nc_pad = params["pred_w_pad"].shape[-1]

    # gather indices (users, then user_num-offset items) -> SMEM
    idx = jnp.concatenate([user_id.reshape(-1),
                           item_id.reshape(-1) + user_num], axis=0).astype(jnp.int32)
    sk = hier_skills.reshape(M, L * F).astype(f32)

    kern = functools.partial(fused_kernel, num_layers=num_layers, n_level=L,
                             latent_dim=D, leaf_dim=F, m_rows=M)
    smem = pl.BlockSpec(memory_space=pltpu.MemorySpace.SMEM)
    vmem = pl.BlockSpec(memory_space=pltpu.MemorySpace.VMEM)

    out_pad = pl.pallas_call(
        kern,
        out_shape=jax.ShapeDtypeStruct((M, nc_pad), f32),
        in_specs=[smem] + [vmem] * 25,
        out_specs=vmem,
        scratch_shapes=[pltpu.VMEM((N, D), f32),        # e_sum (gather source)
                        pltpu.VMEM((2 * M, D), f32)],   # gathered u/i rows
        compiler_params=pltpu.CompilerParams(vmem_limit_bytes=32 * 1024 * 1024),
    )(idx, adj, params["ego_emb"], params["gc_w"], params["gc_b"],
      params["bi_w"], params["bi_b"],
      params["hier_wcat"], params["hier_bcat"],
      params["enc_w1_bd"], params["enc_b1_cat"],
      params["enc_w2_bd"], params["enc_b2_cat"],
      params["sam_wq_bd"], params["sam_bq_rep"],
      params["sam_wk_bd"], params["sam_bk_rep"],
      params["sam_wv_bd"], params["sam_bv_rep"],
      sk, params["diag1_w"], params["diag1_b"],
      params["diag2_w"], params["diag2_b"],
      params["pred_w_pad"], params["pred_b_pad"])

    output = out_pad[:, :n_classes].reshape(B, S, n_classes)
    cl_losses = jnp.float32(0.0)   # 3-D hier_skills (Flag=True) branch
    return output, cl_losses


# ----------------------------------------------------------------------------- pure-JAX reference
def reference_forward(params, adj, user_id, item_id, hier_skills, *,
                      user_num, num_layers, n_level, leaf_dim, n_classes):
    ego = params["ego_emb"]
    N, D = ego.shape
    L, F = n_level, leaf_dim
    e_list = [ego]
    for l in range(num_layers):
        side = adj @ e_list[-1]
        sum_emb = _leaky_relu(side @ params["gc_w"][l] + params["gc_b"][l])
        bi_emb = _leaky_relu((e_list[-1] * side) @ params["bi_w"][l] + params["bi_b"][l])
        eg = sum_emb + bi_emb
        nrm = jnp.sqrt(jnp.sum(eg * eg, axis=1, keepdims=True))
        e_list.append(eg / jnp.maximum(nrm, 1e-12))
    e_ego = sum(e_list)
    e_u, e_i = e_ego[:user_num], e_ego[user_num:]
    B, S = user_id.shape
    M = B * S
    u_emb = e_u[user_id].reshape(M, D)
    i_emb = e_i[item_id].reshape(M, D)

    def sam_path(x, p):
        recs = []
        for l in range(L):
            wh = params["hier_wcat"][p][:, l * D:(l + 1) * D]
            bh = params["hier_bcat"][p][:, l * D:(l + 1) * D]
            rep = jnp.tanh(x @ wh + bh)
            h = jnp.tanh(rep @ params["enc_w1"][p, l] + params["enc_b1"][p, l])
            recs.append(h @ params["enc_w2"][p, l] + params["enc_b2"][p, l])
        q = jnp.stack([r @ params["sam_wq"] + params["sam_bq"] for r in recs], 0)
        k = jnp.stack([r @ params["sam_wk"] + params["sam_bk"] for r in recs], 0)
        v = jnp.stack([r @ params["sam_wv"] + params["sam_bv"] for r in recs], 0)
        scores = jnp.einsum("smf,tmf->stm", q, k) / math.sqrt(F)
        w = jax.nn.softmax(scores, axis=1)
        a = jnp.einsum("stm,tmf->smf", w, v)
        return jnp.transpose(a, (1, 0, 2)).reshape(M, L * F)

    d_u = sam_path(u_emb, 0)
    d_i = sam_path(i_emb, 1)
    sk = hier_skills.reshape(M, L * F).astype(jnp.float32)
    diag = (jax.nn.sigmoid(d_u) - jax.nn.sigmoid(d_i)) * sk
    h = jnp.tanh(diag @ params["diag1_w"] + params["diag1_b"])
    h = h @ params["diag2_w"] + params["diag2_b"]
    logits = h @ params["pred_w"] + params["pred_b"]
    out = jax.nn.softmax(logits, axis=-1)
    return out.reshape(B, S, n_classes), jnp.float32(0.0)


# ----------------------------------------------------------------------------- main
if __name__ == "__main__":
    user_num, item_num = 24, 40
    latent_dim = 32
    num_layers = 2
    n_level = 3
    leaf_dim = 16
    hidden_size = 256
    n_classes = 2
    B, S = 2, 8
    N = user_num + item_num

    kR, kU, kI, kH, kp = jax.random.split(jax.random.PRNGKey(0), 5)

    # deterministic symmetric-normalized bipartite adjacency (dense stand-in for adj_norm)
    R = (jax.random.uniform(kR, (user_num, item_num)) < 0.25).astype(jnp.float32)
    A = jnp.zeros((N, N), jnp.float32)
    A = A.at[:user_num, user_num:].set(R)
    A = A.at[user_num:, :user_num].set(R.T)
    deg = jnp.maximum(A.sum(axis=1), 1.0)
    dinv = 1.0 / jnp.sqrt(deg)
    adj = dinv[:, None] * A * dinv[None, :]

    user_id = jax.random.randint(kU, (B, S), 0, user_num)
    item_id = jax.random.randint(kI, (B, S), 0, item_num)
    hier_skills = (jax.random.uniform(kH, (B, S, n_level * leaf_dim)) < 0.5
                   ).astype(jnp.float32)

    params = make_params(kp, user_num=user_num, item_num=item_num,
                         latent_dim=latent_dim, num_layers=num_layers,
                         n_level=n_level, leaf_dim=leaf_dim,
                         hidden_size=hidden_size, n_classes=n_classes)

    kwargs = dict(user_num=user_num, num_layers=num_layers, n_level=n_level,
                  leaf_dim=leaf_dim, n_classes=n_classes)

    fwd = jax.jit(functools.partial(ngcf_disco_forward, **kwargs))
    out, cl_losses = fwd(params, adj, user_id, item_id, hier_skills)
    out = jax.block_until_ready(out)

    ref_out, _ = reference_forward(params, adj, user_id, item_id,
                                   hier_skills, **kwargs)
    ref_out = jax.block_until_ready(ref_out)

    assert out.shape == (B, S, n_classes)
    assert bool(jnp.all(jnp.isfinite(out)))
    np.testing.assert_allclose(np.asarray(out), np.asarray(ref_out),
                               rtol=1e-2, atol=1e-2)
    print("KERNEL_OK")
</pallas_src>

<mosaic_0001>
module attributes {stable_mosaic.version = 11 : i64} {
  func.func @fused_kernel(%arg0: memref<32xi32, #tpu.memory_space<smem>>, %arg1: memref<64x64xf32, #tpu.memory_space<vmem>>, %arg2: memref<64x32xf32, #tpu.memory_space<vmem>>, %arg3: memref<2x32x32xf32, #tpu.memory_space<vmem>>, %arg4: memref<2x1x32xf32, #tpu.memory_space<vmem>>, %arg5: memref<2x32x32xf32, #tpu.memory_space<vmem>>, %arg6: memref<2x1x32xf32, #tpu.memory_space<vmem>>, %arg7: memref<2x32x96xf32, #tpu.memory_space<vmem>>, %arg8: memref<2x1x96xf32, #tpu.memory_space<vmem>>, %arg9: memref<2x96x768xf32, #tpu.memory_space<vmem>>, %arg10: memref<2x1x768xf32, #tpu.memory_space<vmem>>, %arg11: memref<2x768x48xf32, #tpu.memory_space<vmem>>, %arg12: memref<2x1x48xf32, #tpu.memory_space<vmem>>, %arg13: memref<48x48xf32, #tpu.memory_space<vmem>>, %arg14: memref<1x48xf32, #tpu.memory_space<vmem>>, %arg15: memref<48x48xf32, #tpu.memory_space<vmem>>, %arg16: memref<1x48xf32, #tpu.memory_space<vmem>>, %arg17: memref<48x48xf32, #tpu.memory_space<vmem>>, %arg18: memref<1x48xf32, #tpu.memory_space<vmem>>, %arg19: memref<16x48xf32, #tpu.memory_space<vmem>>, %arg20: memref<48x32xf32, #tpu.memory_space<vmem>>, %arg21: memref<1x32xf32, #tpu.memory_space<vmem>>, %arg22: memref<32x32xf32, #tpu.memory_space<vmem>>, %arg23: memref<1x32xf32, #tpu.memory_space<vmem>>, %arg24: memref<32x128xf32, #tpu.memory_space<vmem>>, %arg25: memref<1x128xf32, #tpu.memory_space<vmem>>, %arg26: memref<16x128xf32, #tpu.memory_space<vmem>>, %arg27: memref<64x32xf32, #tpu.memory_space<vmem>>, %arg28: memref<32x32xf32, #tpu.memory_space<vmem>>) attributes {dimension_semantics = [], scalar_prefetch = 0 : i64, scratch_operands = 2 : i64, tpu.core_type = #tpu.core_type<tc>} {
    %c0 = arith.constant 0 : index
    %c0_0 = arith.constant 0 : index
    %0 = vector.load %arg2[%c0, %c0_0] : memref<64x32xf32, #tpu.memory_space<vmem>>, vector<64x32xf32>
    %c0_1 = arith.constant 0 : index
    %c0_2 = arith.constant 0 : index
    %1 = vector.load %arg1[%c0_1, %c0_2] : memref<64x64xf32, #tpu.memory_space<vmem>>, vector<64x64xf32>
    %cst = arith.constant dense<0.000000e+00> : vector<64x32xf32>
    %2 = tpu.matmul %1, %0, %cst {dimension_numbers = #tpu.dot_dimension_numbers<[1], [0], [0], [1], [0, 0, 1, 1], [], []>} : vector<64x64xf32>, vector<64x32xf32>, vector<64x32xf32> -> vector<64x32xf32>
    %c0_3 = arith.constant 0 : index
    %c0_4 = arith.constant 0 : index
    %c0_5 = arith.constant 0 : index
    %3 = vector.load %arg3[%c0_3, %c0_4, %c0_5] : memref<2x32x32xf32, #tpu.memory_space<vmem>>, vector<1x32x32xf32>
    %4 = vector.shape_cast %3 : vector<1x32x32xf32> to vector<32x32xf32>
    %cst_6 = arith.constant dense<0.000000e+00> : vector<64x32xf32>
    %5 = tpu.matmul %2, %4, %cst_6 {dimension_numbers = #tpu.dot_dimension_numbers<[1], [0], [0], [1], [0, 0, 1, 1], [], []>} : vector<64x32xf32>, vector<32x32xf32>, vector<64x32xf32> -> vector<64x32xf32>
    %c0_7 = arith.constant 0 : index
    %c0_8 = arith.constant 0 : index
    %c0_9 = arith.constant 0 : index
    %6 = vector.load %arg4[%c0_7, %c0_8, %c0_9] : memref<2x1x32xf32, #tpu.memory_space<vmem>>, vector<1x1x32xf32>
    %7 = vector.shape_cast %6 : vector<1x1x32xf32> to vector<1x32xf32>
    %8 = vector.broadcast %7 : vector<1x32xf32> to vector<64x32xf32>
    %9 = arith.addf %5, %8 : vector<64x32xf32>
    %cst_10 = arith.constant 0.000000e+00 : f32
    %10 = vector.broadcast %cst_10 : f32 to vector<64x32xf32>
    %11 = arith.cmpf oge, %9, %10 : vector<64x32xf32>
    %cst_11 = arith.constant 0.00999999977 : f32
    %12 = vector.broadcast %cst_11 : f32 to vector<64x32xf32>
    %13 = arith.mulf %12, %9 : vector<64x32xf32>
    %14 = arith.select %11, %9, %13 : vector<64x32xi1>, vector<64x32xf32>
    %15 = arith.mulf %0, %2 : vector<64x32xf32>
    %c0_12 = arith.constant 0 : index
    %c0_13 = arith.constant 0 : index
    %c0_14 = arith.constant 0 : index
    %16 = vector.load %arg5[%c0_12, %c0_13, %c0_14] : memref<2x32x32xf32, #tpu.memory_space<vmem>>, vector<1x32x32xf32>
    %17 = vector.shape_cast %16 : vector<1x32x32xf32> to vector<32x32xf32>
    %cst_15 = arith.constant dense<0.000000e+00> : vector<64x32xf32>
    %18 = tpu.matmul %15, %17, %cst_15 {dimension_numbers = #tpu.dot_dimension_numbers<[1], [0], [0], [1], [0, 0, 1, 1], [], []>} : vector<64x32xf32>, vector<32x32xf32>, vector<64x32xf32> -> vector<64x32xf32>
    %c0_16 = arith.constant 0 : index
    %c0_17 = arith.constant 0 : index
    %c0_18 = arith.constant 0 : index
    %19 = vector.load %arg6[%c0_16, %c0_17, %c0_18] : memref<2x1x32xf32, #tpu.memory_space<vmem>>, vector<1x1x32xf32>
    %20 = vector.shape_cast %19 : vector<1x1x32xf32> to vector<1x32xf32>
    %21 = vector.broadcast %20 : vector<1x32xf32> to vector<64x32xf32>
    %22 = arith.addf %18, %21 : vector<64x32xf32>
    %cst_19 = arith.constant 0.000000e+00 : f32
    %23 = vector.broadcast %cst_19 : f32 to vector<64x32xf32>
    %24 = arith.cmpf oge, %22, %23 : vector<64x32xf32>
    %cst_20 = arith.constant 0.00999999977 : f32
    %25 = vector.broadcast %cst_20 : f32 to vector<64x32xf32>
    %26 = arith.mulf %25, %22 : vector<64x32xf32>
    %27 = arith.select %24, %22, %26 : vector<64x32xi1>, vector<64x32xf32>
    %28 = arith.addf %14, %27 : vector<64x32xf32>
    %29 = arith.mulf %28, %28 : vector<64x32xf32>
    %cst_21 = arith.constant dense<0.000000e+00> : vector<64xf32>
    %30 = vector.multi_reduction <add>, %29, %cst_21 [1] : vector<64x32xf32> to vector<64xf32>
    %31 = vector.shape_cast %30 : vector<64xf32> to vector<64x1xf32>
    %cst_22 = arith.constant 1.000000e-24 : f32
    %32 = vector.broadcast %cst_22 : f32 to vector<64x1xf32>
    %33 = arith.maximumf %31, %32 : vector<64x1xf32>
    %34 = math.rsqrt %33 : vector<64x1xf32>
    %35 = vector.broadcast %34 : vector<64x1xf32> to vector<64x32xf32>
    %36 = arith.mulf %28, %35 : vector<64x32xf32>
    %37 = arith.addf %0, %36 : vector<64x32xf32>
    %c0_23 = arith.constant 0 : index
    %c0_24 = arith.constant 0 : index
    %38 = vector.load %arg1[%c0_23, %c0_24] : memref<64x64xf32, #tpu.memory_space<vmem>>, vector<64x64xf32>
    %cst_25 = arith.constant dense<0.000000e+00> : vector<64x32xf32>
    %39 = tpu.matmul %38, %36, %cst_25 {dimension_numbers = #tpu.dot_dimension_numbers<[1], [0], [0], [1], [0, 0, 1, 1], [], []>} : vector<64x64xf32>, vector<64x32xf32>, vector<64x32xf32> -> vector<64x32xf32>
    %c1 = arith.constant 1 : index
    %c0_26 = arith.constant 0 : index
    %c0_27 = arith.constant 0 : index
    %40 = vector.load %arg3[%c1, %c0_26, %c0_27] : memref<2x32x32xf32, #tpu.memory_space<vmem>>, vector<1x32x32xf32>
    %41 = vector.shape_cast %40 : vector<1x32x32xf32> to vector<32x32xf32>
    %cst_28 = arith.constant dense<0.000000e+00> : vector<64x32xf32>
    %42 = tpu.matmul %39, %41, %cst_28 {dimension_numbers = #tpu.dot_dimension_numbers<[1], [0], [0], [1], [0, 0, 1, 1], [], []>} : vector<64x32xf32>, vector<32x32xf32>, vector<64x32xf32> -> vector<64x32xf32>
    %c1_29 = arith.constant 1 : index
    %c0_30 = arith.constant 0 : index
    %c0_31 = arith.constant 0 : index
    %43 = vector.load %arg4[%c1_29, %c0_30, %c0_31] : memref<2x1x32xf32, #tpu.memory_space<vmem>>, vector<1x1x32xf32>
    %44 = vector.shape_cast %43 : vector<1x1x32xf32> to vector<1x32xf32>
    %45 = vector.broadcast %44 : vector<1x32xf32> to vector<64x32xf32>
    %46 = arith.addf %42, %45 : vector<64x32xf32>
    %cst_32 = arith.constant 0.000000e+00 : f32
    %47 = vector.broadcast %cst_32 : f32 to vector<64x32xf32>
    %48 = arith.cmpf oge, %46, %47 : vector<64x32xf32>
    %cst_33 = arith.constant 0.00999999977 : f32
    %49 = vector.broadcast %cst_33 : f32 to vector<64x32xf32>
    %50 = arith.mulf %49, %46 : vector<64x32xf32>
    %51 = arith.select %48, %46, %50 : vector<64x32xi1>, vector<64x32xf32>
    %52 = arith.mulf %36, %39 : vector<64x32xf32>
    %c1_34 = arith.constant 1 : index
    %c0_35 = arith.constant 0 : index
    %c0_36 = arith.constant 0 : index
    %53 = vector.load %arg5[%c1_34, %c0_35, %c0_36] : memref<2x32x32xf32, #tpu.memory_space<vmem>>, vector<1x32x32xf32>
    %54 = vector.shape_cast %53 : vector<1x32x32xf32> to vector<32x32xf32>
    %cst_37 = arith.constant dense<0.000000e+00> : vector<64x32xf32>
    %55 = tpu.matmul %52, %54, %cst_37 {dimension_numbers = #tpu.dot_dimension_numbers<[1], [0], [0], [1], [0, 0, 1, 1], [], []>} : vector<64x32xf32>, vector<32x32xf32>, vector<64x32xf32> -> vector<64x32xf32>
    %c1_38 = arith.constant 1 : index
    %c0_39 = arith.constant 0 : index
    %c0_40 = arith.constant 0 : index
    %56 = vector.load %arg6[%c1_38, %c0_39, %c0_40] : memref<2x1x32xf32, #tpu.memory_space<vmem>>, vector<1x1x32xf32>
    %57 = vector.shape_cast %56 : vector<1x1x32xf32> to vector<1x32xf32>
    %58 = vector.broadcast %57 : vector<1x32xf32> to vector<64x32xf32>
    %59 = arith.addf %55, %58 : vector<64x32xf32>
    %cst_41 = arith.constant 0.000000e+00 : f32
    %60 = vector.broadcast %cst_41 : f32 to vector<64x32xf32>
    %61 = arith.cmpf oge, %59, %60 : vector<64x32xf32>
    %cst_42 = arith.constant 0.00999999977 : f32
    %62 = vector.broadcast %cst_42 : f32 to vector<64x32xf32>
    %63 = arith.mulf %62, %59 : vector<64x32xf32>
    %64 = arith.select %61, %59, %63 : vector<64x32xi1>, vector<64x32xf32>
    %65 = arith.addf %51, %64 : vector<64x32xf32>
    %66 = arith.mulf %65, %65 : vector<64x32xf32>
    %cst_43 = arith.constant dense<0.000000e+00> : vector<64xf32>
    %67 = vector.multi_reduction <add>, %66, %cst_43 [1] : vector<64x32xf32> to vector<64xf32>
    %68 = vector.shape_cast %67 : vector<64xf32> to vector<64x1xf32>
    %cst_44 = arith.constant 1.000000e-24 : f32
    %69 = vector.broadcast %cst_44 : f32 to vector<64x1xf32>
    %70 = arith.maximumf %68, %69 : vector<64x1xf32>
    %71 = math.rsqrt %70 : vector<64x1xf32>
    %72 = vector.broadcast %71 : vector<64x1xf32> to vector<64x32xf32>
    %73 = arith.mulf %65, %72 : vector<64x32xf32>
    %74 = arith.addf %37, %73 : vector<64x32xf32>
    %c0_45 = arith.constant 0 : index
    %c0_46 = arith.constant 0 : index
    %75 = vector.load %arg27[%c0_45, %c0_46] : memref<64x32xf32, #tpu.memory_space<vmem>>, vector<64x32xf32>
    tpu.vector_store %arg27[%c0_45, %c0_46], %74 {strides = array<i32>} : memref<64x32xf32, #tpu.memory_space<vmem>>, vector<64x32xf32>,
    %c0_47 = arith.constant 0 : index
    %76 = memref.load %arg0[%c0_47] : memref<32xi32, #tpu.memory_space<smem>>
    %77 = arith.index_cast %76 : i32 to index
    %c0_48 = arith.constant 0 : index
    %78 = vector.load %arg27[%77, %c0_48] : memref<64x32xf32, #tpu.memory_space<vmem>>, vector<1x32xf32>
    %c0_49 = arith.constant 0 : index
    %c0_50 = arith.constant 0 : index
    %79 = vector.load %arg28[%c0_49, %c0_50] : memref<32x32xf32, #tpu.memory_space<vmem>>, vector<1x32xf32>
    tpu.vector_store %arg28[%c0_49, %c0_50], %78 {strides = array<i32>} : memref<32x32xf32, #tpu.memory_space<vmem>>, vector<1x32xf32>,
    %c1_51 = arith.constant 1 : index
    %80 = memref.load %arg0[%c1_51] : memref<32xi32, #tpu.memory_space<smem>>
    %81 = arith.index_cast %80 : i32 to index
    %c0_52 = arith.constant 0 : index
    %82 = vector.load %arg27[%81, %c0_52] : memref<64x32xf32, #tpu.memory_space<vmem>>, vector<1x32xf32>
    %c1_53 = arith.constant 1 : index
    %c0_54 = arith.constant 0 : index
    %83 = vector.load %arg28[%c1_53, %c0_54] : memref<32x32xf32, #tpu.memory_space<vmem>>, vector<1x32xf32>
    tpu.vector_store %arg28[%c1_53, %c0_54], %82 {strides = array<i32>} : memref<32x32xf32, #tpu.memory_space<vmem>>, vector<1x32xf32>,
    %c2 = arith.constant 2 : index
    %84 = memref.load %arg0[%c2] : memref<32xi32, #tpu.memory_space<smem>>
    %85 = arith.index_cast %84 : i32 to index
    %c0_55 = arith.constant 0 : index
    %86 = vector.load %arg27[%85, %c0_55] : memref<64x32xf32, #tpu.memory_space<vmem>>, vector<1x32xf32>
    %c2_56 = arith.constant 2 : index
    %c0_57 = arith.constant 0 : index
    %87 = vector.load %arg28[%c2_56, %c0_57] : memref<32x32xf32, #tpu.memory_space<vmem>>, vector<1x32xf32>
    tpu.vector_store %arg28[%c2_56, %c0_57], %86 {strides = array<i32>} : memref<32x32xf32, #tpu.memory_space<vmem>>, vector<1x32xf32>,
    %c3 = arith.constant 3 : index
    %88 = memref.load %arg0[%c3] : memref<32xi32, #tpu.memory_space<smem>>
    %89 = arith.index_cast %88 : i32 to index
    %c0_58 = arith.constant 0 : index
    %90 = vector.load %arg27[%89, %c0_58] : memref<64x32xf32, #tpu.memory_space<vmem>>, vector<1x32xf32>
    %c3_59 = arith.constant 3 : index
    %c0_60 = arith.constant 0 : index
    %91 = vector.load %arg28[%c3_59, %c0_60] : memref<32x32xf32, #tpu.memory_space<vmem>>, vector<1x32xf32>
    tpu.vector_store %arg28[%c3_59, %c0_60], %90 {strides = array<i32>} : memref<32x32xf32, #tpu.memory_space<vmem>>, vector<1x32xf32>,
    %c4 = arith.constant 4 : index
    %92 = memref.load %arg0[%c4] : memref<32xi32, #tpu.memory_space<smem>>
    %93 = arith.index_cast %92 : i32 to index
    %c0_61 = arith.constant 0 : index
    %94 = vector.load %arg27[%93, %c0_61] : memref<64x32xf32, #tpu.memory_space<vmem>>, vector<1x32xf32>
    %c4_62 = arith.constant 4 : index
    %c0_63 = arith.constant 0 : index
    %95 = vector.load %arg28[%c4_62, %c0_63] : memref<32x32xf32, #tpu.memory_space<vmem>>, vector<1x32xf32>
    tpu.vector_store %arg28[%c4_62, %c0_63], %94 {strides = array<i32>} : memref<32x32xf32, #tpu.memory_space<vmem>>, vector<1x32xf32>,
    %c5 = arith.constant 5 : index
    %96 = memref.load %arg0[%c5] : memref<32xi32, #tpu.memory_space<smem>>
    %97 = arith.index_cast %96 : i32 to index
    %c0_64 = arith.constant 0 : index
    %98 = vector.load %arg27[%97, %c0_64] : memref<64x32xf32, #tpu.memory_space<vmem>>, vector<1x32xf32>
    %c5_65 = arith.constant 5 : index
    %c0_66 = arith.constant 0 : index
    %99 = vector.load %arg28[%c5_65, %c0_66] : memref<32x32xf32, #tpu.memory_space<vmem>>, vector<1x32xf32>
    tpu.vector_store %arg28[%c5_65, %c0_66], %98 {strides = array<i32>} : memref<32x32xf32, #tpu.memory_space<vmem>>, vector<1x32xf32>,
    %c6 = arith.constant 6 : index
    %100 = memref.load %arg0[%c6] : memref<32xi32, #tpu.memory_space<smem>>
    %101 = arith.index_cast %100 : i32 to index
    %c0_67 = arith.constant 0 : index
    %102 = vector.load %arg27[%101, %c0_67] : memref<64x32xf32, #tpu.memory_space<vmem>>, vector<1x32xf32>
    %c6_68 = arith.constant 6 : index
    %c0_69 = arith.constant 0 : index
    %103 = vector.load %arg28[%c6_68, %c0_69] : memref<32x32xf32, #tpu.memory_space<vmem>>, vector<1x32xf32>
    tpu.vector_store %arg28[%c6_68, %c0_69], %102 {strides = array<i32>} : memref<32x32xf32, #tpu.memory_space<vmem>>, vector<1x32xf32>,
    %c7 = arith.constant 7 : index
    %104 = memref.load %arg0[%c7] : memref<32xi32, #tpu.memory_space<smem>>
    %105 = arith.index_cast %104 : i32 to index
    %c0_70 = arith.constant 0 : index
    %106 = vector.load %arg27[%105, %c0_70] : memref<64x32xf32, #tpu.memory_space<vmem>>, vector<1x32xf32>
    %c7_71 = arith.constant 7 : index
    %c0_72 = arith.constant 0 : index
    %107 = vector.load %arg28[%c7_71, %c0_72] : memref<32x32xf32, #tpu.memory_space<vmem>>, vector<1x32xf32>
    tpu.vector_store %arg28[%c7_71, %c0_72], %106 {strides = array<i32>} : memref<32x32xf32, #tpu.memory_space<vmem>>, vector<1x32xf32>,
    %c8 = arith.constant 8 : index
    %108 = memref.load %arg0[%c8] : memref<32xi32, #tpu.memory_space<smem>>
    %109 = arith.index_cast %108 : i32 to index
    %c0_73 = arith.constant 0 : index
    %110 = vector.load %arg27[%109, %c0_73] : memref<64x32xf32, #tpu.memory_space<vmem>>, vector<1x32xf32>
    %c8_74 = arith.constant 8 : index
    %c0_75 = arith.constant 0 : index
    %111 = vector.load %arg28[%c8_74, %c0_75] : memref<32x32xf32, #tpu.memory_space<vmem>>, vector<1x32xf32>
    tpu.vector_store %arg28[%c8_74, %c0_75], %110 {strides = array<i32>} : memref<32x32xf32, #tpu.memory_space<vmem>>, vector<1x32xf32>,
    %c9 = arith.constant 9 : index
    %112 = memref.load %arg0[%c9] : memref<32xi32, #tpu.memory_space<smem>>
    %113 = arith.index_cast %112 : i32 to index
    %c0_76 = arith.constant 0 : index
    %114 = vector.load %arg27[%113, %c0_76] : memref<64x32xf32, #tpu.memory_space<vmem>>, vector<1x32xf32>
    %c9_77 = arith.constant 9 : index
    %c0_78 = arith.constant 0 : index
    %115 = vector.load %arg28[%c9_77, %c0_78] : memref<32x32xf32, #tpu.memory_space<vmem>>, vector<1x32xf32>
    tpu.vector_store %arg28[%c9_77, %c0_78], %114 {strides = array<i32>} : memref<32x32xf32, #tpu.memory_space<vmem>>, vector<1x32xf32>,
    %c10 = arith.constant 10 : index
    %116 = memref.load %arg0[%c10] : memref<32xi32, #tpu.memory_space<smem>>
    %117 = arith.index_cast %116 : i32 to index
    %c0_79 = arith.constant 0 : index
    %118 = vector.load %arg27[%117, %c0_79] : memref<64x32xf32, #tpu.memory_space<vmem>>, vector<1x32xf32>
    %c10_80 = arith.constant 10 : index
    %c0_81 = arith.constant 0 : index
    %119 = vector.load %arg28[%c10_80, %c0_81] : memref<32x32xf32, #tpu.memory_space<vmem>>, vector<1x32xf32>
    tpu.vector_store %arg28[%c10_80, %c0_81], %118 {strides = array<i32>} : memref<32x32xf32, #tpu.memory_space<vmem>>, vector<1x32xf32>,
    %c11 = arith.constant 11 : index
    %120 = memref.load %arg0[%c11] : memref<32xi32, #tpu.memory_space<smem>>
    %121 = arith.index_cast %120 : i32 to index
    %c0_82 = arith.constant 0 : index
    %122 = vector.load %arg27[%121, %c0_82] : memref<64x32xf32, #tpu.memory_space<vmem>>, vector<1x32xf32>
    %c11_83 = arith.constant 11 : index
    %c0_84 = arith.constant 0 : index
    %123 = vector.load %arg28[%c11_83, %c0_84] : memref<32x32xf32, #tpu.memory_space<vmem>>, vector<1x32xf32>
    tpu.vector_store %arg28[%c11_83, %c0_84], %122 {strides = array<i32>} : memref<32x32xf32, #tpu.memory_space<vmem>>, vector<1x32xf32>,
    %c12 = arith.constant 12 : index
    %124 = memref.load %arg0[%c12] : memref<32xi32, #tpu.memory_space<smem>>
    %125 = arith.index_cast %124 : i32 to index
    %c0_85 = arith.constant 0 : index
    %126 = vector.load %arg27[%125, %c0_85] : memref<64x32xf32, #tpu.memory_space<vmem>>, vector<1x32xf32>
    %c12_86 = arith.constant 12 : index
    %c0_87 = arith.constant 0 : index
    %127 = vector.load %arg28[%c12_86, %c0_87] : memref<32x32xf32, #tpu.memory_space<vmem>>, vector<1x32xf32>
    tpu.vector_store %arg28[%c12_86, %c0_87], %126 {strides = array<i32>} : memref<32x32xf32, #tpu.memory_space<vmem>>, vector<1x32xf32>,
    %c13 = arith.constant 13 : index
    %128 = memref.load %arg0[%c13] : memref<32xi32, #tpu.memory_space<smem>>
    %129 = arith.index_cast %128 : i32 to index
    %c0_88 = arith.constant 0 : index
    %130 = vector.load %arg27[%129, %c0_88] : memref<64x32xf32, #tpu.memory_space<vmem>>, vector<1x32xf32>
    %c13_89 = arith.constant 13 : index
    %c0_90 = arith.constant 0 : index
    %131 = vector.load %arg28[%c13_89, %c0_90] : memref<32x32xf32, #tpu.memory_space<vmem>>, vector<1x32xf32>
    tpu.vector_store %arg28[%c13_89, %c0_90], %130 {strides = array<i32>} : memref<32x32xf32, #tpu.memory_space<vmem>>, vector<1x32xf32>,
    %c14 = arith.constant 14 : index
    %132 = memref.load %arg0[%c14] : memref<32xi32, #tpu.memory_space<smem>>
    %133 = arith.index_cast %132 : i32 to index
    %c0_91 = arith.constant 0 : index
    %134 = vector.load %arg27[%133, %c0_91] : memref<64x32xf32, #tpu.memory_space<vmem>>, vector<1x32xf32>
    %c14_92 = arith.constant 14 : index
    %c0_93 = arith.constant 0 : index
    %135 = vector.load %arg28[%c14_92, %c0_93] : memref<32x32xf32, #tpu.memory_space<vmem>>, vector<1x32xf32>
    tpu.vector_store %arg28[%c14_92, %c0_93], %134 {strides = array<i32>} : memref<32x32xf32, #tpu.memory_space<vmem>>, vector<1x32xf32>,
    %c15 = arith.constant 15 : index
    %136 = memref.load %arg0[%c15] : memref<32xi32, #tpu.memory_space<smem>>
    %137 = arith.index_cast %136 : i32 to index
    %c0_94 = arith.constant 0 : index
    %138 = vector.load %arg27[%137, %c0_94] : memref<64x32xf32, #tpu.memory_space<vmem>>, vector<1x32xf32>
    %c15_95 = arith.constant 15 : index
    %c0_96 = arith.constant 0 : index
    %139 = vector.load %arg28[%c15_95, %c0_96] : memref<32x32xf32, #tpu.memory_space<vmem>>, vector<1x32xf32>
    tpu.vector_store %arg28[%c15_95, %c0_96], %138 {strides = array<i32>} : memref<32x32xf32, #tpu.memory_space<vmem>>, vector<1x32xf32>,
    %c16 = arith.constant 16 : index
    %140 = memref.load %arg0[%c16] : memref<32xi32, #tpu.memory_space<smem>>
    %141 = arith.index_cast %140 : i32 to index
    %c0_97 = arith.constant 0 : index
    %142 = vector.load %arg27[%141, %c0_97] : memref<64x32xf32, #tpu.memory_space<vmem>>, vector<1x32xf32>
    %c16_98 = arith.constant 16 : index
    %c0_99 = arith.constant 0 : index
    %143 = vector.load %arg28[%c16_98, %c0_99] : memref<32x32xf32, #tpu.memory_space<vmem>>, vector<1x32xf32>
    tpu.vector_store %arg28[%c16_98, %c0_99], %142 {strides = array<i32>} : memref<32x32xf32, #tpu.memory_space<vmem>>, vector<1x32xf32>,
    %c17 = arith.constant 17 : index
    %144 = memref.load %arg0[%c17] : memref<32xi32, #tpu.memory_space<smem>>
    %145 = arith.index_cast %144 : i32 to index
    %c0_100 = arith.constant 0 : index
    %146 = vector.load %arg27[%145, %c0_100] : memref<64x32xf32, #tpu.memory_space<vmem>>, vector<1x32xf32>
    %c17_101 = arith.constant 17 : index
    %c0_102 = arith.constant 0 : index
    %147 = vector.load %arg28[%c17_101, %c0_102] : memref<32x32xf32, #tpu.memory_space<vmem>>, vector<1x32xf32>
    tpu.vector_store %arg28[%c17_101, %c0_102], %146 {strides = array<i32>} : memref<32x32xf32, #tpu.memory_space<vmem>>, vector<1x32xf32>,
    %c18 = arith.constant 18 : index
    %148 = memref.load %arg0[%c18] : memref<32xi32, #tpu.memory_space<smem>>
    %149 = arith.index_cast %148 : i32 to index
    %c0_103 = arith.constant 0 : index
    %150 = vector.load %arg27[%149, %c0_103] : memref<64x32xf32, #tpu.memory_space<vmem>>, vector<1x32xf32>
    %c18_104 = arith.constant 18 : index
    %c0_105 = arith.constant 0 : index
    %151 = vector.load %arg28[%c18_104, %c0_105] : memref<32x32xf32, #tpu.memory_space<vmem>>, vector<1x32xf32>
    tpu.vector_store %arg28[%c18_104, %c0_105], %150 {strides = array<i32>} : memref<32x32xf32, #tpu.memory_space<vmem>>, vector<1x32xf32>,
    %c19 = arith.constant 19 : index
    %152 = memref.load %arg0[%c19] : memref<32xi32, #tpu.memory_space<smem>>
    %153 = arith.index_cast %152 : i32 to index
    %c0_106 = arith.constant 0 : index
    %154 = vector.load %arg27[%153, %c0_106] : memref<64x32xf32, #tpu.memory_space<vmem>>, vector<1x32xf32>
    %c19_107 = arith.constant 19 : index
    %c0_108 = arith.constant 0 : index
    %155 = vector.load %arg28[%c19_107, %c0_108] : memref<32x32xf32, #tpu.memory_space<vmem>>, vector<1x32xf32>
    tpu.vector_store %arg28[%c19_107, %c0_108], %154 {strides = array<i32>} : memref<32x32xf32, #tpu.memory_space<vmem>>, vector<1x32xf32>,
    %c20 = arith.constant 20 : index
    %156 = memref.load %arg0[%c20] : memref<32xi32, #tpu.memory_space<smem>>
    %157 = arith.index_cast %156 : i32 to index
    %c0_109 = arith.constant 0 : index
    %158 = vector.load %arg27[%157, %c0_109] : memref<64x32xf32, #tpu.memory_space<vmem>>, vector<1x32xf32>
    %c20_110 = arith.constant 20 : index
    %c0_111 = arith.constant 0 : index
    %159 = vector.load %arg28[%c20_110, %c0_111] : memref<32x32xf32, #tpu.memory_space<vmem>>, vector<1x32xf32>
    tpu.vector_store %arg28[%c20_110, %c0_111], %158 {strides = array<i32>} : memref<32x32xf32, #tpu.memory_space<vmem>>, vector<1x32xf32>,
    %c21 = arith.constant 21 : index
    %160 = memref.load %arg0[%c21] : memref<32xi32, #tpu.memory_space<smem>>
    %161 = arith.index_cast %160 : i32 to index
    %c0_112 = arith.constant 0 : index
    %162 = vector.load %arg27[%161, %c0_112] : memref<64x32xf32, #tpu.memory_space<vmem>>, vector<1x32xf32>
    %c21_113 = arith.constant 21 : index
    %c0_114 = arith.constant 0 : index
    %163 = vector.load %arg28[%c21_113, %c0_114] : memref<32x32xf32, #tpu.memory_space<vmem>>, vector<1x32xf32>
    tpu.vector_store %arg28[%c21_113, %c0_114], %162 {strides = array<i32>} : memref<32x32xf32, #tpu.memory_space<vmem>>, vector<1x32xf32>,
    %c22 = arith.constant 22 : index
    %164 = memref.load %arg0[%c22] : memref<32xi32, #tpu.memory_space<smem>>
    %165 = arith.index_cast %164 : i32 to index
    %c0_115 = arith.constant 0 : index
    %166 = vector.load %arg27[%165, %c0_115] : memref<64x32xf32, #tpu.memory_space<vmem>>, vector<1x32xf32>
    %c22_116 = arith.constant 22 : index
    %c0_117 = arith.constant 0 : index
    %167 = vector.load %arg28[%c22_116, %c0_117] : memref<32x32xf32, #tpu.memory_space<vmem>>, vector<1x32xf32>
    tpu.vector_store %arg28[%c22_116, %c0_117], %166 {strides = array<i32>} : memref<32x32xf32, #tpu.memory_space<vmem>>, vector<1x32xf32>,
    %c23 = arith.constant 23 : index
    %168 = memref.load %arg0[%c23] : memref<32xi32, #tpu.memory_space<smem>>
    %169 = arith.index_cast %168 : i32 to index
    %c0_118 = arith.constant 0 : index
    %170 = vector.load %arg27[%169, %c0_118] : memref<64x32xf32, #tpu.memory_space<vmem>>, vector<1x32xf32>
    %c23_119 = arith.constant 23 : index
    %c0_120 = arith.constant 0 : index
    %171 = vector.load %arg28[%c23_119, %c0_120] : memref<32x32xf32, #tpu.memory_space<vmem>>, vector<1x32xf32>
    tpu.vector_store %arg28[%c23_119, %c0_120], %170 {strides = array<i32>} : memref<32x32xf32, #tpu.memory_space<vmem>>, vector<1x32xf32>,
    %c24 = arith.constant 24 : index
    %172 = memref.load %arg0[%c24] : memref<32xi32, #tpu.memory_space<smem>>
    %173 = arith.index_cast %172 : i32 to index
    %c0_121 = arith.constant 0 : index
    %174 = vector.load %arg27[%173, %c0_121] : memref<64x32xf32, #tpu.memory_space<vmem>>, vector<1x32xf32>
    %c24_122 = arith.constant 24 : index
    %c0_123 = arith.constant 0 : index
    %175 = vector.load %arg28[%c24_122, %c0_123] : memref<32x32xf32, #tpu.memory_space<vmem>>, vector<1x32xf32>
    tpu.vector_store %arg28[%c24_122, %c0_123], %174 {strides = array<i32>} : memref<32x32xf32, #tpu.memory_space<vmem>>, vector<1x32xf32>,
    %c25 = arith.constant 25 : index
    %176 = memref.load %arg0[%c25] : memref<32xi32, #tpu.memory_space<smem>>
    %177 = arith.index_cast %176 : i32 to index
    %c0_124 = arith.constant 0 : index
    %178 = vector.load %arg27[%177, %c0_124] : memref<64x32xf32, #tpu.memory_space<vmem>>, vector<1x32xf32>
    %c25_125 = arith.constant 25 : index
    %c0_126 = arith.constant 0 : index
    %179 = vector.load %arg28[%c25_125, %c0_126] : memref<32x32xf32, #tpu.memory_space<vmem>>, vector<1x32xf32>
    tpu.vector_store %arg28[%c25_125, %c0_126], %178 {strides = array<i32>} : memref<32x32xf32, #tpu.memory_space<vmem>>, vector<1x32xf32>,
    %c26 = arith.constant 26 : index
    %180 = memref.load %arg0[%c26] : memref<32xi32, #tpu.memory_space<smem>>
    %181 = arith.index_cast %180 : i32 to index
    %c0_127 = arith.constant 0 : index
    %182 = vector.load %arg27[%181, %c0_127] : memref<64x32xf32, #tpu.memory_space<vmem>>, vector<1x32xf32>
    %c26_128 = arith.constant 26 : index
    %c0_129 = arith.constant 0 : index
    %183 = vector.load %arg28[%c26_128, %c0_129] : memref<32x32xf32, #tpu.memory_space<vmem>>, vector<1x32xf32>
    tpu.vector_store %arg28[%c26_128, %c0_129], %182 {strides = array<i32>} : memref<32x32xf32, #tpu.memory_space<vmem>>, vector<1x32xf32>,
    %c27 = arith.constant 27 : index
    %184 = memref.load %arg0[%c27] : memref<32xi32, #tpu.memory_space<smem>>
    %185 = arith.index_cast %184 : i32 to index
    %c0_130 = arith.constant 0 : index
    %186 = vector.load %arg27[%185, %c0_130] : memref<64x32xf32, #tpu.memory_space<vmem>>, vector<1x32xf32>
    %c27_131 = arith.constant 27 : index
    %c0_132 = arith.constant 0 : index
    %187 = vector.load %arg28[%c27_131, %c0_132] : memref<32x32xf32, #tpu.memory_space<vmem>>, vector<1x32xf32>
    tpu.vector_store %arg28[%c27_131, %c0_132], %186 {strides = array<i32>} : memref<32x32xf32, #tpu.memory_space<vmem>>, vector<1x32xf32>,
    %c28 = arith.constant 28 : index
    %188 = memref.load %arg0[%c28] : memref<32xi32, #tpu.memory_space<smem>>
    %189 = arith.index_cast %188 : i32 to index
    %c0_133 = arith.constant 0 : index
    %190 = vector.load %arg27[%189, %c0_133] : memref<64x32xf32, #tpu.memory_space<vmem>>, vector<1x32xf32>
    %c28_134 = arith.constant 28 : index
    %c0_135 = arith.constant 0 : index
    %191 = vector.load %arg28[%c28_134, %c0_135] : memref<32x32xf32, #tpu.memory_space<vmem>>, vector<1x32xf32>
    tpu.vector_store %arg28[%c28_134, %c0_135], %190 {strides = array<i32>} : memref<32x32xf32, #tpu.memory_space<vmem>>, vector<1x32xf32>,
    %c29 = arith.constant 29 : index
    %192 = memref.load %arg0[%c29] : memref<32xi32, #tpu.memory_space<smem>>
    %193 = arith.index_cast %192 : i32 to index
    %c0_136 = arith.constant 0 : index
    %194 = vector.load %arg27[%193, %c0_136] : memref<64x32xf32, #tpu.memory_space<vmem>>, vector<1x32xf32>
    %c29_137 = arith.constant 29 : index
    %c0_138 = arith.constant 0 : index
    %195 = vector.load %arg28[%c29_137, %c0_138] : memref<32x32xf32, #tpu.memory_space<vmem>>, vector<1x32xf32>
    tpu.vector_store %arg28[%c29_137, %c0_138], %194 {strides = array<i32>} : memref<32x32xf32, #tpu.memory_space<vmem>>, vector<1x32xf32>,
    %c30 = arith.constant 30 : index
    %196 = memref.load %arg0[%c30] : memref<32xi32, #tpu.memory_space<smem>>
    %197 = arith.index_cast %196 : i32 to index
    %c0_139 = arith.constant 0 : index
    %198 = vector.load %arg27[%197, %c0_139] : memref<64x32xf32, #tpu.memory_space<vmem>>, vector<1x32xf32>
    %c30_140 = arith.constant 30 : index
    %c0_141 = arith.constant 0 : index
    %199 = vector.load %arg28[%c30_140, %c0_141] : memref<32x32xf32, #tpu.memory_space<vmem>>, vector<1x32xf32>
    tpu.vector_store %arg28[%c30_140, %c0_141], %198 {strides = array<i32>} : memref<32x32xf32, #tpu.memory_space<vmem>>, vector<1x32xf32>,
    %c31 = arith.constant 31 : index
    %200 = memref.load %arg0[%c31] : memref<32xi32, #tpu.memory_space<smem>>
    %201 = arith.index_cast %200 : i32 to index
    %c0_142 = arith.constant 0 : index
    %202 = vector.load %arg27[%201, %c0_142] : memref<64x32xf32, #tpu.memory_space<vmem>>, vector<1x32xf32>
    %c31_143 = arith.constant 31 : index
    %c0_144 = arith.constant 0 : index
    %203 = vector.load %arg28[%c31_143, %c0_144] : memref<32x32xf32, #tpu.memory_space<vmem>>, vector<1x32xf32>
    tpu.vector_store %arg28[%c31_143, %c0_144], %202 {strides = array<i32>} : memref<32x32xf32, #tpu.memory_space<vmem>>, vector<1x32xf32>,
    %c0_145 = arith.constant 0 : index
    %c0_146 = arith.constant 0 : index
    %204 = vector.load %arg28[%c0_145, %c0_146] : memref<32x32xf32, #tpu.memory_space<vmem>>, vector<16x32xf32>
    %c0_147 = arith.constant 0 : index
    %c0_148 = arith.constant 0 : index
    %c0_149 = arith.constant 0 : index
    %205 = vector.load %arg7[%c0_147, %c0_148, %c0_149] : memref<2x32x96xf32, #tpu.memory_space<vmem>>, vector<1x32x96xf32>
    %206 = vector.shape_cast %205 : vector<1x32x96xf32> to vector<32x96xf32>
    %cst_150 = arith.constant dense<0.000000e+00> : vector<16x96xf32>
    %207 = tpu.matmul %204, %206, %cst_150 {dimension_numbers = #tpu.dot_dimension_numbers<[1], [0], [0], [1], [0, 0, 1, 1], [], []>} : vector<16x32xf32>, vector<32x96xf32>, vector<16x96xf32> -> vector<16x96xf32>
    %c0_151 = arith.constant 0 : index
    %c0_152 = arith.constant 0 : index
    %c0_153 = arith.constant 0 : index
    %208 = vector.load %arg8[%c0_151, %c0_152, %c0_153] : memref<2x1x96xf32, #tpu.memory_space<vmem>>, vector<1x1x96xf32>
    %209 = vector.shape_cast %208 : vector<1x1x96xf32> to vector<1x96xf32>
    %210 = vector.broadcast %209 : vector<1x96xf32> to vector<16x96xf32>
    %211 = arith.addf %207, %210 : vector<16x96xf32>
    %212 = math.tanh %211 : vector<16x96xf32>
    %c0_154 = arith.constant 0 : index
    %c0_155 = arith.constant 0 : index
    %c0_156 = arith.constant 0 : index
    %213 = vector.load %arg9[%c0_154, %c0_155, %c0_156] : memref<2x96x768xf32, #tpu.memory_space<vmem>>, vector<1x96x768xf32>
    %214 = vector.shape_cast %213 : vector<1x96x768xf32> to vector<96x768xf32>
    %cst_157 = arith.constant dense<0.000000e+00> : vector<16x768xf32>
    %215 = tpu.matmul %212, %214, %cst_157 {dimension_numbers = #tpu.dot_dimension_numbers<[1], [0], [0], [1], [0, 0, 1, 1], [], []>} : vector<16x96xf32>, vector<96x768xf32>, vector<16x768xf32> -> vector<16x768xf32>
    %c0_158 = arith.constant 0 : index
    %c0_159 = arith.constant 0 : index
    %c0_160 = arith.constant 0 : index
    %216 = vector.load %arg10[%c0_158, %c0_159, %c0_160] : memref<2x1x768xf32, #tpu.memory_space<vmem>>, vector<1x1x768xf32>
    %217 = vector.shape_cast %216 : vector<1x1x768xf32> to vector<1x768xf32>
    %218 = vector.broadcast %217 : vector<1x768xf32> to vector<16x768xf32>
    %219 = arith.addf %215, %218 : vector<16x768xf32>
    %220 = math.tanh %219 : vector<16x768xf32>
    %c0_161 = arith.constant 0 : index
    %c0_162 = arith.constant 0 : index
    %c0_163 = arith.constant 0 : index
    %221 = vector.load %arg11[%c0_161, %c0_162, %c0_163] : memref<2x768x48xf32, #tpu.memory_space<vmem>>, vector<1x768x48xf32>
    %222 = vector.shape_cast %221 : vector<1x768x48xf32> to vector<768x48xf32>
    %cst_164 = arith.constant dense<0.000000e+00> : vector<16x48xf32>
    %223 = tpu.matmul %220, %222, %cst_164 {dimension_numbers = #tpu.dot_dimension_numbers<[1], [0], [0], [1], [0, 0, 1, 1], [], []>} : vector<16x768xf32>, vector<768x48xf32>, vector<16x48xf32> -> vector<16x48xf32>
    %c0_165 = arith.constant 0 : index
    %c0_166 = arith.constant 0 : index
    %c0_167 = arith.constant 0 : index
    %224 = vector.load %arg12[%c0_165, %c0_166, %c0_167] : memref<2x1x48xf32, #tpu.memory_space<vmem>>, vector<1x1x48xf32>
    %225 = vector.shape_cast %224 : vector<1x1x48xf32> to vector<1x48xf32>
    %226 = vector.broadcast %225 : vector<1x48xf32> to vector<16x48xf32>
    %227 = arith.addf %223, %226 : vector<16x48xf32>
    %c0_168 = arith.constant 0 : index
    %c0_169 = arith.constant 0 : index
    %228 = vector.load %arg13[%c0_168, %c0_169] : memref<48x48xf32, #tpu.memory_space<vmem>>, vector<48x48xf32>
    %cst_170 = arith.constant dense<0.000000e+00> : vector<16x48xf32>
    %229 = tpu.matmul %227, %228, %cst_170 {dimension_numbers = #tpu.dot_dimension_numbers<[1], [0], [0], [1], [0, 0, 1, 1], [], []>} : vector<16x48xf32>, vector<48x48xf32>, vector<16x48xf32> -> vector<16x48xf32>
    %c0_171 = arith.constant 0 : index
    %c0_172 = arith.constant 0 : index
    %230 = vector.load %arg14[%c0_171, %c0_172] : memref<1x48xf32, #tpu.memory_space<vmem>>, vector<1x48xf32>
    %231 = vector.broadcast %230 : vector<1x48xf32> to vector<16x48xf32>
    %232 = arith.addf %229, %231 : vector<16x48xf32>
    %c0_173 = arith.constant 0 : index
    %c0_174 = arith.constant 0 : index
    %233 = vector.load %arg15[%c0_173, %c0_174] : memref<48x48xf32, #tpu.memory_space<vmem>>, vector<48x48xf32>
    %cst_175 = arith.constant dense<0.000000e+00> : vector<16x48xf32>
    %234 = tpu.matmul %227, %233, %cst_175 {dimension_numbers = #tpu.dot_dimension_numbers<[1], [0], [0], [1], [0, 0, 1, 1], [], []>} : vector<16x48xf32>, vector<48x48xf32>, vector<16x48xf32> -> vector<16x48xf32>
    %c0_176 = arith.constant 0 : index
    %c0_177 = arith.constant 0 : index
    %235 = vector.load %arg16[%c0_176, %c0_177] : memref<1x48xf32, #tpu.memory_space<vmem>>, vector<1x48xf32>
    %236 = vector.broadcast %235 : vector<1x48xf32> to vector<16x48xf32>
    %237 = arith.addf %234, %236 : vector<16x48xf32>
    %c0_178 = arith.constant 0 : index
    %c0_179 = arith.constant 0 : index
    %238 = vector.load %arg17[%c0_178, %c0_179] : memref<48x48xf32, #tpu.memory_space<vmem>>, vector<48x48xf32>
    %cst_180 = arith.constant dense<0.000000e+00> : vector<16x48xf32>
    %239 = tpu.matmul %227, %238, %cst_180 {dimension_numbers = #tpu.dot_dimension_numbers<[1], [0], [0], [1], [0, 0, 1, 1], [], []>} : vector<16x48xf32>, vector<48x48xf32>, vector<16x48xf32> -> vector<16x48xf32>
    %c0_181 = arith.constant 0 : index
    %c0_182 = arith.constant 0 : index
    %240 = vector.load %arg18[%c0_181, %c0_182] : memref<1x48xf32, #tpu.memory_space<vmem>>, vector<1x48xf32>
    %241 = vector.broadcast %240 : vector<1x48xf32> to vector<16x48xf32>
    %242 = arith.addf %239, %241 : vector<16x48xf32>
    %243 = vector.extract_strided_slice %232 {offsets = [0, 0], sizes = [16, 16], strides = [1, 1]} : vector<16x48xf32> to vector<16x16xf32>
    %244 = vector.extract_strided_slice %232 {offsets = [0, 16], sizes = [16, 16], strides = [1, 1]} : vector<16x48xf32> to vector<16x16xf32>
    %245 = vector.extract_strided_slice %232 {offsets = [0, 32], sizes = [16, 16], strides = [1, 1]} : vector<16x48xf32> to vector<16x16xf32>
    %246 = vector.extract_strided_slice %237 {offsets = [0, 0], sizes = [16, 16], strides = [1, 1]} : vector<16x48xf32> to vector<16x16xf32>
    %247 = vector.extract_strided_slice %237 {offsets = [0, 16], sizes = [16, 16], strides = [1, 1]} : vector<16x48xf32> to vector<16x16xf32>
    %248 = vector.extract_strided_slice %237 {offsets = [0, 32], sizes = [16, 16], strides = [1, 1]} : vector<16x48xf32> to vector<16x16xf32>
    %249 = vector.extract_strided_slice %242 {offsets = [0, 0], sizes = [16, 16], strides = [1, 1]} : vector<16x48xf32> to vector<16x16xf32>
    %250 = vector.extract_strided_slice %242 {offsets = [0, 16], sizes = [16, 16], strides = [1, 1]} : vector<16x48xf32> to vector<16x16xf32>
    %251 = vector.extract_strided_slice %242 {offsets = [0, 32], sizes = [16, 16], strides = [1, 1]} : vector<16x48xf32> to vector<16x16xf32>
    %252 = arith.mulf %243, %246 : vector<16x16xf32>
    %cst_183 = arith.constant dense<0.000000e+00> : vector<16xf32>
    %253 = vector.multi_reduction <add>, %252, %cst_183 [1] : vector<16x16xf32> to vector<16xf32>
    %254 = vector.shape_cast %253 : vector<16xf32> to vector<16x1xf32>
    %255 = arith.mulf %243, %247 : vector<16x16xf32>
    %cst_184 = arith.constant dense<0.000000e+00> : vector<16xf32>
    %256 = vector.multi_reduction <add>, %255, %cst_184 [1] : vector<16x16xf32> to vector<16xf32>
    %257 = vector.shape_cast %256 : vector<16xf32> to vector<16x1xf32>
    %258 = arith.mulf %243, %248 : vector<16x16xf32>
    %cst_185 = arith.constant dense<0.000000e+00> : vector<16xf32>
    %259 = vector.multi_reduction <add>, %258, %cst_185 [1] : vector<16x16xf32> to vector<16xf32>
    %260 = vector.shape_cast %259 : vector<16xf32> to vector<16x1xf32>
    %261 = tpu.concatenate %254, %257, %260 in 1 : vector<16x1xf32>, vector<16x1xf32>, vector<16x1xf32> -> vector<16x3xf32>
    %cst_186 = arith.constant 2.500000e-01 : f32
    %262 = vector.broadcast %cst_186 : f32 to vector<16x3xf32>
    %263 = arith.mulf %261, %262 : vector<16x3xf32>
    %cst_187 = arith.constant dense<0xFF800000> : vector<16xf32>
    %264 = vector.multi_reduction <maximumf>, %263, %cst_187 [1] : vector<16x3xf32> to vector<16xf32>
    %265 = vector.shape_cast %264 : vector<16xf32> to vector<16x1xf32>
    %266 = vector.broadcast %265 : vector<16x1xf32> to vector<16x3xf32>
    %267 = arith.subf %263, %266 : vector<16x3xf32>
    %268 = math.exp %267 : vector<16x3xf32>
    %cst_188 = arith.constant dense<0.000000e+00> : vector<16xf32>
    %269 = vector.multi_reduction <add>, %268, %cst_188 [1] : vector<16x3xf32> to vector<16xf32>
    %270 = vector.shape_cast %269 : vector<16xf32> to vector<16x1xf32>
    %271 = tpu.reciprocal %270 {approx = true} : vector<16x1xf32> -> vector<16x1xf32>
    %272 = vector.broadcast %271 : vector<16x1xf32> to vector<16x3xf32>
    %273 = arith.mulf %268, %272 : vector<16x3xf32>
    %274 = vector.extract_strided_slice %273 {offsets = [0, 0], sizes = [16, 1], strides = [1, 1]} : vector<16x3xf32> to vector<16x1xf32>
    %275 = vector.broadcast %274 : vector<16x1xf32> to vector<16x16xf32>
    %276 = arith.mulf %275, %249 : vector<16x16xf32>
    %277 = vector.extract_strided_slice %273 {offsets = [0, 1], sizes = [16, 1], strides = [1, 1]} : vector<16x3xf32> to vector<16x1xf32>
    %278 = vector.broadcast %277 : vector<16x1xf32> to vector<16x16xf32>
    %279 = arith.mulf %278, %250 : vector<16x16xf32>
    %280 = arith.addf %276, %279 : vector<16x16xf32>
    %281 = vector.extract_strided_slice %273 {offsets = [0, 2], sizes = [16, 1], strides = [1, 1]} : vector<16x3xf32> to vector<16x1xf32>
    %282 = vector.broadcast %281 : vector<16x1xf32> to vector<16x16xf32>
    %283 = arith.mulf %282, %251 : vector<16x16xf32>
    %284 = arith.addf %280, %283 : vector<16x16xf32>
    %285 = arith.mulf %244, %246 : vector<16x16xf32>
    %cst_189 = arith.constant dense<0.000000e+00> : vector<16xf32>
    %286 = vector.multi_reduction <add>, %285, %cst_189 [1] : vector<16x16xf32> to vector<16xf32>
    %287 = vector.shape_cast %286 : vector<16xf32> to vector<16x1xf32>
    %288 = arith.mulf %244, %247 : vector<16x16xf32>
    %cst_190 = arith.constant dense<0.000000e+00> : vector<16xf32>
    %289 = vector.multi_reduction <add>, %288, %cst_190 [1] : vector<16x16xf32> to vector<16xf32>
    %290 = vector.shape_cast %289 : vector<16xf32> to vector<16x1xf32>
    %291 = arith.mulf %244, %248 : vector<16x16xf32>
    %cst_191 = arith.constant dense<0.000000e+00> : vector<16xf32>
    %292 = vector.multi_reduction <add>, %291, %cst_191 [1] : vector<16x16xf32> to vector<16xf32>
    %293 = vector.shape_cast %292 : vector<16xf32> to vector<16x1xf32>
    %294 = tpu.concatenate %287, %290, %293 in 1 : vector<16x1xf32>, vector<16x1xf32>, vector<16x1xf32> -> vector<16x3xf32>
    %cst_192 = arith.constant 2.500000e-01 : f32
    %295 = vector.broadcast %cst_192 : f32 to vector<16x3xf32>
    %296 = arith.mulf %294, %295 : vector<16x3xf32>
    %cst_193 = arith.constant dense<0xFF800000> : vector<16xf32>
    %297 = vector.multi_reduction <maximumf>, %296, %cst_193 [1] : vector<16x3xf32> to vector<16xf32>
    %298 = vector.shape_cast %297 : vector<16xf32> to vector<16x1xf32>
    %299 = vector.broadcast %298 : vector<16x1xf32> to vector<16x3xf32>
    %300 = arith.subf %296, %299 : vector<16x3xf32>
    %301 = math.exp %300 : vector<16x3xf32>
    %cst_194 = arith.constant dense<0.000000e+00> : vector<16xf32>
    %302 = vector.multi_reduction <add>, %301, %cst_194 [1] : vector<16x3xf32> to vector<16xf32>
    %303 = vector.shape_cast %302 : vector<16xf32> to vector<16x1xf32>
    %304 = tpu.reciprocal %303 {approx = true} : vector<16x1xf32> -> vector<16x1xf32>
    %305 = vector.broadcast %304 : vector<16x1xf32> to vector<16x3xf32>
    %306 = arith.mulf %301, %305 : vector<16x3xf32>
    %307 = vector.extract_strided_slice %306 {offsets = [0, 0], sizes = [16, 1], strides = [1, 1]} : vector<16x3xf32> to vector<16x1xf32>
    %308 = vector.broadcast %307 : vector<16x1xf32> to vector<16x16xf32>
    %309 = arith.mulf %308, %249 : vector<16x16xf32>
    %310 = vector.extract_strided_slice %306 {offsets = [0, 1], sizes = [16, 1], strides = [1, 1]} : vector<16x3xf32> to vector<16x1xf32>
    %311 = vector.broadcast %310 : vector<16x1xf32> to vector<16x16xf32>
    %312 = arith.mulf %311, %250 : vector<16x16xf32>
    %313 = arith.addf %309, %312 : vector<16x16xf32>
    %314 = vector.extract_strided_slice %306 {offsets = [0, 2], sizes = [16, 1], strides = [1, 1]} : vector<16x3xf32> to vector<16x1xf32>
    %315 = vector.broadcast %314 : vector<16x1xf32> to vector<16x16xf32>
    %316 = arith.mulf %315, %251 : vector<16x16xf32>
    %317 = arith.addf %313, %316 : vector<16x16xf32>
    %318 = arith.mulf %245, %246 : vector<16x16xf32>
    %cst_195 = arith.constant dense<0.000000e+00> : vector<16xf32>
    %319 = vector.multi_reduction <add>, %318, %cst_195 [1] : vector<16x16xf32> to vector<16xf32>
    %320 = vector.shape_cast %319 : vector<16xf32> to vector<16x1xf32>
    %321 = arith.mulf %245, %247 : vector<16x16xf32>
    %cst_196 = arith.constant dense<0.000000e+00> : vector<16xf32>
    %322 = vector.multi_reduction <add>, %321, %cst_196 [1] : vector<16x16xf32> to vector<16xf32>
    %323 = vector.shape_cast %322 : vector<16xf32> to vector<16x1xf32>
    %324 = arith.mulf %245, %248 : vector<16x16xf32>
    %cst_197 = arith.constant dense<0.000000e+00> : vector<16xf32>
    %325 = vector.multi_reduction <add>, %324, %cst_197 [1] : vector<16x16xf32> to vector<16xf32>
    %326 = vector.shape_cast %325 : vector<16xf32> to vector<16x1xf32>
    %327 = tpu.concatenate %320, %323, %326 in 1 : vector<16x1xf32>, vector<16x1xf32>, vector<16x1xf32> -> vector<16x3xf32>
    %cst_198 = arith.constant 2.500000e-01 : f32
    %328 = vector.broadcast %cst_198 : f32 to vector<16x3xf32>
    %329 = arith.mulf %327, %328 : vector<16x3xf32>
    %cst_199 = arith.constant dense<0xFF800000> : vector<16xf32>
    %330 = vector.multi_reduction <maximumf>, %329, %cst_199 [1] : vector<16x3xf32> to vector<16xf32>
    %331 = vector.shape_cast %330 : vector<16xf32> to vector<16x1xf32>
    %332 = vector.broadcast %331 : vector<16x1xf32> to vector<16x3xf32>
    %333 = arith.subf %329, %332 : vector<16x3xf32>
    %334 = math.exp %333 : vector<16x3xf32>
    %cst_200 = arith.constant dense<0.000000e+00> : vector<16xf32>
    %335 = vector.multi_reduction <add>, %334, %cst_200 [1] : vector<16x3xf32> to vector<16xf32>
    %336 = vector.shape_cast %335 : vector<16xf32> to vector<16x1xf32>
    %337 = tpu.reciprocal %336 {approx = true} : vector<16x1xf32> -> vector<16x1xf32>
    %338 = vector.broadcast %337 : vector<16x1xf32> to vector<16x3xf32>
    %339 = arith.mulf %334, %338 : vector<16x3xf32>
    %340 = vector.extract_strided_slice %339 {offsets = [0, 0], sizes = [16, 1], strides = [1, 1]} : vector<16x3xf32> to vector<16x1xf32>
    %341 = vector.broadcast %340 : vector<16x1xf32> to vector<16x16xf32>
    %342 = arith.mulf %341, %249 : vector<16x16xf32>
    %343 = vector.extract_strided_slice %339 {offsets = [0, 1], sizes = [16, 1], strides = [1, 1]} : vector<16x3xf32> to vector<16x1xf32>
    %344 = vector.broadcast %343 : vector<16x1xf32> to vector<16x16xf32>
    %345 = arith.mulf %344, %250 : vector<16x16xf32>
    %346 = arith.addf %342, %345 : vector<16x16xf32>
    %347 = vector.extract_strided_slice %339 {offsets = [0, 2], sizes = [16, 1], strides = [1, 1]} : vector<16x3xf32> to vector<16x1xf32>
    %348 = vector.broadcast %347 : vector<16x1xf32> to vector<16x16xf32>
    %349 = arith.mulf %348, %251 : vector<16x16xf32>
    %350 = arith.addf %346, %349 : vector<16x16xf32>
    %351 = tpu.concatenate %284, %317, %350 in 1 : vector<16x16xf32>, vector<16x16xf32>, vector<16x16xf32> -> vector<16x48xf32>
    %c16_201 = arith.constant 16 : index
    %c0_202 = arith.constant 0 : index
    %352 = vector.load %arg28[%c16_201, %c0_202] : memref<32x32xf32, #tpu.memory_space<vmem>>, vector<16x32xf32>
    %c1_203 = arith.constant 1 : index
    %c0_204 = arith.constant 0 : index
    %c0_205 = arith.constant 0 : index
    %353 = vector.load %arg7[%c1_203, %c0_204, %c0_205] : memref<2x32x96xf32, #tpu.memory_space<vmem>>, vector<1x32x96xf32>
    %354 = vector.shape_cast %353 : vector<1x32x96xf32> to vector<32x96xf32>
    %cst_206 = arith.constant dense<0.000000e+00> : vector<16x96xf32>
    %355 = tpu.matmul %352, %354, %cst_206 {dimension_numbers = #tpu.dot_dimension_numbers<[1], [0], [0], [1], [0, 0, 1, 1], [], []>} : vector<16x32xf32>, vector<32x96xf32>, vector<16x96xf32> -> vector<16x96xf32>
    %c1_207 = arith.constant 1 : index
    %c0_208 = arith.constant 0 : index
    %c0_209 = arith.constant 0 : index
    %356 = vector.load %arg8[%c1_207, %c0_208, %c0_209] : memref<2x1x96xf32, #tpu.memory_space<vmem>>, vector<1x1x96xf32>
    %357 = vector.shape_cast %356 : vector<1x1x96xf32> to vector<1x96xf32>
    %358 = vector.broadcast %357 : vector<1x96xf32> to vector<16x96xf32>
    %359 = arith.addf %355, %358 : vector<16x96xf32>
    %360 = math.tanh %359 : vector<16x96xf32>
    %c1_210 = arith.constant 1 : index
    %c0_211 = arith.constant 0 : index
    %c0_212 = arith.constant 0 : index
    %361 = vector.load %arg9[%c1_210, %c0_211, %c0_212] : memref<2x96x768xf32, #tpu.memory_space<vmem>>, vector<1x96x768xf32>
    %362 = vector.shape_cast %361 : vector<1x96x768xf32> to vector<96x768xf32>
    %cst_213 = arith.constant dense<0.000000e+00> : vector<16x768xf32>
    %363 = tpu.matmul %360, %362, %cst_213 {dimension_numbers = #tpu.dot_dimension_numbers<[1], [0], [0], [1], [0, 0, 1, 1], [], []>} : vector<16x96xf32>, vector<96x768xf32>, vector<16x768xf32> -> vector<16x768xf32>
    %c1_214 = arith.constant 1 : index
    %c0_215 = arith.constant 0 : index
    %c0_216 = arith.constant 0 : index
    %364 = vector.load %arg10[%c1_214, %c0_215, %c0_216] : memref<2x1x768xf32, #tpu.memory_space<vmem>>, vector<1x1x768xf32>
    %365 = vector.shape_cast %364 : vector<1x1x768xf32> to vector<1x768xf32>
    %366 = vector.broadcast %365 : vector<1x768xf32> to vector<16x768xf32>
    %367 = arith.addf %363, %366 : vector<16x768xf32>
    %368 = math.tanh %367 : vector<16x768xf32>
    %c1_217 = arith.constant 1 : index
    %c0_218 = arith.constant 0 : index
    %c0_219 = arith.constant 0 : index
    %369 = vector.load %arg11[%c1_217, %c0_218, %c0_219] : memref<2x768x48xf32, #tpu.memory_space<vmem>>, vector<1x768x48xf32>
    %370 = vector.shape_cast %369 : vector<1x768x48xf32> to vector<768x48xf32>
    %cst_220 = arith.constant dense<0.000000e+00> : vector<16x48xf32>
    %371 = tpu.matmul %368, %370, %cst_220 {dimension_numbers = #tpu.dot_dimension_numbers<[1], [0], [0], [1], [0, 0, 1, 1], [], []>} : vector<16x768xf32>, vector<768x48xf32>, vector<16x48xf32> -> vector<16x48xf32>
    %c1_221 = arith.constant 1 : index
    %c0_222 = arith.constant 0 : index
    %c0_223 = arith.constant 0 : index
    %372 = vector.load %arg12[%c1_221, %c0_222, %c0_223] : memref<2x1x48xf32, #tpu.memory_space<vmem>>, vector<1x1x48xf32>
    %373 = vector.shape_cast %372 : vector<1x1x48xf32> to vector<1x48xf32>
    %374 = vector.broadcast %373 : vector<1x48xf32> to vector<16x48xf32>
    %375 = arith.addf %371, %374 : vector<16x48xf32>
    %c0_224 = arith.constant 0 : index
    %c0_225 = arith.constant 0 : index
    %376 = vector.load %arg13[%c0_224, %c0_225] : memref<48x48xf32, #tpu.memory_space<vmem>>, vector<48x48xf32>
    %cst_226 = arith.constant dense<0.000000e+00> : vector<16x48xf32>
    %377 = tpu.matmul %375, %376, %cst_226 {dimension_numbers = #tpu.dot_dimension_numbers<[1], [0], [0], [1], [0, 0, 1, 1], [], []>} : vector<16x48xf32>, vector<48x48xf32>, vector<16x48xf32> -> vector<16x48xf32>
    %c0_227 = arith.constant 0 : index
    %c0_228 = arith.constant 0 : index
    %378 = vector.load %arg14[%c0_227, %c0_228] : memref<1x48xf32, #tpu.memory_space<vmem>>, vector<1x48xf32>
    %379 = vector.broadcast %378 : vector<1x48xf32> to vector<16x48xf32>
    %380 = arith.addf %377, %379 : vector<16x48xf32>
    %c0_229 = arith.constant 0 : index
    %c0_230 = arith.constant 0 : index
    %381 = vector.load %arg15[%c0_229, %c0_230] : memref<48x48xf32, #tpu.memory_space<vmem>>, vector<48x48xf32>
    %cst_231 = arith.constant dense<0.000000e+00> : vector<16x48xf32>
    %382 = tpu.matmul %375, %381, %cst_231 {dimension_numbers = #tpu.dot_dimension_numbers<[1], [0], [0], [1], [0, 0, 1, 1], [], []>} : vector<16x48xf32>, vector<48x48xf32>, vector<16x48xf32> -> vector<16x48xf32>
    %c0_232 = arith.constant 0 : index
    %c0_233 = arith.constant 0 : index
    %383 = vector.load %arg16[%c0_232, %c0_233] : memref<1x48xf32, #tpu.memory_space<vmem>>, vector<1x48xf32>
    %384 = vector.broadcast %383 : vector<1x48xf32> to vector<16x48xf32>
    %385 = arith.addf %382, %384 : vector<16x48xf32>
    %c0_234 = arith.constant 0 : index
    %c0_235 = arith.constant 0 : index
    %386 = vector.load %arg17[%c0_234, %c0_235] : memref<48x48xf32, #tpu.memory_space<vmem>>, vector<48x48xf32>
    %cst_236 = arith.constant dense<0.000000e+00> : vector<16x48xf32>
    %387 = tpu.matmul %375, %386, %cst_236 {dimension_numbers = #tpu.dot_dimension_numbers<[1], [0], [0], [1], [0, 0, 1, 1], [], []>} : vector<16x48xf32>, vector<48x48xf32>, vector<16x48xf32> -> vector<16x48xf32>
    %c0_237 = arith.constant 0 : index
    %c0_238 = arith.constant 0 : index
    %388 = vector.load %arg18[%c0_237, %c0_238] : memref<1x48xf32, #tpu.memory_space<vmem>>, vector<1x48xf32>
    %389 = vector.broadcast %388 : vector<1x48xf32> to vector<16x48xf32>
    %390 = arith.addf %387, %389 : vector<16x48xf32>
    %391 = vector.extract_strided_slice %380 {offsets = [0, 0], sizes = [16, 16], strides = [1, 1]} : vector<16x48xf32> to vector<16x16xf32>
    %392 = vector.extract_strided_slice %380 {offsets = [0, 16], sizes = [16, 16], strides = [1, 1]} : vector<16x48xf32> to vector<16x16xf32>
    %393 = vector.extract_strided_slice %380 {offsets = [0, 32], sizes = [16, 16], strides = [1, 1]} : vector<16x48xf32> to vector<16x16xf32>
    %394 = vector.extract_strided_slice %385 {offsets = [0, 0], sizes = [16, 16], strides = [1, 1]} : vector<16x48xf32> to vector<16x16xf32>
    %395 = vector.extract_strided_slice %385 {offsets = [0, 16], sizes = [16, 16], strides = [1, 1]} : vector<16x48xf32> to vector<16x16xf32>
    %396 = vector.extract_strided_slice %385 {offsets = [0, 32], sizes = [16, 16], strides = [1, 1]} : vector<16x48xf32> to vector<16x16xf32>
    %397 = vector.extract_strided_slice %390 {offsets = [0, 0], sizes = [16, 16], strides = [1, 1]} : vector<16x48xf32> to vector<16x16xf32>
    %398 = vector.extract_strided_slice %390 {offsets = [0, 16], sizes = [16, 16], strides = [1, 1]} : vector<16x48xf32> to vector<16x16xf32>
    %399 = vector.extract_strided_slice %390 {offsets = [0, 32], sizes = [16, 16], strides = [1, 1]} : vector<16x48xf32> to vector<16x16xf32>
    %400 = arith.mulf %391, %394 : vector<16x16xf32>
    %cst_239 = arith.constant dense<0.000000e+00> : vector<16xf32>
    %401 = vector.multi_reduction <add>, %400, %cst_239 [1] : vector<16x16xf32> to vector<16xf32>
    %402 = vector.shape_cast %401 : vector<16xf32> to vector<16x1xf32>
    %403 = arith.mulf %391, %395 : vector<16x16xf32>
    %cst_240 = arith.constant dense<0.000000e+00> : vector<16xf32>
    %404 = vector.multi_reduction <add>, %403, %cst_240 [1] : vector<16x16xf32> to vector<16xf32>
    %405 = vector.shape_cast %404 : vector<16xf32> to vector<16x1xf32>
    %406 = arith.mulf %391, %396 : vector<16x16xf32>
    %cst_241 = arith.constant dense<0.000000e+00> : vector<16xf32>
    %407 = vector.multi_reduction <add>, %406, %cst_241 [1] : vector<16x16xf32> to vector<16xf32>
    %408 = vector.shape_cast %407 : vector<16xf32> to vector<16x1xf32>
    %409 = tpu.concatenate %402, %405, %408 in 1 : vector<16x1xf32>, vector<16x1xf32>, vector<16x1xf32> -> vector<16x3xf32>
    %cst_242 = arith.constant 2.500000e-01 : f32
    %410 = vector.broadcast %cst_242 : f32 to vector<16x3xf32>
    %411 = arith.mulf %409, %410 : vector<16x3xf32>
    %cst_243 = arith.constant dense<0xFF800000> : vector<16xf32>
    %412 = vector.multi_reduction <maximumf>, %411, %cst_243 [1] : vector<16x3xf32> to vector<16xf32>
    %413 = vector.shape_cast %412 : vector<16xf32> to vector<16x1xf32>
    %414 = vector.broadcast %413 : vector<16x1xf32> to vector<16x3xf32>
    %415 = arith.subf %411, %414 : vector<16x3xf32>
    %416 = math.exp %415 : vector<16x3xf32>
    %cst_244 = arith.constant dense<0.000000e+00> : vector<16xf32>
    %417 = vector.multi_reduction <add>, %416, %cst_244 [1] : vector<16x3xf32> to vector<16xf32>
    %418 = vector.shape_cast %417 : vector<16xf32> to vector<16x1xf32>
    %419 = tpu.reciprocal %418 {approx = true} : vector<16x1xf32> -> vector<16x1xf32>
    %420 = vector.broadcast %419 : vector<16x1xf32> to vector<16x3xf32>
    %421 = arith.mulf %416, %420 : vector<16x3xf32>
    %422 = vector.extract_strided_slice %421 {offsets = [0, 0], sizes = [16, 1], strides = [1, 1]} : vector<16x3xf32> to vector<16x1xf32>
    %423 = vector.broadcast %422 : vector<16x1xf32> to vector<16x16xf32>
    %424 = arith.mulf %423, %397 : vector<16x16xf32>
    %425 = vector.extract_strided_slice %421 {offsets = [0, 1], sizes = [16, 1], strides = [1, 1]} : vector<16x3xf32> to vector<16x1xf32>
    %426 = vector.broadcast %425 : vector<16x1xf32> to vector<16x16xf32>
    %427 = arith.mulf %426, %398 : vector<16x16xf32>
    %428 = arith.addf %424, %427 : vector<16x16xf32>
    %429 = vector.extract_strided_slice %421 {offsets = [0, 2], sizes = [16, 1], strides = [1, 1]} : vector<16x3xf32> to vector<16x1xf32>
    %430 = vector.broadcast %429 : vector<16x1xf32> to vector<16x16xf32>
    %431 = arith.mulf %430, %399 : vector<16x16xf32>
    %432 = arith.addf %428, %431 : vector<16x16xf32>
    %433 = arith.mulf %392, %394 : vector<16x16xf32>
    %cst_245 = arith.constant dense<0.000000e+00> : vector<16xf32>
    %434 = vector.multi_reduction <add>, %433, %cst_245 [1] : vector<16x16xf32> to vector<16xf32>
    %435 = vector.shape_cast %434 : vector<16xf32> to vector<16x1xf32>
    %436 = arith.mulf %392, %395 : vector<16x16xf32>
    %cst_246 = arith.constant dense<0.000000e+00> : vector<16xf32>
    %437 = vector.multi_reduction <add>, %436, %cst_246 [1] : vector<16x16xf32> to vector<16xf32>
    %438 = vector.shape_cast %437 : vector<16xf32> to vector<16x1xf32>
    %439 = arith.mulf %392, %396 : vector<16x16xf32>
    %cst_247 = arith.constant dense<0.000000e+00> : vector<16xf32>
    %440 = vector.multi_reduction <add>, %439, %cst_247 [1] : vector<16x16xf32> to vector<16xf32>
    %441 = vector.shape_cast %440 : vector<16xf32> to vector<16x1xf32>
    %442 = tpu.concatenate %435, %438, %441 in 1 : vector<16x1xf32>, vector<16x1xf32>, vector<16x1xf32> -> vector<16x3xf32>
    %cst_248 = arith.constant 2.500000e-01 : f32
    %443 = vector.broadcast %cst_248 : f32 to vector<16x3xf32>
    %444 = arith.mulf %442, %443 : vector<16x3xf32>
    %cst_249 = arith.constant dense<0xFF800000> : vector<16xf32>
    %445 = vector.multi_reduction <maximumf>, %444, %cst_249 [1] : vector<16x3xf32> to vector<16xf32>
    %446 = vector.shape_cast %445 : vector<16xf32> to vector<16x1xf32>
    %447 = vector.broadcast %446 : vector<16x1xf32> to vector<16x3xf32>
    %448 = arith.subf %444, %447 : vector<16x3xf32>
    %449 = math.exp %448 : vector<16x3xf32>
    %cst_250 = arith.constant dense<0.000000e+00> : vector<16xf32>
    %450 = vector.multi_reduction <add>, %449, %cst_250 [1] : vector<16x3xf32> to vector<16xf32>
    %451 = vector.shape_cast %450 : vector<16xf32> to vector<16x1xf32>
    %452 = tpu.reciprocal %451 {approx = true} : vector<16x1xf32> -> vector<16x1xf32>
    %453 = vector.broadcast %452 : vector<16x1xf32> to vector<16x3xf32>
    %454 = arith.mulf %449, %453 : vector<16x3xf32>
    %455 = vector.extract_strided_slice %454 {offsets = [0, 0], sizes = [16, 1], strides = [1, 1]} : vector<16x3xf32> to vector<16x1xf32>
    %456 = vector.broadcast %455 : vector<16x1xf32> to vector<16x16xf32>
    %457 = arith.mulf %456, %397 : vector<16x16xf32>
    %458 = vector.extract_strided_slice %454 {offsets = [0, 1], sizes = [16, 1], strides = [1, 1]} : vector<16x3xf32> to vector<16x1xf32>
    %459 = vector.broadcast %458 : vector<16x1xf32> to vector<16x16xf32>
    %460 = arith.mulf %459, %398 : vector<16x16xf32>
    %461 = arith.addf %457, %460 : vector<16x16xf32>
    %462 = vector.extract_strided_slice %454 {offsets = [0, 2], sizes = [16, 1], strides = [1, 1]} : vector<16x3xf32> to vector<16x1xf32>
    %463 = vector.broadcast %462 : vector<16x1xf32> to vector<16x16xf32>
    %464 = arith.mulf %463, %399 : vector<16x16xf32>
    %465 = arith.addf %461, %464 : vector<16x16xf32>
    %466 = arith.mulf %393, %394 : vector<16x16xf32>
    %cst_251 = arith.constant dense<0.000000e+00> : vector<16xf32>
    %467 = vector.multi_reduction <add>, %466, %cst_251 [1] : vector<16x16xf32> to vector<16xf32>
    %468 = vector.shape_cast %467 : vector<16xf32> to vector<16x1xf32>
    %469 = arith.mulf %393, %395 : vector<16x16xf32>
    %cst_252 = arith.constant dense<0.000000e+00> : vector<16xf32>
    %470 = vector.multi_reduction <add>, %469, %cst_252 [1] : vector<16x16xf32> to vector<16xf32>
    %471 = vector.shape_cast %470 : vector<16xf32> to vector<16x1xf32>
    %472 = arith.mulf %393, %396 : vector<16x16xf32>
    %cst_253 = arith.constant dense<0.000000e+00> : vector<16xf32>
    %473 = vector.multi_reduction <add>, %472, %cst_253 [1] : vector<16x16xf32> to vector<16xf32>
    %474 = vector.shape_cast %473 : vector<16xf32> to vector<16x1xf32>
    %475 = tpu.concatenate %468, %471, %474 in 1 : vector<16x1xf32>, vector<16x1xf32>, vector<16x1xf32> -> vector<16x3xf32>
    %cst_254 = arith.constant 2.500000e-01 : f32
    %476 = vector.broadcast %cst_254 : f32 to vector<16x3xf32>
    %477 = arith.mulf %475, %476 : vector<16x3xf32>
    %cst_255 = arith.constant dense<0xFF800000> : vector<16xf32>
    %478 = vector.multi_reduction <maximumf>, %477, %cst_255 [1] : vector<16x3xf32> to vector<16xf32>
    %479 = vector.shape_cast %478 : vector<16xf32> to vector<16x1xf32>
    %480 = vector.broadcast %479 : vector<16x1xf32> to vector<16x3xf32>
    %481 = arith.subf %477, %480 : vector<16x3xf32>
    %482 = math.exp %481 : vector<16x3xf32>
    %cst_256 = arith.constant dense<0.000000e+00> : vector<16xf32>
    %483 = vector.multi_reduction <add>, %482, %cst_256 [1] : vector<16x3xf32> to vector<16xf32>
    %484 = vector.shape_cast %483 : vector<16xf32> to vector<16x1xf32>
    %485 = tpu.reciprocal %484 {approx = true} : vector<16x1xf32> -> vector<16x1xf32>
    %486 = vector.broadcast %485 : vector<16x1xf32> to vector<16x3xf32>
    %487 = arith.mulf %482, %486 : vector<16x3xf32>
    %488 = vector.extract_strided_slice %487 {offsets = [0, 0], sizes = [16, 1], strides = [1, 1]} : vector<16x3xf32> to vector<16x1xf32>
    %489 = vector.broadcast %488 : vector<16x1xf32> to vector<16x16xf32>
    %490 = arith.mulf %489, %397 : vector<16x16xf32>
    %491 = vector.extract_strided_slice %487 {offsets = [0, 1], sizes = [16, 1], strides = [1, 1]} : vector<16x3xf32> to vector<16x1xf32>
    %492 = vector.broadcast %491 : vector<16x1xf32> to vector<16x16xf32>
    %493 = arith.mulf %492, %398 : vector<16x16xf32>
    %494 = arith.addf %490, %493 : vector<16x16xf32>
    %495 = vector.extract_strided_slice %487 {offsets = [0, 2], sizes = [16, 1], strides = [1, 1]} : vector<16x3xf32> to vector<16x1xf32>
    %496 = vector.broadcast %495 : vector<16x1xf32> to vector<16x16xf32>
    %497 = arith.mulf %496, %399 : vector<16x16xf32>
    %498 = arith.addf %494, %497 : vector<16x16xf32>
    %499 = tpu.concatenate %432, %465, %498 in 1 : vector<16x16xf32>, vector<16x16xf32>, vector<16x16xf32> -> vector<16x48xf32>
    %500 = arith.negf %351 : vector<16x48xf32>
    %501 = math.exp %500 : vector<16x48xf32>
    %cst_257 = arith.constant 1.000000e+00 : f32
    %502 = vector.broadcast %cst_257 : f32 to vector<16x48xf32>
    %503 = arith.addf %502, %501 : vector<16x48xf32>
    %504 = arith.divf %502, %503 : vector<16x48xf32>
    %505 = arith.negf %499 : vector<16x48xf32>
    %506 = math.exp %505 : vector<16x48xf32>
    %cst_258 = arith.constant 1.000000e+00 : f32
    %507 = vector.broadcast %cst_258 : f32 to vector<16x48xf32>
    %508 = arith.addf %507, %506 : vector<16x48xf32>
    %509 = arith.divf %507, %508 : vector<16x48xf32>
    %510 = arith.subf %504, %509 : vector<16x48xf32>
    %c0_259 = arith.constant 0 : index
    %c0_260 = arith.constant 0 : index
    %511 = vector.load %arg19[%c0_259, %c0_260] : memref<16x48xf32, #tpu.memory_space<vmem>>, vector<16x48xf32>
    %512 = arith.mulf %510, %511 : vector<16x48xf32>
    %c0_261 = arith.constant 0 : index
    %c0_262 = arith.constant 0 : index
    %513 = vector.load %arg20[%c0_261, %c0_262] : memref<48x32xf32, #tpu.memory_space<vmem>>, vector<48x32xf32>
    %cst_263 = arith.constant dense<0.000000e+00> : vector<16x32xf32>
    %514 = tpu.matmul %512, %513, %cst_263 {dimension_numbers = #tpu.dot_dimension_numbers<[1], [0], [0], [1], [0, 0, 1, 1], [], []>} : vector<16x48xf32>, vector<48x32xf32>, vector<16x32xf32> -> vector<16x32xf32>
    %c0_264 = arith.constant 0 : index
    %c0_265 = arith.constant 0 : index
    %515 = vector.load %arg21[%c0_264, %c0_265] : memref<1x32xf32, #tpu.memory_space<vmem>>, vector<1x32xf32>
    %516 = vector.broadcast %515 : vector<1x32xf32> to vector<16x32xf32>
    %517 = arith.addf %514, %516 : vector<16x32xf32>
    %518 = math.tanh %517 : vector<16x32xf32>
    %c0_266 = arith.constant 0 : index
    %c0_267 = arith.constant 0 : index
    %519 = vector.load %arg22[%c0_266, %c0_267] : memref<32x32xf32, #tpu.memory_space<vmem>>, vector<32x32xf32>
    %cst_268 = arith.constant dense<0.000000e+00> : vector<16x32xf32>
    %520 = tpu.matmul %518, %519, %cst_268 {dimension_numbers = #tpu.dot_dimension_numbers<[1], [0], [0], [1], [0, 0, 1, 1], [], []>} : vector<16x32xf32>, vector<32x32xf32>, vector<16x32xf32> -> vector<16x32xf32>
    %c0_269 = arith.constant 0 : index
    %c0_270 = arith.constant 0 : index
    %521 = vector.load %arg23[%c0_269, %c0_270] : memref<1x32xf32, #tpu.memory_space<vmem>>, vector<1x32xf32>
    %522 = vector.broadcast %521 : vector<1x32xf32> to vector<16x32xf32>
    %523 = arith.addf %520, %522 : vector<16x32xf32>
    %c0_271 = arith.constant 0 : index
    %c0_272 = arith.constant 0 : index
    %524 = vector.load %arg24[%c0_271, %c0_272] : memref<32x128xf32, #tpu.memory_space<vmem>>, vector<32x128xf32>
    %cst_273 = arith.constant dense<0.000000e+00> : vector<16x128xf32>
    %525 = tpu.matmul %523, %524, %cst_273 {dimension_numbers = #tpu.dot_dimension_numbers<[1], [0], [0], [1], [0, 0, 1, 1], [], []>} : vector<16x32xf32>, vector<32x128xf32>, vector<16x128xf32> -> vector<16x128xf32>
    %c0_274 = arith.constant 0 : index
    %c0_275 = arith.constant 0 : index
    %526 = vector.load %arg25[%c0_274, %c0_275] : memref<1x128xf32, #tpu.memory_space<vmem>>, vector<1x128xf32>
    %527 = vector.broadcast %526 : vector<1x128xf32> to vector<16x128xf32>
    %528 = arith.addf %525, %527 : vector<16x128xf32>
    %cst_276 = arith.constant dense<0xFF800000> : vector<16xf32>
    %529 = vector.multi_reduction <maximumf>, %528, %cst_276 [1] : vector<16x128xf32> to vector<16xf32>
    %530 = vector.shape_cast %529 : vector<16xf32> to vector<16x1xf32>
    %531 = vector.broadcast %530 : vector<16x1xf32> to vector<16x128xf32>
    %532 = arith.subf %528, %531 : vector<16x128xf32>
    %533 = math.exp %532 : vector<16x128xf32>
    %cst_277 = arith.constant dense<0.000000e+00> : vector<16xf32>
    %534 = vector.multi_reduction <add>, %533, %cst_277 [1] : vector<16x128xf32> to vector<16xf32>
    %535 = vector.shape_cast %534 : vector<16xf32> to vector<16x1xf32>
    %536 = vector.broadcast %535 : vector<16x1xf32> to vector<16x128xf32>
    %537 = arith.divf %533, %536 : vector<16x128xf32>
    %c0_278 = arith.constant 0 : index
    %c0_279 = arith.constant 0 : index
    %538 = vector.load %arg26[%c0_278, %c0_279] : memref<16x128xf32, #tpu.memory_space<vmem>>, vector<16x128xf32>
    tpu.vector_store %arg26[%c0_278, %c0_279], %537 {strides = array<i32>} : memref<16x128xf32, #tpu.memory_space<vmem>>, vector<16x128xf32>,
    return
  }
}

</mosaic_0001>

<llo_original>
// kernel: ngcf_disco_forward.1
$region0: #{ngcf_disco_forward.1}
  #allocation0 [shape = 'u32[]', space=smem, size = 0x4, offset = 0x4, fixed_abs, tag = 'smem constant byte address 0x4 - core index']
  #allocation1 [shape = 'u32[144,128]{1,0:T(1,128)}', space=vmem, size = 0x12000, scoped, tag = 'internal scratch']
  #allocation2 [shape = 'f32[64,32]{1,0:T(8,128)}', space=vmem, size = 0x8000, scoped, tag = 'scratch operand']
  #allocation3 [shape = 'f32[32,32]{1,0:T(8,128)}', space=vmem, size = 0x4000, scoped, tag = 'scratch operand']
  %s0 = inlined_call_operand.vmem [shape: s32[32], index: 0, kind: input, shape index: {}]
  %s1 = inlined_call_operand.vmem [shape: f32[64,64], index: 1, kind: input, shape index: {}]
  %s2 = inlined_call_operand.vmem [shape: f32[64,32], index: 2, kind: input, shape index: {}]
  %s3 = inlined_call_operand.vmem [shape: f32[2,32,32], index: 3, kind: input, shape index: {}]
  %s4 = inlined_call_operand.vmem [shape: f32[2,1,32], index: 4, kind: input, shape index: {}]
  %s5 = inlined_call_operand.vmem [shape: f32[2,32,32], index: 5, kind: input, shape index: {}]
  %s6 = inlined_call_operand.vmem [shape: f32[2,1,32], index: 6, kind: input, shape index: {}]
  %s7 = inlined_call_operand.vmem [shape: f32[2,32,96], index: 7, kind: input, shape index: {}]
  %s8 = inlined_call_operand.vmem [shape: f32[2,1,96], index: 8, kind: input, shape index: {}]
  %s9 = inlined_call_operand.vmem [shape: f32[2,96,768], index: 9, kind: input, shape index: {}]
  %s10 = inlined_call_operand.vmem [shape: f32[2,1,768], index: 10, kind: input, shape index: {}]
  %s11 = inlined_call_operand.vmem [shape: f32[2,768,48], index: 11, kind: input, shape index: {}]
  %s12 = inlined_call_operand.vmem [shape: f32[2,1,48], index: 12, kind: input, shape index: {}]
  %s13 = inlined_call_operand.vmem [shape: f32[48,48], index: 13, kind: input, shape index: {}]
  %s14 = inlined_call_operand.vmem [shape: f32[1,48], index: 14, kind: input, shape index: {}]
  %s15 = inlined_call_operand.vmem [shape: f32[48,48], index: 15, kind: input, shape index: {}]
  %s16 = inlined_call_operand.vmem [shape: f32[1,48], index: 16, kind: input, shape index: {}]
  %s17 = inlined_call_operand.vmem [shape: f32[48,48], index: 17, kind: input, shape index: {}]
  %s18 = inlined_call_operand.vmem [shape: f32[1,48], index: 18, kind: input, shape index: {}]
  %s19 = inlined_call_operand.vmem [shape: f32[16,48], index: 19, kind: input, shape index: {}]
  %s20 = inlined_call_operand.vmem [shape: f32[48,32], index: 20, kind: input, shape index: {}]
  %s21 = inlined_call_operand.vmem [shape: f32[1,32], index: 21, kind: input, shape index: {}]
  %s22 = inlined_call_operand.vmem [shape: f32[32,32], index: 22, kind: input, shape index: {}]
  %s23 = inlined_call_operand.vmem [shape: f32[1,32], index: 23, kind: input, shape index: {}]
  %s24 = inlined_call_operand.vmem [shape: f32[32,128], index: 24, kind: input, shape index: {}]
  %s25 = inlined_call_operand.vmem [shape: f32[1,128], index: 25, kind: input, shape index: {}]
  %s26 = inlined_call_operand.vmem [shape: f32[16,128], index: 26, kind: output, shape index: {}]
  %s27 = sld [smem:[#allocation0]]
  $region118: #{ngcf_disco_forward.1} parent=0
    _
  %s29 = ssub.s32 1, %s27
  %s30 = scalar_select 0, %s29, %s27
  $region1: #{ngcf_disco_forward.1} parent=0
    #allocation4 [shape = 'u8[512]{0}', space=smem, size = 0x200, scoped, tag = 'input window, operand 0, single buffered']
    #allocation5 [shape = 's32[1]{0}', space=sflag, size = 0x4, scoped, tag = 'scoped memory for ngcf_disco_forward.1']
    %31 = vsyncpa [#allocation5], 0
    // Predicated region
    $region2: #{ngcf_disco_forward.1} parent=1 // pred_check
      _
    $region3: #{ngcf_disco_forward.1} parent=1 // pred_check_branch
      %33 = sbr.rel (0) target = $region5
    $region4: #{ngcf_disco_forward.1} parent=1 // pred_region
      %s35 = ssub.s32 16, 16
      %36 = vsyncadd [#allocation5], %s35
      %s38 = sshll.u32 %s0, 4
      %s39 = int_to_ptr.vmem [resolvable:$true] %s38
      %41 = dma.vmem_to_smem %s39, 16, [#allocation4], [#allocation5]
    $region5: #{ngcf_disco_forward.1} parent=1 // pred_fallthru
      _
    // Predicated region
    $region6: #{ngcf_disco_forward.1} parent=1 // pred_check
      _
    $region7: #{ngcf_disco_forward.1} parent=1 // pred_check_branch
      %43 = sbr.rel (0) target = $region9
    $region8: #{ngcf_disco_forward.1} parent=1 // pred_region
      _
    $region9: #{ngcf_disco_forward.1} parent=1 // pred_fallthru
      _
    // Predicated region
    $region10: #{ngcf_disco_forward.1} parent=1 // pred_check
      _
    $region11: #{ngcf_disco_forward.1} parent=1 // pred_check_branch
      %45 = sbr.rel (0) target = $region13
    $region12: #{ngcf_disco_forward.1} parent=1 // pred_region
      _
    $region13: #{ngcf_disco_forward.1} parent=1 // pred_fallthru
      _
    // Predicated region
    $region14: #{ngcf_disco_forward.1} parent=1 // pred_check
      _
    $region15: #{ngcf_disco_forward.1} parent=1 // pred_check_branch
      %47 = sbr.rel (0) target = $region17
    $region16: #{ngcf_disco_forward.1} parent=1 // pred_region
      _
    $region17: #{ngcf_disco_forward.1} parent=1 // pred_fallthru
      _
    // Predicated region
    $region18: #{ngcf_disco_forward.1} parent=1 // pred_check
      _
    $region19: #{ngcf_disco_forward.1} parent=1 // pred_check_branch
      %49 = sbr.rel (0) target = $region21
    $region20: #{ngcf_disco_forward.1} parent=1 // pred_region
      _
    $region21: #{ngcf_disco_forward.1} parent=1 // pred_fallthru
      _
    // Predicated region
    $region22: #{ngcf_disco_forward.1} parent=1 // pred_check
      _
    $region23: #{ngcf_disco_forward.1} parent=1 // pred_check_branch
      %51 = sbr.rel (0) target = $region25
    $region24: #{ngcf_disco_forward.1} parent=1 // pred_region
      _
    $region25: #{ngcf_disco_forward.1} parent=1 // pred_fallthru
      _
    // Predicated region
    $region26: #{ngcf_disco_forward.1} parent=1 // pred_check
      _
    $region27: #{ngcf_disco_forward.1} parent=1 // pred_check_branch
      %53 = sbr.rel (0) target = $region29
    $region28: #{ngcf_disco_forward.1} parent=1 // pred_region
      _
    $region29: #{ngcf_disco_forward.1} parent=1 // pred_fallthru
      _
    // Predicated region
    $region30: #{ngcf_disco_forward.1} parent=1 // pred_check
      _
    $region31: #{ngcf_disco_forward.1} parent=1 // pred_check_branch
      %55 = sbr.rel (0) target = $region33
    $region32: #{ngcf_disco_forward.1} parent=1 // pred_region
      _
    $region33: #{ngcf_disco_forward.1} parent=1 // pred_fallthru
      _
    // Predicated region
    $region34: #{ngcf_disco_forward.1} parent=1 // pred_check
      _
    $region35: #{ngcf_disco_forward.1} parent=1 // pred_check_branch
      %57 = sbr.rel (0) target = $region37
    $region36: #{ngcf_disco_forward.1} parent=1 // pred_region
      _
    $region37: #{ngcf_disco_forward.1} parent=1 // pred_fallthru
      _
    // Predicated region
    $region38: #{ngcf_disco_forward.1} parent=1 // pred_check
      _
    $region39: #{ngcf_disco_forward.1} parent=1 // pred_check_branch
      %59 = sbr.rel (0) target = $region41
    $region40: #{ngcf_disco_forward.1} parent=1 // pred_region
      _
    $region41: #{ngcf_disco_forward.1} parent=1 // pred_fallthru
      _
    // Predicated region
    $region42: #{ngcf_disco_forward.1} parent=1 // pred_check
      _
    $region43: #{ngcf_disco_forward.1} parent=1 // pred_check_branch
      %61 = sbr.rel (0) target = $region45
    $region44: #{ngcf_disco_forward.1} parent=1 // pred_region
      _
    $region45: #{ngcf_disco_forward.1} parent=1 // pred_fallthru
      _
    // Predicated region
    $region46: #{ngcf_disco_forward.1} parent=1 // pred_check
      _
    $region47: #{ngcf_disco_forward.1} parent=1 // pred_check_branch
      %63 = sbr.rel (0) target = $region49
    $region48: #{ngcf_disco_forward.1} parent=1 // pred_region
      _
    $region49: #{ngcf_disco_forward.1} parent=1 // pred_fallthru
      _
    // Predicated region
    $region50: #{ngcf_disco_forward.1} parent=1 // pred_check
      _
    $region51: #{ngcf_disco_forward.1} parent=1 // pred_check_branch
      %65 = sbr.rel (0) target = $region53
    $region52: #{ngcf_disco_forward.1} parent=1 // pred_region
      _
    $region53: #{ngcf_disco_forward.1} parent=1 // pred_fallthru
      _
    // Predicated region
    $region54: #{ngcf_disco_forward.1} parent=1 // pred_check
      _
    $region55: #{ngcf_disco_forward.1} parent=1 // pred_check_branch
      %67 = sbr.rel (0) target = $region57
    $region56: #{ngcf_disco_forward.1} parent=1 // pred_region
      _
    $region57: #{ngcf_disco_forward.1} parent=1 // pred_fallthru
      _
    // Predicated region
    $region58: #{ngcf_disco_forward.1} parent=1 // pred_check
      _
    $region59: #{ngcf_disco_forward.1} parent=1 // pred_check_branch
      %69 = sbr.rel (0) target = $region61
    $region60: #{ngcf_disco_forward.1} parent=1 // pred_region
      _
    $region61: #{ngcf_disco_forward.1} parent=1 // pred_fallthru
      _
    // Predicated region
    $region62: #{ngcf_disco_forward.1} parent=1 // pred_check
      _
    $region63: #{ngcf_disco_forward.1} parent=1 // pred_check_branch
      %71 = sbr.rel (0) target = $region65
    $region64: #{ngcf_disco_forward.1} parent=1 // pred_region
      _
    $region65: #{ngcf_disco_forward.1} parent=1 // pred_fallthru
      _
    // Predicated region
    $region66: #{ngcf_disco_forward.1} parent=1 // pred_check
      _
    $region67: #{ngcf_disco_forward.1} parent=1 // pred_check_branch
      %73 = sbr.rel (0) target = $region69
    $region68: #{ngcf_disco_forward.1} parent=1 // pred_region
      _
    $region69: #{ngcf_disco_forward.1} parent=1 // pred_fallthru
      _
    // Predicated region
    $region70: #{ngcf_disco_forward.1} parent=1 // pred_check
      _
    $region71: #{ngcf_disco_forward.1} parent=1 // pred_check_branch
      %75 = sbr.rel (0) target = $region73
    $region72: #{ngcf_disco_forward.1} parent=1 // pred_region
      _
    $region73: #{ngcf_disco_forward.1} parent=1 // pred_fallthru
      _
    // Predicated region
    $region74: #{ngcf_disco_forward.1} parent=1 // pred_check
      _
    $region75: #{ngcf_disco_forward.1} parent=1 // pred_check_branch
      %77 = sbr.rel (0) target = $region77
    $region76: #{ngcf_disco_forward.1} parent=1 // pred_region
      _
    $region77: #{ngcf_disco_forward.1} parent=1 // pred_fallthru
      _
    // Predicated region
    $region78: #{ngcf_disco_forward.1} parent=1 // pred_check
      _
    $region79: #{ngcf_disco_forward.1} parent=1 // pred_check_branch
      %79 = sbr.rel (0) target = $region81
    $region80: #{ngcf_disco_forward.1} parent=1 // pred_region
      _
    $region81: #{ngcf_disco_forward.1} parent=1 // pred_fallthru
      _
    // Predicated region
    $region82: #{ngcf_disco_forward.1} parent=1 // pred_check
      _
    $region83: #{ngcf_disco_forward.1} parent=1 // pred_check_branch
      %81 = sbr.rel (0) target = $region85
    $region84: #{ngcf_disco_forward.1} parent=1 // pred_region
      _
    $region85: #{ngcf_disco_forward.1} parent=1 // pred_fallthru
      _
    // Predicated region
    $region86: #{ngcf_disco_forward.1} parent=1 // pred_check
      _
    $region87: #{ngcf_disco_forward.1} parent=1 // pred_check_branch
      %83 = sbr.rel (0) target = $region89
    $region88: #{ngcf_disco_forward.1} parent=1 // pred_region
      _
    $region89: #{ngcf_disco_forward.1} parent=1 // pred_fallthru
      _
    // Predicated region
    $region90: #{ngcf_disco_forward.1} parent=1 // pred_check
      _
    $region91: #{ngcf_disco_forward.1} parent=1 // pred_check_branch
      %85 = sbr.rel (0) target = $region93
    $region92: #{ngcf_disco_forward.1} parent=1 // pred_region
      _
    $region93: #{ngcf_disco_forward.1} parent=1 // pred_fallthru
      _
    // Predicated region
    $region94: #{ngcf_disco_forward.1} parent=1 // pred_check
      _
    $region95: #{ngcf_disco_forward.1} parent=1 // pred_check_branch
      %87 = sbr.rel (0) target = $region97
    $region96: #{ngcf_disco_forward.1} parent=1 // pred_region
      _
    $region97: #{ngcf_disco_forward.1} parent=1 // pred_fallthru
      _
    // Predicated region
    $region98: #{ngcf_disco_forward.1} parent=1 // pred_check
      _
    $region99: #{ngcf_disco_forward.1} parent=1 // pred_check_branch
      %89 = sbr.rel (0) target = $region101
    $region100: #{ngcf_disco_forward.1} parent=1 // pred_region
      _
    $region101: #{ngcf_disco_forward.1} parent=1 // pred_fallthru
      _
    // Predicated region
    $region102: #{ngcf_disco_forward.1} parent=1 // pred_check
      _
    $region103: #{ngcf_disco_forward.1} parent=1 // pred_check_branch
      %91 = sbr.rel (0) target = $region105
    $region104: #{ngcf_disco_forward.1} parent=1 // pred_region
      _
    $region105: #{ngcf_disco_forward.1} parent=1 // pred_fallthru
      _
    // Predicated region
    $region106: #{ngcf_disco_forward.1} parent=1 // pred_check
      _
    $region107: #{ngcf_disco_forward.1} parent=1 // pred_check_branch
      %93 = sbr.rel (0) target = $region109
    $region108: #{ngcf_disco_forward.1} parent=1 // pred_region
      %94 = dma.done [#allocation5], 16
    $region109: #{ngcf_disco_forward.1} parent=1 // pred_fallthru
      _
    %95 = sfence
    %v96 = vld [vmem:[%s2] sm:$0xff]
    %v97 = vld [vmem:[%s2 + $0x8] sm:$0xff]
    %v98 = vld [vmem:[%s2 + $0x10] sm:$0xff]
    %v99 = vld [vmem:[%s2 + $0x18] sm:$0xff]
    %v100 = vld [vmem:[%s2 + $0x20] sm:$0xff]
    %v101 = vld [vmem:[%s2 + $0x28] sm:$0xff]
    %v102 = vld [vmem:[%s2 + $0x30] sm:$0xff]
    %v103 = vld [vmem:[%s2 + $0x38] sm:$0xff]
    %v104 = vld [vmem:[%s1] sm:$0xff]
    %v105 = vld [vmem:[%s1 + $0x8] sm:$0xff]
    %v106 = vld [vmem:[%s1 + $0x10] sm:$0xff]
    %v107 = vld [vmem:[%s1 + $0x18] sm:$0xff]
    %v108 = vld [vmem:[%s1 + $0x20] sm:$0xff]
    %v109 = vld [vmem:[%s1 + $0x28] sm:$0xff]
    %v110 = vld [vmem:[%s1 + $0x30] sm:$0xff]
    %v111 = vld [vmem:[%s1 + $0x38] sm:$0xff]
    %vm112 = vcmask 523264
    %v114 = vsel %vm112, %v104, 0
    %v117 = vsel %vm112, %v105, 0
    %v120 = vsel %vm112, %v106, 0
    %v123 = vsel %vm112, %v107, 0
    %v126 = vsel %vm112, %v108, 0
    %v129 = vsel %vm112, %v109, 0
    %v132 = vsel %vm112, %v110, 0
    %v135 = vsel %vm112, %v111, 0
    %137 = vmatprep.subr.mxu0 0.0
    %138 = vmatpush1.msra.mxu0 0.0
    %139 = vmatprep.subr.mxu0 0.0
    %140 = vmatpush1.msra.mxu0 0.0
    %141 = vmatprep.subr.mxu0 0.0
    %142 = vmatpush1.msra.mxu0 0.0
    %143 = vmatprep.subr.mxu0 0.0
    %144 = vmatpush1.msra.mxu0 0.0
    %145 = vmatprep.subr.mxu0 0.0
    %146 = vmatpush1.msra.mxu0 0.0
    %147 = vmatprep.subr.mxu0 0.0
    %148 = vmatpush1.msra.mxu0 0.0
    %149 = vmatprep.subr.mxu0 0.0
    %150 = vmatpush1.msra.mxu0 0.0
    %151 = vmatprep.subr.mxu0 0.0
    %152 = vmatpush1.msra.mxu0 0.0
    %153 = vmatprep.subr.mxu0 0.0
    %154 = vmatpush1.msra.mxu0 %v103
    %155 = vmatprep.subr.mxu0 0.0
    %156 = vmatpush1.msra.mxu0 %v102
    %157 = vmatprep.subr.mxu0 0.0
    %158 = vmatpush1.msra.mxu0 %v101
    %159 = vmatprep.subr.mxu0 0.0
    %160 = vmatpush1.msra.mxu0 %v100
    %161 = vmatprep.subr.mxu0 0.0
    %162 = vmatpush1.msra.mxu0 %v99
    %163 = vmatprep.subr.mxu0 0.0
    %164 = vmatpush1.msra.mxu0 %v98
    %165 = vmatprep.subr.mxu0 0.0
    %166 = vmatpush1.msra.mxu0 %v97
    %167 = vmatprep.subr.mxu0 0.0
    %168 = vmatpush1.msra.mxu0 %v96
    %169 = vmatprep.subr.mxu0 0.0
    %170 = vmatpush2.msra.mxu0 0.0
    %171 = vmatprep.subr.mxu0 0.0
    %172 = vmatpush2.msra.mxu0 0.0
    %173 = vmatprep.subr.mxu0 0.0
    %174 = vmatpush2.msra.mxu0 0.0
    %175 = vmatprep.subr.mxu0 0.0
    %176 = vmatpush2.msra.mxu0 0.0
    %177 = vmatprep.subr.mxu0 0.0
    %178 = vmatpush2.msra.mxu0 0.0
    %179 = vmatprep.subr.mxu0 0.0
    %180 = vmatpush2.msra.mxu0 0.0
    %181 = vmatprep.subr.mxu0 0.0
    %182 = vmatpush2.msra.mxu0 0.0
    %183 = vmatprep.subr.mxu0 0.0
    %184 = vmatpush2.msra.mxu0 0.0
    %185 = vmatprep.subr.mxu0 0.0
    %186 = vmatpush2.msra.mxu0 0.0
    %187 = vmatprep.subr.mxu0 0.0
    %188 = vmatpush2.msra.mxu0 0.0
    %189 = vmatprep.subr.mxu0 0.0
    %190 = vmatpush2.msra.mxu0 0.0
    %191 = vmatprep.subr.mxu0 0.0
    %192 = vmatpush2.msra.mxu0 0.0
    %193 = vmatprep.subr.mxu0 0.0
    %194 = vmatpush2.msra.mxu0 0.0
    %195 = vmatprep.subr.mxu0 0.0
    %196 = vmatpush2.msra.mxu0 0.0
    %197 = vmatprep.subr.mxu0 0.0
    %198 = vmatpush2.msra.mxu0 0.0
    %199 = vmatprep.subr.mxu0 0.0
    %200 = vmatpush2.msra.mxu0 0.0
    %201 = vmatprep.mubr.f32.mxu0 0.0
    %202 = vmatmul.mubr.f32.gmra.mxu0 %v114
    %v203 = vpop.f32.mrf.mxu0
    %v204 = vadd.f32 0.0, %v203
    %v205 = vpop.f32.mrf.mxu0
    %206 = vmatprep.mubr.f32.mxu0 0.0
    %207 = vmatmul.mubr.f32.gmra.mxu0 %v117
    %v208 = vpop.f32.mrf.mxu0
    %v209 = vadd.f32 0.0, %v208
    %v210 = vpop.f32.mrf.mxu0
    %211 = vmatprep.mubr.f32.mxu0 0.0
    %212 = vmatmul.mubr.f32.gmra.mxu0 %v120
    %v213 = vpop.f32.mrf.mxu0
    %v214 = vadd.f32 0.0, %v213
    %v215 = vpop.f32.mrf.mxu0
    %216 = vmatprep.mubr.f32.mxu0 0.0
    %217 = vmatmul.mubr.f32.gmra.mxu0 %v123
    %v218 = vpop.f32.mrf.mxu0
    %v219 = vadd.f32 0.0, %v218
    %v220 = vpop.f32.mrf.mxu0
    %221 = vmatprep.mubr.f32.mxu0 0.0
    %222 = vmatmul.mubr.f32.gmra.mxu0 %v126
    %v223 = vpop.f32.mrf.mxu0
    %v224 = vadd.f32 0.0, %v223
    %v225 = vpop.f32.mrf.mxu0
    %226 = vmatprep.mubr.f32.mxu0 0.0
    %227 = vmatmul.mubr.f32.gmra.mxu0 %v129
    %v228 = vpop.f32.mrf.mxu0
    %v229 = vadd.f32 0.0, %v228
    %v230 = vpop.f32.mrf.mxu0
    %231 = vmatprep.mubr.f32.mxu0 0.0
    %232 = vmatmul.mubr.f32.gmra.mxu0 %v132
    %v233 = vpop.f32.mrf.mxu0
    %v234 = vadd.f32 0.0, %v233
    %v235 = vpop.f32.mrf.mxu0
    %236 = vmatprep.mubr.f32.mxu0 0.0
    %237 = vmatmul.mubr.f32.gmra.mxu0 %v135
    %v238 = vpop.f32.mrf.mxu0
    %v239 = vadd.f32 0.0, %v238
    %v240 = vpop.f32.mrf.mxu0
    %241 = vdwg.mxu0
    %v242 = vld [vmem:[%s3] sm:$0xff]
    %v243 = vld [vmem:[%s3 + $0x8] sm:$0xff]
    %v244 = vld [vmem:[%s3 + $0x10] sm:$0xff]
    %v245 = vld [vmem:[%s3 + $0x18] sm:$0xff]
    %v246 = vld [vmem:[%s4] sm:$0x1]
    %v248 = vlaneseq
    %v249 = vshrl.u32 %v248, 7
    %v250 = vsub.s32 0, %v249
    %v251 = vrot.slane %v246, %v250
    %vm253 = vcmask 261120
    %v255 = vsel %vm253, %v204, 0
    %v258 = vsel %vm253, %v209, 0
    %v261 = vsel %vm253, %v214, 0
    %v264 = vsel %vm253, %v219, 0
    %v267 = vsel %vm253, %v224, 0
    %v270 = vsel %vm253, %v229, 0
    %v273 = vsel %vm253, %v234, 0
    %v276 = vsel %vm253, %v239, 0
    %278 = vmatprep.subr.mxu0 0.0
    %279 = vmatpush1.msra.mxu0 0.0
    %280 = vmatprep.subr.mxu0 0.0
    %281 = vmatpush1.msra.mxu0 0.0
    %282 = vmatprep.subr.mxu0 0.0
    %283 = vmatpush1.msra.mxu0 0.0
    %284 = vmatprep.subr.mxu0 0.0
    %285 = vmatpush1.msra.mxu0 0.0
    %286 = vmatprep.subr.mxu0 0.0
    %287 = vmatpush1.msra.mxu0 0.0
    %288 = vmatprep.subr.mxu0 0.0
    %289 = vmatpush1.msra.mxu0 0.0
    %290 = vmatprep.subr.mxu0 0.0
    %291 = vmatpush1.msra.mxu0 0.0
    %292 = vmatprep.subr.mxu0 0.0
    %293 = vmatpush1.msra.mxu0 0.0
    %294 = vmatprep.subr.mxu0 0.0
    %295 = vmatpush1.msra.mxu0 0.0
    %296 = vmatprep.subr.mxu0 0.0
    %297 = vmatpush1.msra.mxu0 0.0
    %298 = vmatprep.subr.mxu0 0.0
    %299 = vmatpush1.msra.mxu0 0.0
    %300 = vmatprep.subr.mxu0 0.0
    %301 = vmatpush1.msra.mxu0 0.0
    %302 = vmatprep.subr.mxu0 0.0
    %303 = vmatpush1.msra.mxu0 %v245
    %304 = vmatprep.subr.mxu0 0.0
    %305 = vmatpush1.msra.mxu0 %v244
    %306 = vmatprep.subr.mxu0 0.0
    %307 = vmatpush1.msra.mxu0 %v243
    %308 = vmatprep.subr.mxu0 0.0
    %309 = vmatpush1.msra.mxu0 %v242
    %310 = vmatprep.subr.mxu0 0.0
    %311 = vmatpush2.msra.mxu0 0.0
    %312 = vmatprep.subr.mxu0 0.0
    %313 = vmatpush2.msra.mxu0 0.0
    %314 = vmatprep.subr.mxu0 0.0
    %315 = vmatpush2.msra.mxu0 0.0
    %316 = vmatprep.subr.mxu0 0.0
    %317 = vmatpush2.msra.mxu0 0.0
    %318 = vmatprep.subr.mxu0 0.0
    %319 = vmatpush2.msra.mxu0 0.0
    %320 = vmatprep.subr.mxu0 0.0
    %321 = vmatpush2.msra.mxu0 0.0
    %322 = vmatprep.subr.mxu0 0.0
    %323 = vmatpush2.msra.mxu0 0.0
    %324 = vmatprep.subr.mxu0 0.0
    %325 = vmatpush2.msra.mxu0 0.0
    %326 = vmatprep.subr.mxu0 0.0
    %327 = vmatpush2.msra.mxu0 0.0
    %328 = vmatprep.subr.mxu0 0.0
    %329 = vmatpush2.msra.mxu0 0.0
    %330 = vmatprep.subr.mxu0 0.0
    %331 = vmatpush2.msra.mxu0 0.0
    %332 = vmatprep.subr.mxu0 0.0
    %333 = vmatpush2.msra.mxu0 0.0
    %334 = vmatprep.subr.mxu0 0.0
    %335 = vmatpush2.msra.mxu0 0.0
    %336 = vmatprep.subr.mxu0 0.0
    %337 = vmatpush2.msra.mxu0 0.0
    %338 = vmatprep.subr.mxu0 0.0
    %339 = vmatpush2.msra.mxu0 0.0
    %340 = vmatprep.subr.mxu0 0.0
    %341 = vmatpush2.msra.mxu0 0.0
    %342 = vmatprep.mubr.f32.mxu0 0.0
    %343 = vmatmul.mubr.f32.gmra.mxu0 %v255
    %v344 = vpop.f32.mrf.mxu0
    %v345 = vadd.f32 %v251, %v344
    %v346 = vpop.f32.mrf.mxu0
    %347 = vmatprep.mubr.f32.mxu0 0.0
    %348 = vmatmul.mubr.f32.gmra.mxu0 %v258
    %v349 = vpop.f32.mrf.mxu0
    %v350 = vadd.f32 %v251, %v349
    %v351 = vpop.f32.mrf.mxu0
    %352 = vmatprep.mubr.f32.mxu0 0.0
    %353 = vmatmul.mubr.f32.gmra.mxu0 %v261
    %v354 = vpop.f32.mrf.mxu0
    %v355 = vadd.f32 %v251, %v354
    %v356 = vpop.f32.mrf.mxu0
    %357 = vmatprep.mubr.f32.mxu0 0.0
    %358 = vmatmul.mubr.f32.gmra.mxu0 %v264
    %v359 = vpop.f32.mrf.mxu0
    %v360 = vadd.f32 %v251, %v359
    %v361 = vpop.f32.mrf.mxu0
    %362 = vmatprep.mubr.f32.mxu0 0.0
    %363 = vmatmul.mubr.f32.gmra.mxu0 %v267
    %v364 = vpop.f32.mrf.mxu0
    %v365 = vadd.f32 %v251, %v364
    %v366 = vpop.f32.mrf.mxu0
    %367 = vmatprep.mubr.f32.mxu0 0.0
    %368 = vmatmul.mubr.f32.gmra.mxu0 %v270
    %v369 = vpop.f32.mrf.mxu0
    %v370 = vadd.f32 %v251, %v369
    %v371 = vpop.f32.mrf.mxu0
    %372 = vmatprep.mubr.f32.mxu0 0.0
    %373 = vmatmul.mubr.f32.gmra.mxu0 %v273
    %v374 = vpop.f32.mrf.mxu0
    %v375 = vadd.f32 %v251, %v374
    %v376 = vpop.f32.mrf.mxu0
    %377 = vmatprep.mubr.f32.mxu0 0.0
    %378 = vmatmul.mubr.f32.gmra.mxu0 %v276
    %v379 = vpop.f32.mrf.mxu0
    %v380 = vadd.f32 %v251, %v379
    %v381 = vpop.f32.mrf.mxu0
    %382 = vdwg.mxu0
    %vm383 = vcmp.ge.f32.partialorder %v345, 0.0
    %vm384 = vcmp.ge.f32.partialorder %v350, 0.0
    %vm385 = vcmp.ge.f32.partialorder %v355, 0.0
    %vm386 = vcmp.ge.f32.partialorder %v360, 0.0
    %vm387 = vcmp.ge.f32.partialorder %v365, 0.0
    %vm388 = vcmp.ge.f32.partialorder %v370, 0.0
    %vm389 = vcmp.ge.f32.partialorder %v375, 0.0
    %vm390 = vcmp.ge.f32.partialorder %v380, 0.0
    %v391 = vmul.f32 %v345, 0.01
    %v392 = vmul.f32 %v350, 0.01
    %v393 = vmul.f32 %v355, 0.01
    %v394 = vmul.f32 %v360, 0.01
    %v395 = vmul.f32 %v365, 0.01
    %v396 = vmul.f32 %v370, 0.01
    %v397 = vmul.f32 %v375, 0.01
    %v398 = vmul.f32 %v380, 0.01
    %v399 = vsel %vm383, %v345, %v391
    %v400 = vsel %vm384, %v350, %v392
    %v401 = vsel %vm385, %v355, %v393
    %v402 = vsel %vm386, %v360, %v394
    %v403 = vsel %vm387, %v365, %v395
    %v404 = vsel %vm388, %v370, %v396
    %v405 = vsel %vm389, %v375, %v397
    %v406 = vsel %vm390, %v380, %v398
    %v407 = vmul.f32 %v96, %v204
    %v408 = vmul.f32 %v97, %v209
    %v409 = vmul.f32 %v98, %v214
    %v410 = vmul.f32 %v99, %v219
    %v411 = vmul.f32 %v100, %v224
    %v412 = vmul.f32 %v101, %v229
    %v413 = vmul.f32 %v102, %v234
    %v414 = vmul.f32 %v103, %v239
    %v415 = vld [vmem:[%s5] sm:$0xff]
    %v416 = vld [vmem:[%s5 + $0x8] sm:$0xff]
    %v417 = vld [vmem:[%s5 + $0x10] sm:$0xff]
    %v418 = vld [vmem:[%s5 + $0x18] sm:$0xff]
    %v419 = vld [vmem:[%s6] sm:$0x1]
    %v421 = vlaneseq
    %v422 = vshrl.u32 %v421, 7
    %v423 = vsub.s32 0, %v422
    %v424 = vrot.slane %v419, %v423
    %v427 = vsel %vm253, %v407, 0
    %v430 = vsel %vm253, %v408, 0
    %v433 = vsel %vm253, %v409, 0
    %v436 = vsel %vm253, %v410, 0
    %v439 = vsel %vm253, %v411, 0
    %v442 = vsel %vm253, %v412, 0
    %v445 = vsel %vm253, %v413, 0
    %v448 = vsel %vm253, %v414, 0
    %450 = vmatprep.subr.mxu0 0.0
    %451 = vmatpush1.msra.mxu0 0.0
    %452 = vmatprep.subr.mxu0 0.0
    %453 = vmatpush1.msra.mxu0 0.0
    %454 = vmatprep.subr.mxu0 0.0
    %455 = vmatpush1.msra.mxu0 0.0
    %456 = vmatprep.subr.mxu0 0.0
    %457 = vmatpush1.msra.mxu0 0.0
    %458 = vmatprep.subr.mxu0 0.0
    %459 = vmatpush1.msra.mxu0 0.0
    %460 = vmatprep.subr.mxu0 0.0
    %461 = vmatpush1.msra.mxu0 0.0
    %462 = vmatprep.subr.mxu0 0.0
    %463 = vmatpush1.msra.mxu0 0.0
    %464 = vmatprep.subr.mxu0 0.0
    %465 = vmatpush1.msra.mxu0 0.0
    %466 = vmatprep.subr.mxu0 0.0
    %467 = vmatpush1.msra.mxu0 0.0
    %468 = vmatprep.subr.mxu0 0.0
    %469 = vmatpush1.msra.mxu0 0.0
    %470 = vmatprep.subr.mxu0 0.0
    %471 = vmatpush1.msra.mxu0 0.0
    %472 = vmatprep.subr.mxu0 0.0
    %473 = vmatpush1.msra.mxu0 0.0
    %474 = vmatprep.subr.mxu0 0.0
    %475 = vmatpush1.msra.mxu0 %v418
    %476 = vmatprep.subr.mxu0 0.0
    %477 = vmatpush1.msra.mxu0 %v417
    %478 = vmatprep.subr.mxu0 0.0
    %479 = vmatpush1.msra.mxu0 %v416
    %480 = vmatprep.subr.mxu0 0.0
    %481 = vmatpush1.msra.mxu0 %v415
    %482 = vmatprep.subr.mxu0 0.0
    %483 = vmatpush2.msra.mxu0 0.0
    %484 = vmatprep.subr.mxu0 0.0
    %485 = vmatpush2.msra.mxu0 0.0
    %486 = vmatprep.subr.mxu0 0.0
    %487 = vmatpush2.msra.mxu0 0.0
    %488 = vmatprep.subr.mxu0 0.0
    %489 = vmatpush2.msra.mxu0 0.0
    %490 = vmatprep.subr.mxu0 0.0
    %491 = vmatpush2.msra.mxu0 0.0
    %492 = vmatprep.subr.mxu0 0.0
    %493 = vmatpush2.msra.mxu0 0.0
    %494 = vmatprep.subr.mxu0 0.0
    %495 = vmatpush2.msra.mxu0 0.0
    %496 = vmatprep.subr.mxu0 0.0
    %497 = vmatpush2.msra.mxu0 0.0
    %498 = vmatprep.subr.mxu0 0.0
    %499 = vmatpush2.msra.mxu0 0.0
    %500 = vmatprep.subr.mxu0 0.0
    %501 = vmatpush2.msra.mxu0 0.0
    %502 = vmatprep.subr.mxu0 0.0
    %503 = vmatpush2.msra.mxu0 0.0
    %504 = vmatprep.subr.mxu0 0.0
    %505 = vmatpush2.msra.mxu0 0.0
    %506 = vmatprep.subr.mxu0 0.0
    %507 = vmatpush2.msra.mxu0 0.0
    %508 = vmatprep.subr.mxu0 0.0
    %509 = vmatpush2.msra.mxu0 0.0
    %510 = vmatprep.subr.mxu0 0.0
    %511 = vmatpush2.msra.mxu0 0.0
    %512 = vmatprep.subr.mxu0 0.0
    %513 = vmatpush2.msra.mxu0 0.0
    %514 = vmatprep.mubr.f32.mxu0 0.0
    %515 = vmatmul.mubr.f32.gmra.mxu0 %v427
    %v516 = vpop.f32.mrf.mxu0
    %v517 = vadd.f32 %v424, %v516
    %v518 = vpop.f32.mrf.mxu0
    %519 = vmatprep.mubr.f32.mxu0 0.0
    %520 = vmatmul.mubr.f32.gmra.mxu0 %v430
    %v521 = vpop.f32.mrf.mxu0
    %v522 = vadd.f32 %v424, %v521
    %v523 = vpop.f32.mrf.mxu0
    %524 = vmatprep.mubr.f32.mxu0 0.0
    %525 = vmatmul.mubr.f32.gmra.mxu0 %v433
    %v526 = vpop.f32.mrf.mxu0
    %v527 = vadd.f32 %v424, %v526
    %v528 = vpop.f32.mrf.mxu0
    %529 = vmatprep.mubr.f32.mxu0 0.0
    %530 = vmatmul.mubr.f32.gmra.mxu0 %v436
    %v531 = vpop.f32.mrf.mxu0
    %v532 = vadd.f32 %v424, %v531
    %v533 = vpop.f32.mrf.mxu0
    %534 = vmatprep.mubr.f32.mxu0 0.0
    %535 = vmatmul.mubr.f32.gmra.mxu0 %v439
    %v536 = vpop.f32.mrf.mxu0
    %v537 = vadd.f32 %v424, %v536
    %v538 = vpop.f32.mrf.mxu0
    %539 = vmatprep.mubr.f32.mxu0 0.0
    %540 = vmatmul.mubr.f32.gmra.mxu0 %v442
    %v541 = vpop.f32.mrf.mxu0
    %v542 = vadd.f32 %v424, %v541
    %v543 = vpop.f32.mrf.mxu0
    %544 = vmatprep.mubr.f32.mxu0 0.0
    %545 = vmatmul.mubr.f32.gmra.mxu0 %v445
    %v546 = vpop.f32.mrf.mxu0
    %v547 = vadd.f32 %v424, %v546
    %v548 = vpop.f32.mrf.mxu0
    %549 = vmatprep.mubr.f32.mxu0 0.0
    %550 = vmatmul.mubr.f32.gmra.mxu0 %v448
    %v551 = vpop.f32.mrf.mxu0
    %v552 = vadd.f32 %v424, %v551
    %v553 = vpop.f32.mrf.mxu0
    %554 = vdwg.mxu0
    %vm555 = vcmp.ge.f32.partialorder %v517, 0.0
    %vm556 = vcmp.ge.f32.partialorder %v522, 0.0
    %vm557 = vcmp.ge.f32.partialorder %v527, 0.0
    %vm558 = vcmp.ge.f32.partialorder %v532, 0.0
    %vm559 = vcmp.ge.f32.partialorder %v537, 0.0
    %vm560 = vcmp.ge.f32.partialorder %v542, 0.0
    %vm561 = vcmp.ge.f32.partialorder %v547, 0.0
    %vm562 = vcmp.ge.f32.partialorder %v552, 0.0
    %v563 = vmul.f32 %v517, 0.01
    %v564 = vmul.f32 %v522, 0.01
    %v565 = vmul.f32 %v527, 0.01
    %v566 = vmul.f32 %v532, 0.01
    %v567 = vmul.f32 %v537, 0.01
    %v568 = vmul.f32 %v542, 0.01
    %v569 = vmul.f32 %v547, 0.01
    %v570 = vmul.f32 %v552, 0.01
    %v571 = vsel %vm555, %v517, %v563
    %v572 = vsel %vm556, %v522, %v564
    %v573 = vsel %vm557, %v527, %v565
    %v574 = vsel %vm558, %v532, %v566
    %v575 = vsel %vm559, %v537, %v567
    %v576 = vsel %vm560, %v542, %v568
    %v577 = vsel %vm561, %v547, %v569
    %v578 = vsel %vm562, %v552, %v570
    %v579 = vadd.f32 %v399, %v571
    %v580 = vadd.f32 %v400, %v572
    %v581 = vadd.f32 %v401, %v573
    %v582 = vadd.f32 %v402, %v574
    %v583 = vadd.f32 %v403, %v575
    %v584 = vadd.f32 %v404, %v576
    %v585 = vadd.f32 %v405, %v577
    %v586 = vadd.f32 %v406, %v578
    %v587 = vmul.f32 %v579, %v579
    %v588 = vmul.f32 %v580, %v580
    %v589 = vmul.f32 %v581, %v581
    %v590 = vmul.f32 %v582, %v582
    %v591 = vmul.f32 %v583, %v583
    %v592 = vmul.f32 %v584, %v584
    %v593 = vmul.f32 %v585, %v585
    %v594 = vmul.f32 %v586, %v586
    %v595 = vsel %vm253, %v587, 0.0
    %596 = vadd.xlane.f32.xlu0 %v595
    %v597 = vpop.xlane.xlu0 %596
    %v598 = vsel %vm253, %v588, 0.0
    %599 = vadd.xlane.f32.xlu0 %v598
    %v600 = vpop.xlane.xlu0 %599
    %v601 = vsel %vm253, %v589, 0.0
    %602 = vadd.xlane.f32.xlu0 %v601
    %v603 = vpop.xlane.xlu0 %602
    %v604 = vsel %vm253, %v590, 0.0
    %605 = vadd.xlane.f32.xlu0 %v604
    %v606 = vpop.xlane.xlu0 %605
    %v607 = vsel %vm253, %v591, 0.0
    %608 = vadd.xlane.f32.xlu0 %v607
    %v609 = vpop.xlane.xlu0 %608
    %v610 = vsel %vm253, %v592, 0.0
    %611 = vadd.xlane.f32.xlu0 %v610
    %v612 = vpop.xlane.xlu0 %611
    %v613 = vsel %vm253, %v593, 0.0
    %614 = vadd.xlane.f32.xlu0 %v613
    %v615 = vpop.xlane.xlu0 %614
    %v616 = vsel %vm253, %v594, 0.0
    %617 = vadd.xlane.f32.xlu0 %v616
    %v618 = vpop.xlane.xlu0 %617
    %v619 = vmax.f32 %v597, 1e-24
    %v620 = vmax.f32 %v600, 1e-24
    %v621 = vmax.f32 %v603, 1e-24
    %v622 = vmax.f32 %v606, 1e-24
    %v623 = vmax.f32 %v609, 1e-24
    %v624 = vmax.f32 %v612, 1e-24
    %v625 = vmax.f32 %v615, 1e-24
    %v626 = vmax.f32 %v618, 1e-24
    %v627 = vrsqrt.pop %v619
    %v628 = vrsqrt.pop %v620
    %v629 = vrsqrt.pop %v621
    %v630 = vrsqrt.pop %v622
    %v631 = vrsqrt.pop %v623
    %v632 = vrsqrt.pop %v624
    %v633 = vrsqrt.pop %v625
    %v634 = vrsqrt.pop %v626
    %v635 = vmul.f32 %v579, %v627
    %v636 = vmul.f32 %v580, %v628
    %v637 = vmul.f32 %v581, %v629
    %v638 = vmul.f32 %v582, %v630
    %v639 = vmul.f32 %v583, %v631
    %v640 = vmul.f32 %v584, %v632
    %v641 = vmul.f32 %v585, %v633
    %v642 = vmul.f32 %v586, %v634
    %v643 = vadd.f32 %v96, %v635
    %v644 = vadd.f32 %v97, %v636
    %v645 = vadd.f32 %v98, %v637
    %v646 = vadd.f32 %v99, %v638
    %v647 = vadd.f32 %v100, %v639
    %v648 = vadd.f32 %v101, %v640
    %v649 = vadd.f32 %v102, %v641
    %v650 = vadd.f32 %v103, %v642
    %651 = vmatprep.subr.mxu0 0.0
    %652 = vmatpush1.msra.mxu0 0.0
    %653 = vmatprep.subr.mxu0 0.0
    %654 = vmatpush1.msra.mxu0 0.0
    %655 = vmatprep.subr.mxu0 0.0
    %656 = vmatpush1.msra.mxu0 0.0
    %657 = vmatprep.subr.mxu0 0.0
    %658 = vmatpush1.msra.mxu0 0.0
    %659 = vmatprep.subr.mxu0 0.0
    %660 = vmatpush1.msra.mxu0 0.0
    %661 = vmatprep.subr.mxu0 0.0
    %662 = vmatpush1.msra.mxu0 0.0
    %663 = vmatprep.subr.mxu0 0.0
    %664 = vmatpush1.msra.mxu0 0.0
    %665 = vmatprep.subr.mxu0 0.0
    %666 = vmatpush1.msra.mxu0 0.0
    %667 = vmatprep.subr.mxu0 0.0
    %668 = vmatpush1.msra.mxu0 %v642
    %669 = vmatprep.subr.mxu0 0.0
    %670 = vmatpush1.msra.mxu0 %v641
    %671 = vmatprep.subr.mxu0 0.0
    %672 = vmatpush1.msra.mxu0 %v640
    %673 = vmatprep.subr.mxu0 0.0
    %674 = vmatpush1.msra.mxu0 %v639
    %675 = vmatprep.subr.mxu0 0.0
    %676 = vmatpush1.msra.mxu0 %v638
    %677 = vmatprep.subr.mxu0 0.0
    %678 = vmatpush1.msra.mxu0 %v637
    %679 = vmatprep.subr.mxu0 0.0
    %680 = vmatpush1.msra.mxu0 %v636
    %681 = vmatprep.subr.mxu0 0.0
    %682 = vmatpush1.msra.mxu0 %v635
    %683 = vmatprep.subr.mxu0 0.0
    %684 = vmatpush2.msra.mxu0 0.0
    %685 = vmatprep.subr.mxu0 0.0
    %686 = vmatpush2.msra.mxu0 0.0
    %687 = vmatprep.subr.mxu0 0.0
    %688 = vmatpush2.msra.mxu0 0.0
    %689 = vmatprep.subr.mxu0 0.0
    %690 = vmatpush2.msra.mxu0 0.0
    %691 = vmatprep.subr.mxu0 0.0
    %692 = vmatpush2.msra.mxu0 0.0
    %693 = vmatprep.subr.mxu0 0.0
    %694 = vmatpush2.msra.mxu0 0.0
    %695 = vmatprep.subr.mxu0 0.0
    %696 = vmatpush2.msra.mxu0 0.0
    %697 = vmatprep.subr.mxu0 0.0
    %698 = vmatpush2.msra.mxu0 0.0
    %699 = vmatprep.subr.mxu0 0.0
    %700 = vmatpush2.msra.mxu0 0.0
    %701 = vmatprep.subr.mxu0 0.0
    %702 = vmatpush2.msra.mxu0 0.0
    %703 = vmatprep.subr.mxu0 0.0
    %704 = vmatpush2.msra.mxu0 0.0
    %705 = vmatprep.subr.mxu0 0.0
    %706 = vmatpush2.msra.mxu0 0.0
    %707 = vmatprep.subr.mxu0 0.0
    %708 = vmatpush2.msra.mxu0 0.0
    %709 = vmatprep.subr.mxu0 0.0
    %710 = vmatpush2.msra.mxu0 0.0
    %711 = vmatprep.subr.mxu0 0.0
    %712 = vmatpush2.msra.mxu0 0.0
    %713 = vmatprep.subr.mxu0 0.0
    %714 = vmatpush2.msra.mxu0 0.0
    %715 = vmatprep.mubr.f32.mxu0 0.0
    %716 = vmatmul.mubr.f32.gmra.mxu0 %v114
    %v717 = vpop.f32.mrf.mxu0
    %v718 = vadd.f32 0.0, %v717
    %v719 = vpop.f32.mrf.mxu0
    %720 = vmatprep.mubr.f32.mxu0 0.0
    %721 = vmatmul.mubr.f32.gmra.mxu0 %v117
    %v722 = vpop.f32.mrf.mxu0
    %v723 = vadd.f32 0.0, %v722
    %v724 = vpop.f32.mrf.mxu0
    %725 = vmatprep.mubr.f32.mxu0 0.0
    %726 = vmatmul.mubr.f32.gmra.mxu0 %v120
    %v727 = vpop.f32.mrf.mxu0
    %v728 = vadd.f32 0.0, %v727
    %v729 = vpop.f32.mrf.mxu0
    %730 = vmatprep.mubr.f32.mxu0 0.0
    %731 = vmatmul.mubr.f32.gmra.mxu0 %v123
    %v732 = vpop.f32.mrf.mxu0
    %v733 = vadd.f32 0.0, %v732
    %v734 = vpop.f32.mrf.mxu0
    %735 = vmatprep.mubr.f32.mxu0 0.0
    %736 = vmatmul.mubr.f32.gmra.mxu0 %v126
    %v737 = vpop.f32.mrf.mxu0
    %v738 = vadd.f32 0.0, %v737
    %v739 = vpop.f32.mrf.mxu0
    %740 = vmatprep.mubr.f32.mxu0 0.0
    %741 = vmatmul.mubr.f32.gmra.mxu0 %v129
    %v742 = vpop.f32.mrf.mxu0
    %v743 = vadd.f32 0.0, %v742
    %v744 = vpop.f32.mrf.mxu0
    %745 = vmatprep.mubr.f32.mxu0 0.0
    %746 = vmatmul.mubr.f32.gmra.mxu0 %v132
    %v747 = vpop.f32.mrf.mxu0
    %v748 = vadd.f32 0.0, %v747
    %v749 = vpop.f32.mrf.mxu0
    %750 = vmatprep.mubr.f32.mxu0 0.0
    %751 = vmatmul.mubr.f32.gmra.mxu0 %v135
    %v752 = vpop.f32.mrf.mxu0
    %v753 = vadd.f32 0.0, %v752
    %v754 = vpop.f32.mrf.mxu0
    %755 = vdwg.mxu0
    %s756 = scalar_lea.vmem %s3, 32
    %v757 = vld [vmem:[%s756] sm:$0xff]
    %v758 = vld [vmem:[%s756 + $0x8] sm:$0xff]
    %v759 = vld [vmem:[%s756 + $0x10] sm:$0xff]
    %v760 = vld [vmem:[%s756 + $0x18] sm:$0xff]
    %s761 = scalar_lea.vmem %s4, 1
    %v762 = vld [vmem:[%s761] sm:$0x1]
    %v764 = vlaneseq
    %v765 = vshrl.u32 %v764, 7
    %v766 = vsub.s32 0, %v765
    %v767 = vrot.slane %v762, %v766
    %v770 = vsel %vm253, %v718, 0
    %v773 = vsel %vm253, %v723, 0
    %v776 = vsel %vm253, %v728, 0
    %v779 = vsel %vm253, %v733, 0
    %v782 = vsel %vm253, %v738, 0
    %v785 = vsel %vm253, %v743, 0
    %v788 = vsel %vm253, %v748, 0
    %v791 = vsel %vm253, %v753, 0
    %793 = vmatprep.subr.mxu0 0.0
    %794 = vmatpush1.msra.mxu0 0.0
    %795 = vmatprep.subr.mxu0 0.0
    %796 = vmatpush1.msra.mxu0 0.0
    %797 = vmatprep.subr.mxu0 0.0
    %798 = vmatpush1.msra.mxu0 0.0
    %799 = vmatprep.subr.mxu0 0.0
    %800 = vmatpush1.msra.mxu0 0.0
    %801 = vmatprep.subr.mxu0 0.0
    %802 = vmatpush1.msra.mxu0 0.0
    %803 = vmatprep.subr.mxu0 0.0
    %804 = vmatpush1.msra.mxu0 0.0
    %805 = vmatprep.subr.mxu0 0.0
    %806 = vmatpush1.msra.mxu0 0.0
    %807 = vmatprep.subr.mxu0 0.0
    %808 = vmatpush1.msra.mxu0 0.0
    %809 = vmatprep.subr.mxu0 0.0
    %810 = vmatpush1.msra.mxu0 0.0
    %811 = vmatprep.subr.mxu0 0.0
    %812 = vmatpush1.msra.mxu0 0.0
    %813 = vmatprep.subr.mxu0 0.0
    %814 = vmatpush1.msra.mxu0 0.0
    %815 = vmatprep.subr.mxu0 0.0
    %816 = vmatpush1.msra.mxu0 0.0
    %817 = vmatprep.subr.mxu0 0.0
    %818 = vmatpush1.msra.mxu0 %v760
    %819 = vmatprep.subr.mxu0 0.0
    %820 = vmatpush1.msra.mxu0 %v759
    %821 = vmatprep.subr.mxu0 0.0
    %822 = vmatpush1.msra.mxu0 %v758
    %823 = vmatprep.subr.mxu0 0.0
    %824 = vmatpush1.msra.mxu0 %v757
    %825 = vmatprep.subr.mxu0 0.0
    %826 = vmatpush2.msra.mxu0 0.0
    %827 = vmatprep.subr.mxu0 0.0
    %828 = vmatpush2.msra.mxu0 0.0
    %829 = vmatprep.subr.mxu0 0.0
    %830 = vmatpush2.msra.mxu0 0.0
    %831 = vmatprep.subr.mxu0 0.0
    %832 = vmatpush2.msra.mxu0 0.0
    %833 = vmatprep.subr.mxu0 0.0
    %834 = vmatpush2.msra.mxu0 0.0
    %835 = vmatprep.subr.mxu0 0.0
    %836 = vmatpush2.msra.mxu0 0.0
    %837 = vmatprep.subr.mxu0 0.0
    %838 = vmatpush2.msra.mxu0 0.0
    %839 = vmatprep.subr.mxu0 0.0
    %840 = vmatpush2.msra.mxu0 0.0
    %841 = vmatprep.subr.mxu0 0.0
    %842 = vmatpush2.msra.mxu0 0.0
    %843 = vmatprep.subr.mxu0 0.0
    %844 = vmatpush2.msra.mxu0 0.0
    %845 = vmatprep.subr.mxu0 0.0
    %846 = vmatpush2.msra.mxu0 0.0
    %847 = vmatprep.subr.mxu0 0.0
    %848 = vmatpush2.msra.mxu0 0.0
    %849 = vmatprep.subr.mxu0 0.0
    %850 = vmatpush2.msra.mxu0 0.0
    %851 = vmatprep.subr.mxu0 0.0
    %852 = vmatpush2.msra.mxu0 0.0
    %853 = vmatprep.subr.mxu0 0.0
    %854 = vmatpush2.msra.mxu0 0.0
    %855 = vmatprep.subr.mxu0 0.0
    %856 = vmatpush2.msra.mxu0 0.0
    %857 = vmatprep.mubr.f32.mxu0 0.0
    %858 = vmatmul.mubr.f32.gmra.mxu0 %v770
    %v859 = vpop.f32.mrf.mxu0
    %v860 = vadd.f32 %v767, %v859
    %v861 = vpop.f32.mrf.mxu0
    %862 = vmatprep.mubr.f32.mxu0 0.0
    %863 = vmatmul.mubr.f32.gmra.mxu0 %v773
    %v864 = vpop.f32.mrf.mxu0
    %v865 = vadd.f32 %v767, %v864
    %v866 = vpop.f32.mrf.mxu0
    %867 = vmatprep.mubr.f32.mxu0 0.0
    %868 = vmatmul.mubr.f32.gmra.mxu0 %v776
    %v869 = vpop.f32.mrf.mxu0
    %v870 = vadd.f32 %v767, %v869
    %v871 = vpop.f32.mrf.mxu0
    %872 = vmatprep.mubr.f32.mxu0 0.0
    %873 = vmatmul.mubr.f32.gmra.mxu0 %v779
    %v874 = vpop.f32.mrf.mxu0
    %v875 = vadd.f32 %v767, %v874
    %v876 = vpop.f32.mrf.mxu0
    %877 = vmatprep.mubr.f32.mxu0 0.0
    %878 = vmatmul.mubr.f32.gmra.mxu0 %v782
    %v879 = vpop.f32.mrf.mxu0
    %v880 = vadd.f32 %v767, %v879
    %v881 = vpop.f32.mrf.mxu0
    %882 = vmatprep.mubr.f32.mxu0 0.0
    %883 = vmatmul.mubr.f32.gmra.mxu0 %v785
    %v884 = vpop.f32.mrf.mxu0
    %v885 = vadd.f32 %v767, %v884
    %v886 = vpop.f32.mrf.mxu0
    %887 = vmatprep.mubr.f32.mxu0 0.0
    %888 = vmatmul.mubr.f32.gmra.mxu0 %v788
    %v889 = vpop.f32.mrf.mxu0
    %v890 = vadd.f32 %v767, %v889
    %v891 = vpop.f32.mrf.mxu0
    %892 = vmatprep.mubr.f32.mxu0 0.0
    %893 = vmatmul.mubr.f32.gmra.mxu0 %v791
    %v894 = vpop.f32.mrf.mxu0
    %v895 = vadd.f32 %v767, %v894
    %v896 = vpop.f32.mrf.mxu0
    %897 = vdwg.mxu0
    %vm898 = vcmp.ge.f32.partialorder %v860, 0.0
    %vm899 = vcmp.ge.f32.partialorder %v865, 0.0
    %vm900 = vcmp.ge.f32.partialorder %v870, 0.0
    %vm901 = vcmp.ge.f32.partialorder %v875, 0.0
    %vm902 = vcmp.ge.f32.partialorder %v880, 0.0
    %vm903 = vcmp.ge.f32.partialorder %v885, 0.0
    %vm904 = vcmp.ge.f32.partialorder %v890, 0.0
    %vm905 = vcmp.ge.f32.partialorder %v895, 0.0
    %v906 = vmul.f32 %v860, 0.01
    %v907 = vmul.f32 %v865, 0.01
    %v908 = vmul.f32 %v870, 0.01
    %v909 = vmul.f32 %v875, 0.01
    %v910 = vmul.f32 %v880, 0.01
    %v911 = vmul.f32 %v885, 0.01
    %v912 = vmul.f32 %v890, 0.01
    %v913 = vmul.f32 %v895, 0.01
    %v914 = vsel %vm898, %v860, %v906
    %v915 = vsel %vm899, %v865, %v907
    %v916 = vsel %vm900, %v870, %v908
    %v917 = vsel %vm901, %v875, %v909
    %v918 = vsel %vm902, %v880, %v910
    %v919 = vsel %vm903, %v885, %v911
    %v920 = vsel %vm904, %v890, %v912
    %v921 = vsel %vm905, %v895, %v913
    %v922 = vmul.f32 %v635, %v718
    %v923 = vmul.f32 %v636, %v723
    %v924 = vmul.f32 %v637, %v728
    %v925 = vmul.f32 %v638, %v733
    %v926 = vmul.f32 %v639, %v738
    %v927 = vmul.f32 %v640, %v743
    %v928 = vmul.f32 %v641, %v748
    %v929 = vmul.f32 %v642, %v753
    %s930 = scalar_lea.vmem %s5, 32
    %v931 = vld [vmem:[%s930] sm:$0xff]
    %v932 = vld [vmem:[%s930 + $0x8] sm:$0xff]
    %v933 = vld [vmem:[%s930 + $0x10] sm:$0xff]
    %v934 = vld [vmem:[%s930 + $0x18] sm:$0xff]
    %s935 = scalar_lea.vmem %s6, 1
    %v936 = vld [vmem:[%s935] sm:$0x1]
    %v938 = vlaneseq
    %v939 = vshrl.u32 %v938, 7
    %v940 = vsub.s32 0, %v939
    %v941 = vrot.slane %v936, %v940
    %v944 = vsel %vm253, %v922, 0
    %v947 = vsel %vm253, %v923, 0
    %v950 = vsel %vm253, %v924, 0
    %v953 = vsel %vm253, %v925, 0
    %v956 = vsel %vm253, %v926, 0
    %v959 = vsel %vm253, %v927, 0
    %v962 = vsel %vm253, %v928, 0
    %v965 = vsel %vm253, %v929, 0
    %967 = vmatprep.subr.mxu0 0.0
    %968 = vmatpush1.msra.mxu0 0.0
    %969 = vmatprep.subr.mxu0 0.0
    %970 = vmatpush1.msra.mxu0 0.0
    %971 = vmatprep.subr.mxu0 0.0
    %972 = vmatpush1.msra.mxu0 0.0
    %973 = vmatprep.subr.mxu0 0.0
    %974 = vmatpush1.msra.mxu0 0.0
    %975 = vmatprep.subr.mxu0 0.0
    %976 = vmatpush1.msra.mxu0 0.0
    %977 = vmatprep.subr.mxu0 0.0
    %978 = vmatpush1.msra.mxu0 0.0
    %979 = vmatprep.subr.mxu0 0.0
    %980 = vmatpush1.msra.mxu0 0.0
    %981 = vmatprep.subr.mxu0 0.0
    %982 = vmatpush1.msra.mxu0 0.0
    %983 = vmatprep.subr.mxu0 0.0
    %984 = vmatpush1.msra.mxu0 0.0
    %985 = vmatprep.subr.mxu0 0.0
    %986 = vmatpush1.msra.mxu0 0.0
    %987 = vmatprep.subr.mxu0 0.0
    %988 = vmatpush1.msra.mxu0 0.0
    %989 = vmatprep.subr.mxu0 0.0
    %990 = vmatpush1.msra.mxu0 0.0
    %991 = vmatprep.subr.mxu0 0.0
    %992 = vmatpush1.msra.mxu0 %v934
    %993 = vmatprep.subr.mxu0 0.0
    %994 = vmatpush1.msra.mxu0 %v933
    %995 = vmatprep.subr.mxu0 0.0
    %996 = vmatpush1.msra.mxu0 %v932
    %997 = vmatprep.subr.mxu0 0.0
    %998 = vmatpush1.msra.mxu0 %v931
    %999 = vmatprep.subr.mxu0 0.0
    %1000 = vmatpush2.msra.mxu0 0.0
    %1001 = vmatprep.subr.mxu0 0.0
    %1002 = vmatpush2.msra.mxu0 0.0
    %1003 = vmatprep.subr.mxu0 0.0
    %1004 = vmatpush2.msra.mxu0 0.0
    %1005 = vmatprep.subr.mxu0 0.0
    %1006 = vmatpush2.msra.mxu0 0.0
    %1007 = vmatprep.subr.mxu0 0.0
    %1008 = vmatpush2.msra.mxu0 0.0
    %1009 = vmatprep.subr.mxu0 0.0
    %1010 = vmatpush2.msra.mxu0 0.0
    %1011 = vmatprep.subr.mxu0 0.0
    %1012 = vmatpush2.msra.mxu0 0.0
    %1013 = vmatprep.subr.mxu0 0.0
    %1014 = vmatpush2.msra.mxu0 0.0
    %1015 = vmatprep.subr.mxu0 0.0
    %1016 = vmatpush2.msra.mxu0 0.0
    %1017 = vmatprep.subr.mxu0 0.0
    %1018 = vmatpush2.msra.mxu0 0.0
    %1019 = vmatprep.subr.mxu0 0.0
    %1020 = vmatpush2.msra.mxu0 0.0
    %1021 = vmatprep.subr.mxu0 0.0
    %1022 = vmatpush2.msra.mxu0 0.0
    %1023 = vmatprep.subr.mxu0 0.0
    %1024 = vmatpush2.msra.mxu0 0.0
    %1025 = vmatprep.subr.mxu0 0.0
    %1026 = vmatpush2.msra.mxu0 0.0
    %1027 = vmatprep.subr.mxu0 0.0
    %1028 = vmatpush2.msra.mxu0 0.0
    %1029 = vmatprep.subr.mxu0 0.0
    %1030 = vmatpush2.msra.mxu0 0.0
    %1031 = vmatprep.mubr.f32.mxu0 0.0
    %1032 = vmatmul.mubr.f32.gmra.mxu0 %v944
    %v1033 = vpop.f32.mrf.mxu0
    %v1034 = vadd.f32 %v941, %v1033
    %v1035 = vpop.f32.mrf.mxu0
    %1036 = vmatprep.mubr.f32.mxu0 0.0
    %1037 = vmatmul.mubr.f32.gmra.mxu0 %v947
    %v1038 = vpop.f32.mrf.mxu0
    %v1039 = vadd.f32 %v941, %v1038
    %v1040 = vpop.f32.mrf.mxu0
    %1041 = vmatprep.mubr.f32.mxu0 0.0
    %1042 = vmatmul.mubr.f32.gmra.mxu0 %v950
    %v1043 = vpop.f32.mrf.mxu0
    %v1044 = vadd.f32 %v941, %v1043
    %v1045 = vpop.f32.mrf.mxu0
    %1046 = vmatprep.mubr.f32.mxu0 0.0
    %1047 = vmatmul.mubr.f32.gmra.mxu0 %v953
    %v1048 = vpop.f32.mrf.mxu0
    %v1049 = vadd.f32 %v941, %v1048
    %v1050 = vpop.f32.mrf.mxu0
    %1051 = vmatprep.mubr.f32.mxu0 0.0
    %1052 = vmatmul.mubr.f32.gmra.mxu0 %v956
    %v1053 = vpop.f32.mrf.mxu0
    %v1054 = vadd.f32 %v941, %v1053
    %v1055 = vpop.f32.mrf.mxu0
    %1056 = vmatprep.mubr.f32.mxu0 0.0
    %1057 = vmatmul.mubr.f32.gmra.mxu0 %v959
    %v1058 = vpop.f32.mrf.mxu0
    %v1059 = vadd.f32 %v941, %v1058
    %v1060 = vpop.f32.mrf.mxu0
    %1061 = vmatprep.mubr.f32.mxu0 0.0
    %1062 = vmatmul.mubr.f32.gmra.mxu0 %v962
    %v1063 = vpop.f32.mrf.mxu0
    %v1064 = vadd.f32 %v941, %v1063
    %v1065 = vpop.f32.mrf.mxu0
    %1066 = vmatprep.mubr.f32.mxu0 0.0
    %1067 = vmatmul.mubr.f32.gmra.mxu0 %v965
    %v1068 = vpop.f32.mrf.mxu0
    %v1069 = vadd.f32 %v941, %v1068
    %v1070 = vpop.f32.mrf.mxu0
    %1071 = vdwg.mxu0
    %vm1072 = vcmp.ge.f32.partialorder %v1034, 0.0
    %vm1073 = vcmp.ge.f32.partialorder %v1039, 0.0
    %vm1074 = vcmp.ge.f32.partialorder %v1044, 0.0
    %vm1075 = vcmp.ge.f32.partialorder %v1049, 0.0
    %vm1076 = vcmp.ge.f32.partialorder %v1054, 0.0
    %vm1077 = vcmp.ge.f32.partialorder %v1059, 0.0
    %vm1078 = vcmp.ge.f32.partialorder %v1064, 0.0
    %vm1079 = vcmp.ge.f32.partialorder %v1069, 0.0
    %v1080 = vmul.f32 %v1034, 0.01
    %v1081 = vmul.f32 %v1039, 0.01
    %v1082 = vmul.f32 %v1044, 0.01
    %v1083 = vmul.f32 %v1049, 0.01
    %v1084 = vmul.f32 %v1054, 0.01
    %v1085 = vmul.f32 %v1059, 0.01
    %v1086 = vmul.f32 %v1064, 0.01
    %v1087 = vmul.f32 %v1069, 0.01
    %v1088 = vsel %vm1072, %v1034, %v1080
    %v1089 = vsel %vm1073, %v1039, %v1081
    %v1090 = vsel %vm1074, %v1044, %v1082
    %v1091 = vsel %vm1075, %v1049, %v1083
    %v1092 = vsel %vm1076, %v1054, %v1084
    %v1093 = vsel %vm1077, %v1059, %v1085
    %v1094 = vsel %vm1078, %v1064, %v1086
    %v1095 = vsel %vm1079, %v1069, %v1087
    %v1096 = vadd.f32 %v914, %v1088
    %v1097 = vadd.f32 %v915, %v1089
    %v1098 = vadd.f32 %v916, %v1090
    %v1099 = vadd.f32 %v917, %v1091
    %v1100 = vadd.f32 %v918, %v1092
    %v1101 = vadd.f32 %v919, %v1093
    %v1102 = vadd.f32 %v920, %v1094
    %v1103 = vadd.f32 %v921, %v1095
    %v1104 = vmul.f32 %v1096, %v1096
    %v1105 = vmul.f32 %v1097, %v1097
    %v1106 = vmul.f32 %v1098, %v1098
    %v1107 = vmul.f32 %v1099, %v1099
    %v1108 = vmul.f32 %v1100, %v1100
    %v1109 = vmul.f32 %v1101, %v1101
    %v1110 = vmul.f32 %v1102, %v1102
    %v1111 = vmul.f32 %v1103, %v1103
    %v1112 = vsel %vm253, %v1104, 0.0
    %1113 = vadd.xlane.f32.xlu0 %v1112
    %v1114 = vpop.xlane.xlu0 %1113
    %v1115 = vsel %vm253, %v1105, 0.0
    %1116 = vadd.xlane.f32.xlu0 %v1115
    %v1117 = vpop.xlane.xlu0 %1116
    %v1118 = vsel %vm253, %v1106, 0.0
    %1119 = vadd.xlane.f32.xlu0 %v1118
    %v1120 = vpop.xlane.xlu0 %1119
    %v1121 = vsel %vm253, %v1107, 0.0
    %1122 = vadd.xlane.f32.xlu0 %v1121
    %v1123 = vpop.xlane.xlu0 %1122
    %v1124 = vsel %vm253, %v1108, 0.0
    %1125 = vadd.xlane.f32.xlu0 %v1124
    %v1126 = vpop.xlane.xlu0 %1125
    %v1127 = vsel %vm253, %v1109, 0.0
    %1128 = vadd.xlane.f32.xlu0 %v1127
    %v1129 = vpop.xlane.xlu0 %1128
    %v1130 = vsel %vm253, %v1110, 0.0
    %1131 = vadd.xlane.f32.xlu0 %v1130
    %v1132 = vpop.xlane.xlu0 %1131
    %v1133 = vsel %vm253, %v1111, 0.0
    %1134 = vadd.xlane.f32.xlu0 %v1133
    %v1135 = vpop.xlane.xlu0 %1134
    %v1136 = vmax.f32 %v1114, 1e-24
    %v1137 = vmax.f32 %v1117, 1e-24
    %v1138 = vmax.f32 %v1120, 1e-24
    %v1139 = vmax.f32 %v1123, 1e-24
    %v1140 = vmax.f32 %v1126, 1e-24
    %v1141 = vmax.f32 %v1129, 1e-24
    %v1142 = vmax.f32 %v1132, 1e-24
    %v1143 = vmax.f32 %v1135, 1e-24
    %v1144 = vrsqrt.pop %v1136
    %v1145 = vrsqrt.pop %v1137
    %v1146 = vrsqrt.pop %v1138
    %v1147 = vrsqrt.pop %v1139
    %v1148 = vrsqrt.pop %v1140
    %v1149 = vrsqrt.pop %v1141
    %v1150 = vrsqrt.pop %v1142
    %v1151 = vrsqrt.pop %v1143
    %v1152 = vmul.f32 %v1096, %v1144
    %v1153 = vmul.f32 %v1097, %v1145
    %v1154 = vmul.f32 %v1098, %v1146
    %v1155 = vmul.f32 %v1099, %v1147
    %v1156 = vmul.f32 %v1100, %v1148
    %v1157 = vmul.f32 %v1101, %v1149
    %v1158 = vmul.f32 %v1102, %v1150
    %v1159 = vmul.f32 %v1103, %v1151
    %v1160 = vadd.f32 %v643, %v1152
    %v1161 = vadd.f32 %v644, %v1153
    %v1162 = vadd.f32 %v645, %v1154
    %v1163 = vadd.f32 %v646, %v1155
    %v1164 = vadd.f32 %v647, %v1156
    %v1165 = vadd.f32 %v648, %v1157
    %v1166 = vadd.f32 %v649, %v1158
    %v1167 = vadd.f32 %v650, %v1159
    %1168 = vst.msk [vmem:[#allocation2] sm:$0xff] %vm253, %v1160
    %1169 = vst.msk [vmem:[#allocation2 + $0x8] sm:$0xff] %vm253, %v1161
    %1170 = vst.msk [vmem:[#allocation2 + $0x10] sm:$0xff] %vm253, %v1162
    %1171 = vst.msk [vmem:[#allocation2 + $0x18] sm:$0xff] %vm253, %v1163
    %1172 = vst.msk [vmem:[#allocation2 + $0x20] sm:$0xff] %vm253, %v1164
    %1173 = vst.msk [vmem:[#allocation2 + $0x28] sm:$0xff] %vm253, %v1165
    %1174 = vst.msk [vmem:[#allocation2 + $0x30] sm:$0xff] %vm253, %v1166
    %1175 = vst.msk [vmem:[#allocation2 + $0x38] sm:$0xff] %vm253, %v1167
    %s1176 = sld [smem:[#allocation4]]
    %s1177 = scalar_lea.vmem [#allocation2], %s1176
    %v1178 = vld [vmem:[%s1177] sm:$0x1]
    %vm1179 = vcmask 253952
    %1180 = vst.msk [vmem:[#allocation3] sm:$0x1] %vm1179, %v1178
    %s1181 = sld [smem:[#allocation4 + $0x1]]
    %s1182 = scalar_lea.vmem [#allocation2], %s1181
    %v1183 = vld [vmem:[%s1182] sm:$0x1]
    %1184 = vst.msk [vmem:[#allocation3 + $0x1] sm:$0x1] %vm1179, %v1183
    %s1185 = sld [smem:[#allocation4 + $0x2]]
    %s1186 = scalar_lea.vmem [#allocation2], %s1185
    %v1187 = vld [vmem:[%s1186] sm:$0x1]
    %1188 = vst.msk [vmem:[#allocation3 + $0x2] sm:$0x1] %vm1179, %v1187
    %s1189 = sld [smem:[#allocation4 + $0x3]]
    %s1190 = scalar_lea.vmem [#allocation2], %s1189
    %v1191 = vld [vmem:[%s1190] sm:$0x1]
    %1192 = vst.msk [vmem:[#allocation3 + $0x3] sm:$0x1] %vm1179, %v1191
    %s1193 = sld [smem:[#allocation4 + $0x4]]
    %s1194 = scalar_lea.vmem [#allocation2], %s1193
    %v1195 = vld [vmem:[%s1194] sm:$0x1]
    %1196 = vst.msk [vmem:[#allocation3 + $0x4] sm:$0x1] %vm1179, %v1195
    %s1197 = sld [smem:[#allocation4 + $0x5]]
    %s1198 = scalar_lea.vmem [#allocation2], %s1197
    %v1199 = vld [vmem:[%s1198] sm:$0x1]
    %1200 = vst.msk [vmem:[#allocation3 + $0x5] sm:$0x1] %vm1179, %v1199
    %s1201 = sld [smem:[#allocation4 + $0x6]]
    %s1202 = scalar_lea.vmem [#allocation2], %s1201
    %v1203 = vld [vmem:[%s1202] sm:$0x1]
    %1204 = vst.msk [vmem:[#allocation3 + $0x6] sm:$0x1] %vm1179, %v1203
    %s1205 = sld [smem:[#allocation4 + $0x7]]
    %s1206 = scalar_lea.vmem [#allocation2], %s1205
    %v1207 = vld [vmem:[%s1206] sm:$0x1]
    %1208 = vst.msk [vmem:[#allocation3 + $0x7] sm:$0x1] %vm1179, %v1207
    %s1209 = sld [smem:[#allocation4 + $0x8]]
    %s1210 = scalar_lea.vmem [#allocation2], %s1209
    %v1211 = vld [vmem:[%s1210] sm:$0x1]
    %1212 = vst.msk [vmem:[#allocation3 + $0x8] sm:$0x1] %vm1179, %v1211
    %s1213 = sld [smem:[#allocation4 + $0x9]]
    %s1214 = scalar_lea.vmem [#allocation2], %s1213
    %v1215 = vld [vmem:[%s1214] sm:$0x1]
    %1216 = vst.msk [vmem:[#allocation3 + $0x9] sm:$0x1] %vm1179, %v1215
    %s1217 = sld [smem:[#allocation4 + $0xa]]
    %s1218 = scalar_lea.vmem [#allocation2], %s1217
    %v1219 = vld [vmem:[%s1218] sm:$0x1]
    %1220 = vst.msk [vmem:[#allocation3 + $0xa] sm:$0x1] %vm1179, %v1219
    %s1221 = sld [smem:[#allocation4 + $0xb]]
    %s1222 = scalar_lea.vmem [#allocation2], %s1221
    %v1223 = vld [vmem:[%s1222] sm:$0x1]
    %1224 = vst.msk [vmem:[#allocation3 + $0xb] sm:$0x1] %vm1179, %v1223
    %s1225 = sld [smem:[#allocation4 + $0xc]]
    %s1226 = scalar_lea.vmem [#allocation2], %s1225
    %v1227 = vld [vmem:[%s1226] sm:$0x1]
    %1228 = vst.msk [vmem:[#allocation3 + $0xc] sm:$0x1] %vm1179, %v1227
    %s1229 = sld [smem:[#allocation4 + $0xd]]
    %s1230 = scalar_lea.vmem [#allocation2], %s1229
    %v1231 = vld [vmem:[%s1230] sm:$0x1]
    %1232 = vst.msk [vmem:[#allocation3 + $0xd] sm:$0x1] %vm1179, %v1231
    %s1233 = sld [smem:[#allocation4 + $0xe]]
    %s1234 = scalar_lea.vmem [#allocation2], %s1233
    %v1235 = vld [vmem:[%s1234] sm:$0x1]
    %1236 = vst.msk [vmem:[#allocation3 + $0xe] sm:$0x1] %vm1179, %v1235
    %s1237 = sld [smem:[#allocation4 + $0xf]]
    %s1238 = scalar_lea.vmem [#allocation2], %s1237
    %v1239 = vld [vmem:[%s1238] sm:$0x1]
    %1240 = vst.msk [vmem:[#allocation3 + $0xf] sm:$0x1] %vm1179, %v1239
    %s1241 = sld [smem:[#allocation4 + $0x10]]
    %s1242 = scalar_lea.vmem [#allocation2], %s1241
    %v1243 = vld [vmem:[%s1242] sm:$0x1]
    %1244 = vst.msk [vmem:[#allocation3 + $0x10] sm:$0x1] %vm1179, %v1243
    %s1245 = sld [smem:[#allocation4 + $0x11]]
    %s1246 = scalar_lea.vmem [#allocation2], %s1245
    %v1247 = vld [vmem:[%s1246] sm:$0x1]
    %1248 = vst.msk [vmem:[#allocation3 + $0x11] sm:$0x1] %vm1179, %v1247
    %s1249 = sld [smem:[#allocation4 + $0x12]]
    %s1250 = scalar_lea.vmem [#allocation2], %s1249
    %v1251 = vld [vmem:[%s1250] sm:$0x1]
    %1252 = vst.msk [vmem:[#allocation3 + $0x12] sm:$0x1] %vm1179, %v1251
    %s1253 = sld [smem:[#allocation4 + $0x13]]
    %s1254 = scalar_lea.vmem [#allocation2], %s1253
    %v1255 = vld [vmem:[%s1254] sm:$0x1]
    %1256 = vst.msk [vmem:[#allocation3 + $0x13] sm:$0x1] %vm1179, %v1255
    %s1257 = sld [smem:[#allocation4 + $0x14]]
    %s1258 = scalar_lea.vmem [#allocation2], %s1257
    %v1259 = vld [vmem:[%s1258] sm:$0x1]
    %1260 = vst.msk [vmem:[#allocation3 + $0x14] sm:$0x1] %vm1179, %v1259
    %s1261 = sld [smem:[#allocation4 + $0x15]]
    %s1262 = scalar_lea.vmem [#allocation2], %s1261
    %v1263 = vld [vmem:[%s1262] sm:$0x1]
    %1264 = vst.msk [vmem:[#allocation3 + $0x15] sm:$0x1] %vm1179, %v1263
    %s1265 = sld [smem:[#allocation4 + $0x16]]
    %s1266 = scalar_lea.vmem [#allocation2], %s1265
    %v1267 = vld [vmem:[%s1266] sm:$0x1]
    %1268 = vst.msk [vmem:[#allocation3 + $0x16] sm:$0x1] %vm1179, %v1267
    %s1269 = sld [smem:[#allocation4 + $0x17]]
    %s1270 = scalar_lea.vmem [#allocation2], %s1269
    %v1271 = vld [vmem:[%s1270] sm:$0x1]
    %1272 = vst.msk [vmem:[#allocation3 + $0x17] sm:$0x1] %vm1179, %v1271
    %s1273 = sld [smem:[#allocation4 + $0x18]]
    %s1274 = scalar_lea.vmem [#allocation2], %s1273
    %v1275 = vld [vmem:[%s1274] sm:$0x1]
    %1276 = vst.msk [vmem:[#allocation3 + $0x18] sm:$0x1] %vm1179, %v1275
    %s1277 = sld [smem:[#allocation4 + $0x19]]
    %s1278 = scalar_lea.vmem [#allocation2], %s1277
    %v1279 = vld [vmem:[%s1278] sm:$0x1]
    %1280 = vst.msk [vmem:[#allocation3 + $0x19] sm:$0x1] %vm1179, %v1279
    %s1281 = sld [smem:[#allocation4 + $0x1a]]
    %s1282 = scalar_lea.vmem [#allocation2], %s1281
    %v1283 = vld [vmem:[%s1282] sm:$0x1]
    %1284 = vst.msk [vmem:[#allocation3 + $0x1a] sm:$0x1] %vm1179, %v1283
    %s1285 = sld [smem:[#allocation4 + $0x1b]]
    %s1286 = scalar_lea.vmem [#allocation2], %s1285
    %v1287 = vld [vmem:[%s1286] sm:$0x1]
    %1288 = vst.msk [vmem:[#allocation3 + $0x1b] sm:$0x1] %vm1179, %v1287
    %s1289 = sld [smem:[#allocation4 + $0x1c]]
    %s1290 = scalar_lea.vmem [#allocation2], %s1289
    %v1291 = vld [vmem:[%s1290] sm:$0x1]
    %1292 = vst.msk [vmem:[#allocation3 + $0x1c] sm:$0x1] %vm1179, %v1291
    %s1293 = sld [smem:[#allocation4 + $0x1d]]
    %s1294 = scalar_lea.vmem [#allocation2], %s1293
    %v1295 = vld [vmem:[%s1294] sm:$0x1]
    %1296 = vst.msk [vmem:[#allocation3 + $0x1d] sm:$0x1] %vm1179, %v1295
    %s1297 = sld [smem:[#allocation4 + $0x1e]]
    %s1298 = scalar_lea.vmem [#allocation2], %s1297
    %v1299 = vld [vmem:[%s1298] sm:$0x1]
    %1300 = vst.msk [vmem:[#allocation3 + $0x1e] sm:$0x1] %vm1179, %v1299
    %s1301 = sld [smem:[#allocation4 + $0x1f]]
    %s1302 = scalar_lea.vmem [#allocation2], %s1301
    %v1303 = vld [vmem:[%s1302] sm:$0x1]
    %1304 = vst.msk [vmem:[#allocation3 + $0x1f] sm:$0x1] %vm1179, %v1303
    %v1305 = vld [vmem:[#allocation3] sm:$0xff]
    %v1306 = vld [vmem:[#allocation3 + $0x8] sm:$0xff]
    %v1307 = vld [vmem:[%s7] sm:$0xff]
    %v1308 = vld [vmem:[%s7 + $0x8] sm:$0xff]
    %v1309 = vld [vmem:[%s7 + $0x10] sm:$0xff]
    %v1310 = vld [vmem:[%s7 + $0x18] sm:$0xff]
    %v1311 = vld [vmem:[%s8] sm:$0x1]
    %v1313 = vlaneseq
    %v1314 = vshrl.u32 %v1313, 7
    %v1315 = vsub.s32 0, %v1314
    %v1316 = vrot.slane %v1311, %v1315
    %v1319 = vsel %vm253, %v1305, 0
    %v1322 = vsel %vm253, %v1306, 0
    %1324 = vmatprep.subr.mxu0 0.0
    %1325 = vmatpush1.msra.mxu0 0.0
    %1326 = vmatprep.subr.mxu0 0.0
    %1327 = vmatpush1.msra.mxu0 0.0
    %1328 = vmatprep.subr.mxu0 0.0
    %1329 = vmatpush1.msra.mxu0 0.0
    %1330 = vmatprep.subr.mxu0 0.0
    %1331 = vmatpush1.msra.mxu0 0.0
    %1332 = vmatprep.subr.mxu0 0.0
    %1333 = vmatpush1.msra.mxu0 0.0
    %1334 = vmatprep.subr.mxu0 0.0
    %1335 = vmatpush1.msra.mxu0 0.0
    %1336 = vmatprep.subr.mxu0 0.0
    %1337 = vmatpush1.msra.mxu0 0.0
    %1338 = vmatprep.subr.mxu0 0.0
    %1339 = vmatpush1.msra.mxu0 0.0
    %1340 = vmatprep.subr.mxu0 0.0
    %1341 = vmatpush1.msra.mxu0 0.0
    %1342 = vmatprep.subr.mxu0 0.0
    %1343 = vmatpush1.msra.mxu0 0.0
    %1344 = vmatprep.subr.mxu0 0.0
    %1345 = vmatpush1.msra.mxu0 0.0
    %1346 = vmatprep.subr.mxu0 0.0
    %1347 = vmatpush1.msra.mxu0 0.0
    %1348 = vmatprep.subr.mxu0 0.0
    %1349 = vmatpush1.msra.mxu0 %v1310
    %1350 = vmatprep.subr.mxu0 0.0
    %1351 = vmatpush1.msra.mxu0 %v1309
    %1352 = vmatprep.subr.mxu0 0.0
    %1353 = vmatpush1.msra.mxu0 %v1308
    %1354 = vmatprep.subr.mxu0 0.0
    %1355 = vmatpush1.msra.mxu0 %v1307
    %1356 = vmatprep.subr.mxu0 0.0
    %1357 = vmatpush2.msra.mxu0 0.0
    %1358 = vmatprep.subr.mxu0 0.0
    %1359 = vmatpush2.msra.mxu0 0.0
    %1360 = vmatprep.subr.mxu0 0.0
    %1361 = vmatpush2.msra.mxu0 0.0
    %1362 = vmatprep.subr.mxu0 0.0
    %1363 = vmatpush2.msra.mxu0 0.0
    %1364 = vmatprep.subr.mxu0 0.0
    %1365 = vmatpush2.msra.mxu0 0.0
    %1366 = vmatprep.subr.mxu0 0.0
    %1367 = vmatpush2.msra.mxu0 0.0
    %1368 = vmatprep.subr.mxu0 0.0
    %1369 = vmatpush2.msra.mxu0 0.0
    %1370 = vmatprep.subr.mxu0 0.0
    %1371 = vmatpush2.msra.mxu0 0.0
    %1372 = vmatprep.subr.mxu0 0.0
    %1373 = vmatpush2.msra.mxu0 0.0
    %1374 = vmatprep.subr.mxu0 0.0
    %1375 = vmatpush2.msra.mxu0 0.0
    %1376 = vmatprep.subr.mxu0 0.0
    %1377 = vmatpush2.msra.mxu0 0.0
    %1378 = vmatprep.subr.mxu0 0.0
    %1379 = vmatpush2.msra.mxu0 0.0
    %1380 = vmatprep.subr.mxu0 0.0
    %1381 = vmatpush2.msra.mxu0 0.0
    %1382 = vmatprep.subr.mxu0 0.0
    %1383 = vmatpush2.msra.mxu0 0.0
    %1384 = vmatprep.subr.mxu0 0.0
    %1385 = vmatpush2.msra.mxu0 0.0
    %1386 = vmatprep.subr.mxu0 0.0
    %1387 = vmatpush2.msra.mxu0 0.0
    %1388 = vmatprep.mubr.f32.mxu0 0.0
    %1389 = vmatmul.mubr.f32.gmra.mxu0 %v1319
    %v1390 = vpop.f32.mrf.mxu0
    %v1391 = vadd.f32 %v1316, %v1390
    %v1392 = vpop.f32.mrf.mxu0
    %1393 = vmatprep.mubr.f32.mxu0 0.0
    %1394 = vmatmul.mubr.f32.gmra.mxu0 %v1322
    %v1395 = vpop.f32.mrf.mxu0
    %v1396 = vadd.f32 %v1316, %v1395
    %v1397 = vpop.f32.mrf.mxu0
    %1398 = vdwg.mxu0
    %v1399 = vtanh.pop %v1391
    %v1400 = vtanh.pop %v1396
    %v1401 = vld [vmem:[%s9] sm:$0xff]
    %v1402 = vld [vmem:[%s9 + $0x8] sm:$0xff]
    %v1403 = vld [vmem:[%s9 + $0x10] sm:$0xff]
    %v1404 = vld [vmem:[%s9 + $0x18] sm:$0xff]
    %v1405 = vld [vmem:[%s9 + $0x20] sm:$0xff]
    %v1406 = vld [vmem:[%s9 + $0x28] sm:$0xff]
    %v1407 = vld [vmem:[%s9 + $0x30] sm:$0xff]
    %v1408 = vld [vmem:[%s9 + $0x38] sm:$0xff]
    %v1409 = vld [vmem:[%s9 + $0x40] sm:$0xff]
    %v1410 = vld [vmem:[%s9 + $0x48] sm:$0xff]
    %v1411 = vld [vmem:[%s9 + $0x50] sm:$0xff]
    %v1412 = vld [vmem:[%s9 + $0x58] sm:$0xff]
    %v1413 = vld [vmem:[%s9 + $0x60] sm:$0xff]
    %v1414 = vld [vmem:[%s9 + $0x68] sm:$0xff]
    %v1415 = vld [vmem:[%s9 + $0x70] sm:$0xff]
    %v1416 = vld [vmem:[%s9 + $0x78] sm:$0xff]
    %v1417 = vld [vmem:[%s9 + $0x80] sm:$0xff]
    %v1418 = vld [vmem:[%s9 + $0x88] sm:$0xff]
    %v1419 = vld [vmem:[%s9 + $0x90] sm:$0xff]
    %v1420 = vld [vmem:[%s9 + $0x98] sm:$0xff]
    %v1421 = vld [vmem:[%s9 + $0xa0] sm:$0xff]
    %v1422 = vld [vmem:[%s9 + $0xa8] sm:$0xff]
    %v1423 = vld [vmem:[%s9 + $0xb0] sm:$0xff]
    %v1424 = vld [vmem:[%s9 + $0xb8] sm:$0xff]
    %v1425 = vld [vmem:[%s9 + $0xc0] sm:$0xff]
    %v1426 = vld [vmem:[%s9 + $0xc8] sm:$0xff]
    %v1427 = vld [vmem:[%s9 + $0xd0] sm:$0xff]
    %v1428 = vld [vmem:[%s9 + $0xd8] sm:$0xff]
    %v1429 = vld [vmem:[%s9 + $0xe0] sm:$0xff]
    %v1430 = vld [vmem:[%s9 + $0xe8] sm:$0xff]
    %v1431 = vld [vmem:[%s9 + $0xf0] sm:$0xff]
    %v1432 = vld [vmem:[%s9 + $0xf8] sm:$0xff]
    %v1433 = vld [vmem:[%s9 + $0x100] sm:$0xff]
    %v1434 = vld [vmem:[%s9 + $0x108] sm:$0xff]
    %v1435 = vld [vmem:[%s9 + $0x110] sm:$0xff]
    %v1436 = vld [vmem:[%s9 + $0x118] sm:$0xff]
    %v1437 = vld [vmem:[%s9 + $0x120] sm:$0xff]
    %v1438 = vld [vmem:[%s9 + $0x128] sm:$0xff]
    %v1439 = vld [vmem:[%s9 + $0x130] sm:$0xff]
    %v1440 = vld [vmem:[%s9 + $0x138] sm:$0xff]
    %v1441 = vld [vmem:[%s9 + $0x140] sm:$0xff]
    %v1442 = vld [vmem:[%s9 + $0x148] sm:$0xff]
    %v1443 = vld [vmem:[%s9 + $0x150] sm:$0xff]
    %v1444 = vld [vmem:[%s9 + $0x158] sm:$0xff]
    %v1445 = vld [vmem:[%s9 + $0x160] sm:$0xff]
    %v1446 = vld [vmem:[%s9 + $0x168] sm:$0xff]
    %v1447 = vld [vmem:[%s9 + $0x170] sm:$0xff]
    %v1448 = vld [vmem:[%s9 + $0x178] sm:$0xff]
    %v1449 = vld [vmem:[%s9 + $0x180] sm:$0xff]
    %v1450 = vld [vmem:[%s9 + $0x188] sm:$0xff]
    %v1451 = vld [vmem:[%s9 + $0x190] sm:$0xff]
    %v1452 = vld [vmem:[%s9 + $0x198] sm:$0xff]
    %v1453 = vld [vmem:[%s9 + $0x1a0] sm:$0xff]
    %v1454 = vld [vmem:[%s9 + $0x1a8] sm:$0xff]
    %v1455 = vld [vmem:[%s9 + $0x1b0] sm:$0xff]
    %v1456 = vld [vmem:[%s9 + $0x1b8] sm:$0xff]
    %v1457 = vld [vmem:[%s9 + $0x1c0] sm:$0xff]
    %v1458 = vld [vmem:[%s9 + $0x1c8] sm:$0xff]
    %v1459 = vld [vmem:[%s9 + $0x1d0] sm:$0xff]
    %v1460 = vld [vmem:[%s9 + $0x1d8] sm:$0xff]
    %v1461 = vld [vmem:[%s9 + $0x1e0] sm:$0xff]
    %v1462 = vld [vmem:[%s9 + $0x1e8] sm:$0xff]
    %v1463 = vld [vmem:[%s9 + $0x1f0] sm:$0xff]
    %v1464 = vld [vmem:[%s9 + $0x1f8] sm:$0xff]
    %v1465 = vld [vmem:[%s9 + $0x200] sm:$0xff]
    %v1466 = vld [vmem:[%s9 + $0x208] sm:$0xff]
    %v1467 = vld [vmem:[%s9 + $0x210] sm:$0xff]
    %v1468 = vld [vmem:[%s9 + $0x218] sm:$0xff]
    %v1469 = vld [vmem:[%s9 + $0x220] sm:$0xff]
    %v1470 = vld [vmem:[%s9 + $0x228] sm:$0xff]
    %v1471 = vld [vmem:[%s9 + $0x230] sm:$0xff]
    %v1472 = vld [vmem:[%s9 + $0x238] sm:$0xff]
    %v1473 = vld [vmem:[%s10] sm:$0x3f]
    %v1475 = vlaneseq
    %v1476 = vshrl.u32 %v1475, 7
    %v1477 = vsub.s32 0, %v1476
    %v1478 = vrot.slane %v1473, %v1477
    %v1479 = vlaneseq
    %v1480 = vshrl.u32 %v1479, 7
    %v1481 = vsub.s32 1, %v1480
    %v1482 = vrot.slane %v1473, %v1481
    %v1483 = vlaneseq
    %v1484 = vshrl.u32 %v1483, 7
    %v1485 = vsub.s32 2, %v1484
    %v1486 = vrot.slane %v1473, %v1485
    %v1487 = vlaneseq
    %v1488 = vshrl.u32 %v1487, 7
    %v1489 = vsub.s32 3, %v1488
    %v1490 = vrot.slane %v1473, %v1489
    %v1491 = vlaneseq
    %v1492 = vshrl.u32 %v1491, 7
    %v1493 = vsub.s32 4, %v1492
    %v1494 = vrot.slane %v1473, %v1493
    %v1495 = vlaneseq
    %v1496 = vshrl.u32 %v1495, 7
    %v1497 = vsub.s32 5, %v1496
    %v1498 = vrot.slane %v1473, %v1497
    %vm1505 = vcmask 785408
    %v1507 = vsel %vm1505, %v1399, 0
    %v1510 = vsel %vm1505, %v1400, 0
    %1512 = vmatprep.subr.mxu0 0.0
    %1513 = vmatpush1.msra.mxu0 0.0
    %1514 = vmatprep.subr.mxu0 0.0
    %1515 = vmatpush1.msra.mxu0 0.0
    %1516 = vmatprep.subr.mxu0 0.0
    %1517 = vmatpush1.msra.mxu0 0.0
    %1518 = vmatprep.subr.mxu0 0.0
    %1519 = vmatpush1.msra.mxu0 0.0
    %1520 = vmatprep.subr.mxu0 %v1468
    %1521 = vmatpush1.msra.mxu0 %v1467
    %1522 = vmatprep.subr.mxu0 %v1462
    %1523 = vmatpush1.msra.mxu0 %v1461
    %1524 = vmatprep.subr.mxu0 %v1456
    %1525 = vmatpush1.msra.mxu0 %v1455
    %1526 = vmatprep.subr.mxu0 %v1450
    %1527 = vmatpush1.msra.mxu0 %v1449
    %1528 = vmatprep.subr.mxu0 %v1444
    %1529 = vmatpush1.msra.mxu0 %v1443
    %1530 = vmatprep.subr.mxu0 %v1438
    %1531 = vmatpush1.msra.mxu0 %v1437
    %1532 = vmatprep.subr.mxu0 %v1432
    %1533 = vmatpush1.msra.mxu0 %v1431
    %1534 = vmatprep.subr.mxu0 %v1426
    %1535 = vmatpush1.msra.mxu0 %v1425
    %1536 = vmatprep.subr.mxu0 %v1420
    %1537 = vmatpush1.msra.mxu0 %v1419
    %1538 = vmatprep.subr.mxu0 %v1414
    %1539 = vmatpush1.msra.mxu0 %v1413
    %1540 = vmatprep.subr.mxu0 %v1408
    %1541 = vmatpush1.msra.mxu0 %v1407
    %1542 = vmatprep.subr.mxu0 %v1402
    %1543 = vmatpush1.msra.mxu0 %v1401
    %1544 = vmatprep.subr.mxu0 0.0
    %1545 = vmatpush2.msra.mxu0 0.0
    %1546 = vmatprep.subr.mxu0 0.0
    %1547 = vmatpush2.msra.mxu0 0.0
    %1548 = vmatprep.subr.mxu0 0.0
    %1549 = vmatpush2.msra.mxu0 0.0
    %1550 = vmatprep.subr.mxu0 0.0
    %1551 = vmatpush2.msra.mxu0 0.0
    %1552 = vmatprep.subr.mxu0 0.0
    %1553 = vmatpush2.msra.mxu0 0.0
    %1554 = vmatprep.subr.mxu0 0.0
    %1555 = vmatpush2.msra.mxu0 0.0
    %1556 = vmatprep.subr.mxu0 0.0
    %1557 = vmatpush2.msra.mxu0 0.0
    %1558 = vmatprep.subr.mxu0 0.0
    %1559 = vmatpush2.msra.mxu0 0.0
    %1560 = vmatprep.subr.mxu0 0.0
    %1561 = vmatpush2.msra.mxu0 0.0
    %1562 = vmatprep.subr.mxu0 0.0
    %1563 = vmatpush2.msra.mxu0 0.0
    %1564 = vmatprep.subr.mxu0 0.0
    %1565 = vmatpush2.msra.mxu0 0.0
    %1566 = vmatprep.subr.mxu0 0.0
    %1567 = vmatpush2.msra.mxu0 0.0
    %1568 = vmatprep.subr.mxu0 0.0
    %1569 = vmatpush2.msra.mxu0 0.0
    %1570 = vmatprep.subr.mxu0 0.0
    %1571 = vmatpush2.msra.mxu0 0.0
    %1572 = vmatprep.subr.mxu0 0.0
    %1573 = vmatpush2.msra.mxu0 0.0
    %1574 = vmatprep.subr.mxu0 0.0
    %1575 = vmatpush2.msra.mxu0 0.0
    %1576 = vmatprep.mubr.f32.mxu0 0.0
    %1577 = vmatmul.mubr.f32.gmra.mxu0 %v1507
    %v1578 = vpop.f32.mrf.mxu0
    %v1579 = vadd.f32 %v1478, %v1578
    %v1580 = vpop.f32.mrf.mxu0
    %v1581 = vadd.f32 %v1482, %v1580
    %1582 = vmatprep.mubr.f32.mxu0 0.0
    %1583 = vmatmul.mubr.f32.gmra.mxu0 %v1510
    %v1584 = vpop.f32.mrf.mxu0
    %v1585 = vadd.f32 %v1478, %v1584
    %v1586 = vpop.f32.mrf.mxu0
    %v1587 = vadd.f32 %v1482, %v1586
    %1588 = vdwg.mxu0
    %1589 = vmatprep.subr.mxu0 0.0
    %1590 = vmatpush1.msra.mxu0 0.0
    %1591 = vmatprep.subr.mxu0 0.0
    %1592 = vmatpush1.msra.mxu0 0.0
    %1593 = vmatprep.subr.mxu0 0.0
    %1594 = vmatpush1.msra.mxu0 0.0
    %1595 = vmatprep.subr.mxu0 0.0
    %1596 = vmatpush1.msra.mxu0 0.0
    %1597 = vmatprep.subr.mxu0 %v1470
    %1598 = vmatpush1.msra.mxu0 %v1469
    %1599 = vmatprep.subr.mxu0 %v1464
    %1600 = vmatpush1.msra.mxu0 %v1463
    %1601 = vmatprep.subr.mxu0 %v1458
    %1602 = vmatpush1.msra.mxu0 %v1457
    %1603 = vmatprep.subr.mxu0 %v1452
    %1604 = vmatpush1.msra.mxu0 %v1451
    %1605 = vmatprep.subr.mxu0 %v1446
    %1606 = vmatpush1.msra.mxu0 %v1445
    %1607 = vmatprep.subr.mxu0 %v1440
    %1608 = vmatpush1.msra.mxu0 %v1439
    %1609 = vmatprep.subr.mxu0 %v1434
    %1610 = vmatpush1.msra.mxu0 %v1433
    %1611 = vmatprep.subr.mxu0 %v1428
    %1612 = vmatpush1.msra.mxu0 %v1427
    %1613 = vmatprep.subr.mxu0 %v1422
    %1614 = vmatpush1.msra.mxu0 %v1421
    %1615 = vmatprep.subr.mxu0 %v1416
    %1616 = vmatpush1.msra.mxu0 %v1415
    %1617 = vmatprep.subr.mxu0 %v1410
    %1618 = vmatpush1.msra.mxu0 %v1409
    %1619 = vmatprep.subr.mxu0 %v1404
    %1620 = vmatpush1.msra.mxu0 %v1403
    %1621 = vmatprep.subr.mxu0 0.0
    %1622 = vmatpush2.msra.mxu0 0.0
    %1623 = vmatprep.subr.mxu0 0.0
    %1624 = vmatpush2.msra.mxu0 0.0
    %1625 = vmatprep.subr.mxu0 0.0
    %1626 = vmatpush2.msra.mxu0 0.0
    %1627 = vmatprep.subr.mxu0 0.0
    %1628 = vmatpush2.msra.mxu0 0.0
    %1629 = vmatprep.subr.mxu0 0.0
    %1630 = vmatpush2.msra.mxu0 0.0
    %1631 = vmatprep.subr.mxu0 0.0
    %1632 = vmatpush2.msra.mxu0 0.0
    %1633 = vmatprep.subr.mxu0 0.0
    %1634 = vmatpush2.msra.mxu0 0.0
    %1635 = vmatprep.subr.mxu0 0.0
    %1636 = vmatpush2.msra.mxu0 0.0
    %1637 = vmatprep.subr.mxu0 0.0
    %1638 = vmatpush2.msra.mxu0 0.0
    %1639 = vmatprep.subr.mxu0 0.0
    %1640 = vmatpush2.msra.mxu0 0.0
    %1641 = vmatprep.subr.mxu0 0.0
    %1642 = vmatpush2.msra.mxu0 0.0
    %1643 = vmatprep.subr.mxu0 0.0
    %1644 = vmatpush2.msra.mxu0 0.0
    %1645 = vmatprep.subr.mxu0 0.0
    %1646 = vmatpush2.msra.mxu0 0.0
    %1647 = vmatprep.subr.mxu0 0.0
    %1648 = vmatpush2.msra.mxu0 0.0
    %1649 = vmatprep.subr.mxu0 0.0
    %1650 = vmatpush2.msra.mxu0 0.0
    %1651 = vmatprep.subr.mxu0 0.0
    %1652 = vmatpush2.msra.mxu0 0.0
    %1653 = vmatprep.mubr.f32.mxu0 0.0
    %1654 = vmatmul.mubr.f32.gmra.mxu0 %v1507
    %v1655 = vpop.f32.mrf.mxu0
    %v1656 = vadd.f32 %v1486, %v1655
    %v1657 = vpop.f32.mrf.mxu0
    %v1658 = vadd.f32 %v1490, %v1657
    %1659 = vmatprep.mubr.f32.mxu0 0.0
    %1660 = vmatmul.mubr.f32.gmra.mxu0 %v1510
    %v1661 = vpop.f32.mrf.mxu0
    %v1662 = vadd.f32 %v1486, %v1661
    %v1663 = vpop.f32.mrf.mxu0
    %v1664 = vadd.f32 %v1490, %v1663
    %1665 = vdwg.mxu0
    %1666 = vmatprep.subr.mxu0 0.0
    %1667 = vmatpush1.msra.mxu0 0.0
    %1668 = vmatprep.subr.mxu0 0.0
    %1669 = vmatpush1.msra.mxu0 0.0
    %1670 = vmatprep.subr.mxu0 0.0
    %1671 = vmatpush1.msra.mxu0 0.0
    %1672 = vmatprep.subr.mxu0 0.0
    %1673 = vmatpush1.msra.mxu0 0.0
    %1674 = vmatprep.subr.mxu0 %v1472
    %1675 = vmatpush1.msra.mxu0 %v1471
    %1676 = vmatprep.subr.mxu0 %v1466
    %1677 = vmatpush1.msra.mxu0 %v1465
    %1678 = vmatprep.subr.mxu0 %v1460
    %1679 = vmatpush1.msra.mxu0 %v1459
    %1680 = vmatprep.subr.mxu0 %v1454
    %1681 = vmatpush1.msra.mxu0 %v1453
    %1682 = vmatprep.subr.mxu0 %v1448
    %1683 = vmatpush1.msra.mxu0 %v1447
    %1684 = vmatprep.subr.mxu0 %v1442
    %1685 = vmatpush1.msra.mxu0 %v1441
    %1686 = vmatprep.subr.mxu0 %v1436
    %1687 = vmatpush1.msra.mxu0 %v1435
    %1688 = vmatprep.subr.mxu0 %v1430
    %1689 = vmatpush1.msra.mxu0 %v1429
    %1690 = vmatprep.subr.mxu0 %v1424
    %1691 = vmatpush1.msra.mxu0 %v1423
    %1692 = vmatprep.subr.mxu0 %v1418
    %1693 = vmatpush1.msra.mxu0 %v1417
    %1694 = vmatprep.subr.mxu0 %v1412
    %1695 = vmatpush1.msra.mxu0 %v1411
    %1696 = vmatprep.subr.mxu0 %v1406
    %1697 = vmatpush1.msra.mxu0 %v1405
    %1698 = vmatprep.subr.mxu0 0.0
    %1699 = vmatpush2.msra.mxu0 0.0
    %1700 = vmatprep.subr.mxu0 0.0
    %1701 = vmatpush2.msra.mxu0 0.0
    %1702 = vmatprep.subr.mxu0 0.0
    %1703 = vmatpush2.msra.mxu0 0.0
    %1704 = vmatprep.subr.mxu0 0.0
    %1705 = vmatpush2.msra.mxu0 0.0
    %1706 = vmatprep.subr.mxu0 0.0
    %1707 = vmatpush2.msra.mxu0 0.0
    %1708 = vmatprep.subr.mxu0 0.0
    %1709 = vmatpush2.msra.mxu0 0.0
    %1710 = vmatprep.subr.mxu0 0.0
    %1711 = vmatpush2.msra.mxu0 0.0
    %1712 = vmatprep.subr.mxu0 0.0
    %1713 = vmatpush2.msra.mxu0 0.0
    %1714 = vmatprep.subr.mxu0 0.0
    %1715 = vmatpush2.msra.mxu0 0.0
    %1716 = vmatprep.subr.mxu0 0.0
    %1717 = vmatpush2.msra.mxu0 0.0
    %1718 = vmatprep.subr.mxu0 0.0
    %1719 = vmatpush2.msra.mxu0 0.0
    %1720 = vmatprep.subr.mxu0 0.0
    %1721 = vmatpush2.msra.mxu0 0.0
    %1722 = vmatprep.subr.mxu0 0.0
    %1723 = vmatpush2.msra.mxu0 0.0
    %1724 = vmatprep.subr.mxu0 0.0
    %1725 = vmatpush2.msra.mxu0 0.0
    %1726 = vmatprep.subr.mxu0 0.0
    %1727 = vmatpush2.msra.mxu0 0.0
    %1728 = vmatprep.subr.mxu0 0.0
    %1729 = vmatpush2.msra.mxu0 0.0
    %1730 = vmatprep.mubr.f32.mxu0 0.0
    %1731 = vmatmul.mubr.f32.gmra.mxu0 %v1507
    %v1732 = vpop.f32.mrf.mxu0
    %v1733 = vadd.f32 %v1494, %v1732
    %v1734 = vpop.f32.mrf.mxu0
    %v1735 = vadd.f32 %v1498, %v1734
    %1736 = vmatprep.mubr.f32.mxu0 0.0
    %1737 = vmatmul.mubr.f32.gmra.mxu0 %v1510
    %v1738 = vpop.f32.mrf.mxu0
    %v1739 = vadd.f32 %v1494, %v1738
    %v1740 = vpop.f32.mrf.mxu0
    %v1741 = vadd.f32 %v1498, %v1740
    %1742 = vdwg.mxu0
    %v1743 = vtanh.pop %v1579
    %v1744 = vtanh.pop %v1581
    %v1745 = vtanh.pop %v1656
    %v1746 = vtanh.pop %v1658
    %v1747 = vtanh.pop %v1733
    %v1748 = vtanh.pop %v1735
    %v1749 = vtanh.pop %v1585
    %v1750 = vtanh.pop %v1587
    %v1751 = vtanh.pop %v1662
    %v1752 = vtanh.pop %v1664
    %v1753 = vtanh.pop %v1739
    %v1754 = vtanh.pop %v1741
    %v1755 = vld [vmem:[%s11] sm:$0xff]
    %v1756 = vld [vmem:[%s11 + $0x8] sm:$0xff]
    %v1757 = vld [vmem:[%s11 + $0x10] sm:$0xff]
    %v1758 = vld [vmem:[%s11 + $0x18] sm:$0xff]
    %v1759 = vld [vmem:[%s11 + $0x20] sm:$0xff]
    %v1760 = vld [vmem:[%s11 + $0x28] sm:$0xff]
    %v1761 = vld [vmem:[%s11 + $0x30] sm:$0xff]
    %v1762 = vld [vmem:[%s11 + $0x38] sm:$0xff]
    %v1763 = vld [vmem:[%s11 + $0x40] sm:$0xff]
    %v1764 = vld [vmem:[%s11 + $0x48] sm:$0xff]
    %v1765 = vld [vmem:[%s11 + $0x50] sm:$0xff]
    %v1766 = vld [vmem:[%s11 + $0x58] sm:$0xff]
    %v1767 = vld [vmem:[%s11 + $0x60] sm:$0xff]
    %v1768 = vld [vmem:[%s11 + $0x68] sm:$0xff]
    %v1769 = vld [vmem:[%s11 + $0x70] sm:$0xff]
    %v1770 = vld [vmem:[%s11 + $0x78] sm:$0xff]
    %v1771 = vld [vmem:[%s11 + $0x80] sm:$0xff]
    %v1772 = vld [vmem:[%s11 + $0x88] sm:$0xff]
    %v1773 = vld [vmem:[%s11 + $0x90] sm:$0xff]
    %v1774 = vld [vmem:[%s11 + $0x98] sm:$0xff]
    %v1775 = vld [vmem:[%s11 + $0xa0] sm:$0xff]
    %v1776 = vld [vmem:[%s11 + $0xa8] sm:$0xff]
    %v1777 = vld [vmem:[%s11 + $0xb0] sm:$0xff]
    %v1778 = vld [vmem:[%s11 + $0xb8] sm:$0xff]
    %v1779 = vld [vmem:[%s11 + $0xc0] sm:$0xff]
    %v1780 = vld [vmem:[%s11 + $0xc8] sm:$0xff]
    %v1781 = vld [vmem:[%s11 + $0xd0] sm:$0xff]
    %v1782 = vld [vmem:[%s11 + $0xd8] sm:$0xff]
    %v1783 = vld [vmem:[%s11 + $0xe0] sm:$0xff]
    %v1784 = vld [vmem:[%s11 + $0xe8] sm:$0xff]
    %v1785 = vld [vmem:[%s11 + $0xf0] sm:$0xff]
    %v1786 = vld [vmem:[%s11 + $0xf8] sm:$0xff]
    %v1787 = vld [vmem:[%s11 + $0x100] sm:$0xff]
    %v1788 = vld [vmem:[%s11 + $0x108] sm:$0xff]
    %v1789 = vld [vmem:[%s11 + $0x110] sm:$0xff]
    %v1790 = vld [vmem:[%s11 + $0x118] sm:$0xff]
    %v1791 = vld [vmem:[%s11 + $0x120] sm:$0xff]
    %v1792 = vld [vmem:[%s11 + $0x128] sm:$0xff]
    %v1793 = vld [vmem:[%s11 + $0x130] sm:$0xff]
    %v1794 = vld [vmem:[%s11 + $0x138] sm:$0xff]
    %v1795 = vld [vmem:[%s11 + $0x140] sm:$0xff]
    %v1796 = vld [vmem:[%s11 + $0x148] sm:$0xff]
    %v1797 = vld [vmem:[%s11 + $0x150] sm:$0xff]
    %v1798 = vld [vmem:[%s11 + $0x158] sm:$0xff]
    %v1799 = vld [vmem:[%s11 + $0x160] sm:$0xff]
    %v1800 = vld [vmem:[%s11 + $0x168] sm:$0xff]
    %v1801 = vld [vmem:[%s11 + $0x170] sm:$0xff]
    %v1802 = vld [vmem:[%s11 + $0x178] sm:$0xff]
    %v1803 = vld [vmem:[%s11 + $0x180] sm:$0xff]
    %v1804 = vld [vmem:[%s11 + $0x188] sm:$0xff]
    %v1805 = vld [vmem:[%s11 + $0x190] sm:$0xff]
    %v1806 = vld [vmem:[%s11 + $0x198] sm:$0xff]
    %v1807 = vld [vmem:[%s11 + $0x1a0] sm:$0xff]
    %v1808 = vld [vmem:[%s11 + $0x1a8] sm:$0xff]
    %v1809 = vld [vmem:[%s11 + $0x1b0] sm:$0xff]
    %v1810 = vld [vmem:[%s11 + $0x1b8] sm:$0xff]
    %v1811 = vld [vmem:[%s11 + $0x1c0] sm:$0xff]
    %v1812 = vld [vmem:[%s11 + $0x1c8] sm:$0xff]
    %v1813 = vld [vmem:[%s11 + $0x1d0] sm:$0xff]
    %v1814 = vld [vmem:[%s11 + $0x1d8] sm:$0xff]
    %v1815 = vld [vmem:[%s11 + $0x1e0] sm:$0xff]
    %v1816 = vld [vmem:[%s11 + $0x1e8] sm:$0xff]
    %v1817 = vld [vmem:[%s11 + $0x1f0] sm:$0xff]
    %v1818 = vld [vmem:[%s11 + $0x1f8] sm:$0xff]
    %v1819 = vld [vmem:[%s11 + $0x200] sm:$0xff]
    %v1820 = vld [vmem:[%s11 + $0x208] sm:$0xff]
    %v1821 = vld [vmem:[%s11 + $0x210] sm:$0xff]
    %v1822 = vld [vmem:[%s11 + $0x218] sm:$0xff]
    %v1823 = vld [vmem:[%s11 + $0x220] sm:$0xff]
    %v1824 = vld [vmem:[%s11 + $0x228] sm:$0xff]
    %v1825 = vld [vmem:[%s11 + $0x230] sm:$0xff]
    %v1826 = vld [vmem:[%s11 + $0x238] sm:$0xff]
    %v1827 = vld [vmem:[%s11 + $0x240] sm:$0xff]
    %v1828 = vld [vmem:[%s11 + $0x248] sm:$0xff]
    %v1829 = vld [vmem:[%s11 + $0x250] sm:$0xff]
    %v1830 = vld [vmem:[%s11 + $0x258] sm:$0xff]
    %v1831 = vld [vmem:[%s11 + $0x260] sm:$0xff]
    %v1832 = vld [vmem:[%s11 + $0x268] sm:$0xff]
    %v1833 = vld [vmem:[%s11 + $0x270] sm:$0xff]
    %v1834 = vld [vmem:[%s11 + $0x278] sm:$0xff]
    %v1835 = vld [vmem:[%s11 + $0x280] sm:$0xff]
    %v1836 = vld [vmem:[%s11 + $0x288] sm:$0xff]
    %v1837 = vld [vmem:[%s11 + $0x290] sm:$0xff]
    %v1838 = vld [vmem:[%s11 + $0x298] sm:$0xff]
    %v1839 = vld [vmem:[%s11 + $0x2a0] sm:$0xff]
    %v1840 = vld [vmem:[%s11 + $0x2a8] sm:$0xff]
    %v1841 = vld [vmem:[%s11 + $0x2b0] sm:$0xff]
    %v1842 = vld [vmem:[%s11 + $0x2b8] sm:$0xff]
    %v1843 = vld [vmem:[%s11 + $0x2c0] sm:$0xff]
    %v1844 = vld [vmem:[%s11 + $0x2c8] sm:$0xff]
    %v1845 = vld [vmem:[%s11 + $0x2d0] sm:$0xff]
    %v1846 = vld [vmem:[%s11 + $0x2d8] sm:$0xff]
    %v1847 = vld [vmem:[%s11 + $0x2e0] sm:$0xff]
    %v1848 = vld [vmem:[%s11 + $0x2e8] sm:$0xff]
    %v1849 = vld [vmem:[%s11 + $0x2f0] sm:$0xff]
    %v1850 = vld [vmem:[%s11 + $0x2f8] sm:$0xff]
    %v1851 = vld [vmem:[%s12] sm:$0x1]
    %v1853 = vlaneseq
    %v1854 = vshrl.u32 %v1853, 7
    %v1855 = vsub.s32 0, %v1854
    %v1856 = vrot.slane %v1851, %v1855
    %1858 = vmatprep.subr.mxu0 0.0
    %1859 = vmatpush1.msra.mxu0 %v1770
    %1860 = vmatprep.subr.mxu0 0.0
    %1861 = vmatpush1.msra.mxu0 %v1769
    %1862 = vmatprep.subr.mxu0 0.0
    %1863 = vmatpush1.msra.mxu0 %v1768
    %1864 = vmatprep.subr.mxu0 0.0
    %1865 = vmatpush1.msra.mxu0 %v1767
    %1866 = vmatprep.subr.mxu0 0.0
    %1867 = vmatpush1.msra.mxu0 %v1766
    %1868 = vmatprep.subr.mxu0 0.0
    %1869 = vmatpush1.msra.mxu0 %v1765
    %1870 = vmatprep.subr.mxu0 0.0
    %1871 = vmatpush1.msra.mxu0 %v1764
    %1872 = vmatprep.subr.mxu0 0.0
    %1873 = vmatpush1.msra.mxu0 %v1763
    %1874 = vmatprep.subr.mxu0 0.0
    %1875 = vmatpush1.msra.mxu0 %v1762
    %1876 = vmatprep.subr.mxu0 0.0
    %1877 = vmatpush1.msra.mxu0 %v1761
    %1878 = vmatprep.subr.mxu0 0.0
    %1879 = vmatpush1.msra.mxu0 %v1760
    %1880 = vmatprep.subr.mxu0 0.0
    %1881 = vmatpush1.msra.mxu0 %v1759
    %1882 = vmatprep.subr.mxu0 0.0
    %1883 = vmatpush1.msra.mxu0 %v1758
    %1884 = vmatprep.subr.mxu0 0.0
    %1885 = vmatpush1.msra.mxu0 %v1757
    %1886 = vmatprep.subr.mxu0 0.0
    %1887 = vmatpush1.msra.mxu0 %v1756
    %1888 = vmatprep.subr.mxu0 0.0
    %1889 = vmatpush1.msra.mxu0 %v1755
    %1890 = vmatprep.subr.mxu0 0.0
    %1891 = vmatpush2.msra.mxu0 %v1786
    %1892 = vmatprep.subr.mxu0 0.0
    %1893 = vmatpush2.msra.mxu0 %v1785
    %1894 = vmatprep.subr.mxu0 0.0
    %1895 = vmatpush2.msra.mxu0 %v1784
    %1896 = vmatprep.subr.mxu0 0.0
    %1897 = vmatpush2.msra.mxu0 %v1783
    %1898 = vmatprep.subr.mxu0 0.0
    %1899 = vmatpush2.msra.mxu0 %v1782
    %1900 = vmatprep.subr.mxu0 0.0
    %1901 = vmatpush2.msra.mxu0 %v1781
    %1902 = vmatprep.subr.mxu0 0.0
    %1903 = vmatpush2.msra.mxu0 %v1780
    %1904 = vmatprep.subr.mxu0 0.0
    %1905 = vmatpush2.msra.mxu0 %v1779
    %1906 = vmatprep.subr.mxu0 0.0
    %1907 = vmatpush2.msra.mxu0 %v1778
    %1908 = vmatprep.subr.mxu0 0.0
    %1909 = vmatpush2.msra.mxu0 %v1777
    %1910 = vmatprep.subr.mxu0 0.0
    %1911 = vmatpush2.msra.mxu0 %v1776
    %1912 = vmatprep.subr.mxu0 0.0
    %1913 = vmatpush2.msra.mxu0 %v1775
    %1914 = vmatprep.subr.mxu0 0.0
    %1915 = vmatpush2.msra.mxu0 %v1774
    %1916 = vmatprep.subr.mxu0 0.0
    %1917 = vmatpush2.msra.mxu0 %v1773
    %1918 = vmatprep.subr.mxu0 0.0
    %1919 = vmatpush2.msra.mxu0 %v1772
    %1920 = vmatprep.subr.mxu0 0.0
    %1921 = vmatpush2.msra.mxu0 %v1771
    %1922 = vmatprep.mubr.f32.mxu0 %v1744
    %1923 = vmatmul.mubr.f32.gmra.mxu0 %v1743
    %v1924 = vpop.f32.mrf.mxu0
    %v1925 = vadd.f32 %v1856, %v1924
    %v1926 = vpop.f32.mrf.mxu0
    %1927 = vmatprep.mubr.f32.mxu0 %v1750
    %1928 = vmatmul.mubr.f32.gmra.mxu0 %v1749
    %v1929 = vpop.f32.mrf.mxu0
    %v1930 = vadd.f32 %v1856, %v1929
    %v1931 = vpop.f32.mrf.mxu0
    %1932 = vdwg.mxu0
    %1933 = vmatprep.subr.mxu0 0.0
    %1934 = vmatpush1.msra.mxu0 %v1802
    %1935 = vmatprep.subr.mxu0 0.0
    %1936 = vmatpush1.msra.mxu0 %v1801
    %1937 = vmatprep.subr.mxu0 0.0
    %1938 = vmatpush1.msra.mxu0 %v1800
    %1939 = vmatprep.subr.mxu0 0.0
    %1940 = vmatpush1.msra.mxu0 %v1799
    %1941 = vmatprep.subr.mxu0 0.0
    %1942 = vmatpush1.msra.mxu0 %v1798
    %1943 = vmatprep.subr.mxu0 0.0
    %1944 = vmatpush1.msra.mxu0 %v1797
    %1945 = vmatprep.subr.mxu0 0.0
    %1946 = vmatpush1.msra.mxu0 %v1796
    %1947 = vmatprep.subr.mxu0 0.0
    %1948 = vmatpush1.msra.mxu0 %v1795
    %1949 = vmatprep.subr.mxu0 0.0
    %1950 = vmatpush1.msra.mxu0 %v1794
    %1951 = vmatprep.subr.mxu0 0.0
    %1952 = vmatpush1.msra.mxu0 %v1793
    %1953 = vmatprep.subr.mxu0 0.0
    %1954 = vmatpush1.msra.mxu0 %v1792
    %1955 = vmatprep.subr.mxu0 0.0
    %1956 = vmatpush1.msra.mxu0 %v1791
    %1957 = vmatprep.subr.mxu0 0.0
    %1958 = vmatpush1.msra.mxu0 %v1790
    %1959 = vmatprep.subr.mxu0 0.0
    %1960 = vmatpush1.msra.mxu0 %v1789
    %1961 = vmatprep.subr.mxu0 0.0
    %1962 = vmatpush1.msra.mxu0 %v1788
    %1963 = vmatprep.subr.mxu0 0.0
    %1964 = vmatpush1.msra.mxu0 %v1787
    %1965 = vmatprep.subr.mxu0 0.0
    %1966 = vmatpush2.msra.mxu0 %v1818
    %1967 = vmatprep.subr.mxu0 0.0
    %1968 = vmatpush2.msra.mxu0 %v1817
    %1969 = vmatprep.subr.mxu0 0.0
    %1970 = vmatpush2.msra.mxu0 %v1816
    %1971 = vmatprep.subr.mxu0 0.0
    %1972 = vmatpush2.msra.mxu0 %v1815
    %1973 = vmatprep.subr.mxu0 0.0
    %1974 = vmatpush2.msra.mxu0 %v1814
    %1975 = vmatprep.subr.mxu0 0.0
    %1976 = vmatpush2.msra.mxu0 %v1813
    %1977 = vmatprep.subr.mxu0 0.0
    %1978 = vmatpush2.msra.mxu0 %v1812
    %1979 = vmatprep.subr.mxu0 0.0
    %1980 = vmatpush2.msra.mxu0 %v1811
    %1981 = vmatprep.subr.mxu0 0.0
    %1982 = vmatpush2.msra.mxu0 %v1810
    %1983 = vmatprep.subr.mxu0 0.0
    %1984 = vmatpush2.msra.mxu0 %v1809
    %1985 = vmatprep.subr.mxu0 0.0
    %1986 = vmatpush2.msra.mxu0 %v1808
    %1987 = vmatprep.subr.mxu0 0.0
    %1988 = vmatpush2.msra.mxu0 %v1807
    %1989 = vmatprep.subr.mxu0 0.0
    %1990 = vmatpush2.msra.mxu0 %v1806
    %1991 = vmatprep.subr.mxu0 0.0
    %1992 = vmatpush2.msra.mxu0 %v1805
    %1993 = vmatprep.subr.mxu0 0.0
    %1994 = vmatpush2.msra.mxu0 %v1804
    %1995 = vmatprep.subr.mxu0 0.0
    %1996 = vmatpush2.msra.mxu0 %v1803
    %1997 = vmatprep.mubr.f32.mxu0 %v1746
    %1998 = vmatmul.mubr.f32.gmra.mxu0 %v1745
    %v1999 = vpop.f32.mrf.mxu0
    %v2000 = vadd.f32 %v1925, %v1999
    %v2001 = vpop.f32.mrf.mxu0
    %2002 = vmatprep.mubr.f32.mxu0 %v1752
    %2003 = vmatmul.mubr.f32.gmra.mxu0 %v1751
    %v2004 = vpop.f32.mrf.mxu0
    %v2005 = vadd.f32 %v1930, %v2004
    %v2006 = vpop.f32.mrf.mxu0
    %2007 = vdwg.mxu0
    %2008 = vmatprep.subr.mxu0 0.0
    %2009 = vmatpush1.msra.mxu0 %v1834
    %2010 = vmatprep.subr.mxu0 0.0
    %2011 = vmatpush1.msra.mxu0 %v1833
    %2012 = vmatprep.subr.mxu0 0.0
    %2013 = vmatpush1.msra.mxu0 %v1832
    %2014 = vmatprep.subr.mxu0 0.0
    %2015 = vmatpush1.msra.mxu0 %v1831
    %2016 = vmatprep.subr.mxu0 0.0
    %2017 = vmatpush1.msra.mxu0 %v1830
    %2018 = vmatprep.subr.mxu0 0.0
    %2019 = vmatpush1.msra.mxu0 %v1829
    %2020 = vmatprep.subr.mxu0 0.0
    %2021 = vmatpush1.msra.mxu0 %v1828
    %2022 = vmatprep.subr.mxu0 0.0
    %2023 = vmatpush1.msra.mxu0 %v1827
    %2024 = vmatprep.subr.mxu0 0.0
    %2025 = vmatpush1.msra.mxu0 %v1826
    %2026 = vmatprep.subr.mxu0 0.0
    %2027 = vmatpush1.msra.mxu0 %v1825
    %2028 = vmatprep.subr.mxu0 0.0
    %2029 = vmatpush1.msra.mxu0 %v1824
    %2030 = vmatprep.subr.mxu0 0.0
    %2031 = vmatpush1.msra.mxu0 %v1823
    %2032 = vmatprep.subr.mxu0 0.0
    %2033 = vmatpush1.msra.mxu0 %v1822
    %2034 = vmatprep.subr.mxu0 0.0
    %2035 = vmatpush1.msra.mxu0 %v1821
    %2036 = vmatprep.subr.mxu0 0.0
    %2037 = vmatpush1.msra.mxu0 %v1820
    %2038 = vmatprep.subr.mxu0 0.0
    %2039 = vmatpush1.msra.mxu0 %v1819
    %2040 = vmatprep.subr.mxu0 0.0
    %2041 = vmatpush2.msra.mxu0 %v1850
    %2042 = vmatprep.subr.mxu0 0.0
    %2043 = vmatpush2.msra.mxu0 %v1849
    %2044 = vmatprep.subr.mxu0 0.0
    %2045 = vmatpush2.msra.mxu0 %v1848
    %2046 = vmatprep.subr.mxu0 0.0
    %2047 = vmatpush2.msra.mxu0 %v1847
    %2048 = vmatprep.subr.mxu0 0.0
    %2049 = vmatpush2.msra.mxu0 %v1846
    %2050 = vmatprep.subr.mxu0 0.0
    %2051 = vmatpush2.msra.mxu0 %v1845
    %2052 = vmatprep.subr.mxu0 0.0
    %2053 = vmatpush2.msra.mxu0 %v1844
    %2054 = vmatprep.subr.mxu0 0.0
    %2055 = vmatpush2.msra.mxu0 %v1843
    %2056 = vmatprep.subr.mxu0 0.0
    %2057 = vmatpush2.msra.mxu0 %v1842
    %2058 = vmatprep.subr.mxu0 0.0
    %2059 = vmatpush2.msra.mxu0 %v1841
    %2060 = vmatprep.subr.mxu0 0.0
    %2061 = vmatpush2.msra.mxu0 %v1840
    %2062 = vmatprep.subr.mxu0 0.0
    %2063 = vmatpush2.msra.mxu0 %v1839
    %2064 = vmatprep.subr.mxu0 0.0
    %2065 = vmatpush2.msra.mxu0 %v1838
    %2066 = vmatprep.subr.mxu0 0.0
    %2067 = vmatpush2.msra.mxu0 %v1837
    %2068 = vmatprep.subr.mxu0 0.0
    %2069 = vmatpush2.msra.mxu0 %v1836
    %2070 = vmatprep.subr.mxu0 0.0
    %2071 = vmatpush2.msra.mxu0 %v1835
    %2072 = vmatprep.mubr.f32.mxu0 %v1748
    %2073 = vmatmul.mubr.f32.gmra.mxu0 %v1747
    %v2074 = vpop.f32.mrf.mxu0
    %v2075 = vadd.f32 %v2000, %v2074
    %v2076 = vpop.f32.mrf.mxu0
    %2077 = vmatprep.mubr.f32.mxu0 %v1754
    %2078 = vmatmul.mubr.f32.gmra.mxu0 %v1753
    %v2079 = vpop.f32.mrf.mxu0
    %v2080 = vadd.f32 %v2005, %v2079
    %v2081 = vpop.f32.mrf.mxu0
    %2082 = vdwg.mxu0
    %v2083 = vld [vmem:[%s13] sm:$0xff]
    %v2084 = vld [vmem:[%s13 + $0x8] sm:$0xff]
    %v2085 = vld [vmem:[%s13 + $0x10] sm:$0xff]
    %v2086 = vld [vmem:[%s13 + $0x18] sm:$0xff]
    %v2087 = vld [vmem:[%s13 + $0x20] sm:$0xff]
    %v2088 = vld [vmem:[%s13 + $0x28] sm:$0xff]
    %v2089 = vld [vmem:[%s14] sm:$0x1]
    %v2091 = vlaneseq
    %v2092 = vshrl.u32 %v2091, 7
    %v2093 = vsub.s32 0, %v2092
    %v2094 = vrot.slane %v2089, %v2093
    %vm2096 = vcmask 392192
    %v2098 = vsel %vm2096, %v2075, 0
    %v2101 = vsel %vm2096, %v2080, 0
    %2103 = vmatprep.subr.mxu0 0.0
    %2104 = vmatpush1.msra.mxu0 0.0
    %2105 = vmatprep.subr.mxu0 0.0
    %2106 = vmatpush1.msra.mxu0 0.0
    %2107 = vmatprep.subr.mxu0 0.0
    %2108 = vmatpush1.msra.mxu0 0.0
    %2109 = vmatprep.subr.mxu0 0.0
    %2110 = vmatpush1.msra.mxu0 0.0
    %2111 = vmatprep.subr.mxu0 0.0
    %2112 = vmatpush1.msra.mxu0 0.0
    %2113 = vmatprep.subr.mxu0 0.0
    %2114 = vmatpush1.msra.mxu0 0.0
    %2115 = vmatprep.subr.mxu0 0.0
    %2116 = vmatpush1.msra.mxu0 0.0
    %2117 = vmatprep.subr.mxu0 0.0
    %2118 = vmatpush1.msra.mxu0 0.0
    %2119 = vmatprep.subr.mxu0 0.0
    %2120 = vmatpush1.msra.mxu0 0.0
    %2121 = vmatprep.subr.mxu0 0.0
    %2122 = vmatpush1.msra.mxu0 0.0
    %2123 = vmatprep.subr.mxu0 0.0
    %2124 = vmatpush1.msra.mxu0 %v2088
    %2125 = vmatprep.subr.mxu0 0.0
    %2126 = vmatpush1.msra.mxu0 %v2087
    %2127 = vmatprep.subr.mxu0 0.0
    %2128 = vmatpush1.msra.mxu0 %v2086
    %2129 = vmatprep.subr.mxu0 0.0
    %2130 = vmatpush1.msra.mxu0 %v2085
    %2131 = vmatprep.subr.mxu0 0.0
    %2132 = vmatpush1.msra.mxu0 %v2084
    %2133 = vmatprep.subr.mxu0 0.0
    %2134 = vmatpush1.msra.mxu0 %v2083
    %2135 = vmatprep.subr.mxu0 0.0
    %2136 = vmatpush2.msra.mxu0 0.0
    %2137 = vmatprep.subr.mxu0 0.0
    %2138 = vmatpush2.msra.mxu0 0.0
    %2139 = vmatprep.subr.mxu0 0.0
    %2140 = vmatpush2.msra.mxu0 0.0
    %2141 = vmatprep.subr.mxu0 0.0
    %2142 = vmatpush2.msra.mxu0 0.0
    %2143 = vmatprep.subr.mxu0 0.0
    %2144 = vmatpush2.msra.mxu0 0.0
    %2145 = vmatprep.subr.mxu0 0.0
    %2146 = vmatpush2.msra.mxu0 0.0
    %2147 = vmatprep.subr.mxu0 0.0
    %2148 = vmatpush2.msra.mxu0 0.0
    %2149 = vmatprep.subr.mxu0 0.0
    %2150 = vmatpush2.msra.mxu0 0.0
    %2151 = vmatprep.subr.mxu0 0.0
    %2152 = vmatpush2.msra.mxu0 0.0
    %2153 = vmatprep.subr.mxu0 0.0
    %2154 = vmatpush2.msra.mxu0 0.0
    %2155 = vmatprep.subr.mxu0 0.0
    %2156 = vmatpush2.msra.mxu0 0.0
    %2157 = vmatprep.subr.mxu0 0.0
    %2158 = vmatpush2.msra.mxu0 0.0
    %2159 = vmatprep.subr.mxu0 0.0
    %2160 = vmatpush2.msra.mxu0 0.0
    %2161 = vmatprep.subr.mxu0 0.0
    %2162 = vmatpush2.msra.mxu0 0.0
    %2163 = vmatprep.subr.mxu0 0.0
    %2164 = vmatpush2.msra.mxu0 0.0
    %2165 = vmatprep.subr.mxu0 0.0
    %2166 = vmatpush2.msra.mxu0 0.0
    %2167 = vmatprep.mubr.f32.mxu0 0.0
    %2168 = vmatmul.mubr.f32.gmra.mxu0 %v2098
    %v2169 = vpop.f32.mrf.mxu0
    %v2170 = vadd.f32 %v2094, %v2169
    %v2171 = vpop.f32.mrf.mxu0
    %2172 = vmatprep.mubr.f32.mxu0 0.0
    %2173 = vmatmul.mubr.f32.gmra.mxu0 %v2101
    %v2174 = vpop.f32.mrf.mxu0
    %v2175 = vadd.f32 %v2094, %v2174
    %v2176 = vpop.f32.mrf.mxu0
    %2177 = vdwg.mxu0
    %v2178 = vld [vmem:[%s15] sm:$0xff]
    %v2179 = vld [vmem:[%s15 + $0x8] sm:$0xff]
    %v2180 = vld [vmem:[%s15 + $0x10] sm:$0xff]
    %v2181 = vld [vmem:[%s15 + $0x18] sm:$0xff]
    %v2182 = vld [vmem:[%s15 + $0x20] sm:$0xff]
    %v2183 = vld [vmem:[%s15 + $0x28] sm:$0xff]
    %v2184 = vld [vmem:[%s16] sm:$0x1]
    %v2186 = vlaneseq
    %v2187 = vshrl.u32 %v2186, 7
    %v2188 = vsub.s32 0, %v2187
    %v2189 = vrot.slane %v2184, %v2188
    %2191 = vmatprep.subr.mxu0 0.0
    %2192 = vmatpush1.msra.mxu0 0.0
    %2193 = vmatprep.subr.mxu0 0.0
    %2194 = vmatpush1.msra.mxu0 0.0
    %2195 = vmatprep.subr.mxu0 0.0
    %2196 = vmatpush1.msra.mxu0 0.0
    %2197 = vmatprep.subr.mxu0 0.0
    %2198 = vmatpush1.msra.mxu0 0.0
    %2199 = vmatprep.subr.mxu0 0.0
    %2200 = vmatpush1.msra.mxu0 0.0
    %2201 = vmatprep.subr.mxu0 0.0
    %2202 = vmatpush1.msra.mxu0 0.0
    %2203 = vmatprep.subr.mxu0 0.0
    %2204 = vmatpush1.msra.mxu0 0.0
    %2205 = vmatprep.subr.mxu0 0.0
    %2206 = vmatpush1.msra.mxu0 0.0
    %2207 = vmatprep.subr.mxu0 0.0
    %2208 = vmatpush1.msra.mxu0 0.0
    %2209 = vmatprep.subr.mxu0 0.0
    %2210 = vmatpush1.msra.mxu0 0.0
    %2211 = vmatprep.subr.mxu0 0.0
    %2212 = vmatpush1.msra.mxu0 %v2183
    %2213 = vmatprep.subr.mxu0 0.0
    %2214 = vmatpush1.msra.mxu0 %v2182
    %2215 = vmatprep.subr.mxu0 0.0
    %2216 = vmatpush1.msra.mxu0 %v2181
    %2217 = vmatprep.subr.mxu0 0.0
    %2218 = vmatpush1.msra.mxu0 %v2180
    %2219 = vmatprep.subr.mxu0 0.0
    %2220 = vmatpush1.msra.mxu0 %v2179
    %2221 = vmatprep.subr.mxu0 0.0
    %2222 = vmatpush1.msra.mxu0 %v2178
    %2223 = vmatprep.subr.mxu0 0.0
    %2224 = vmatpush2.msra.mxu0 0.0
    %2225 = vmatprep.subr.mxu0 0.0
    %2226 = vmatpush2.msra.mxu0 0.0
    %2227 = vmatprep.subr.mxu0 0.0
    %2228 = vmatpush2.msra.mxu0 0.0
    %2229 = vmatprep.subr.mxu0 0.0
    %2230 = vmatpush2.msra.mxu0 0.0
    %2231 = vmatprep.subr.mxu0 0.0
    %2232 = vmatpush2.msra.mxu0 0.0
    %2233 = vmatprep.subr.mxu0 0.0
    %2234 = vmatpush2.msra.mxu0 0.0
    %2235 = vmatprep.subr.mxu0 0.0
    %2236 = vmatpush2.msra.mxu0 0.0
    %2237 = vmatprep.subr.mxu0 0.0
    %2238 = vmatpush2.msra.mxu0 0.0
    %2239 = vmatprep.subr.mxu0 0.0
    %2240 = vmatpush2.msra.mxu0 0.0
    %2241 = vmatprep.subr.mxu0 0.0
    %2242 = vmatpush2.msra.mxu0 0.0
    %2243 = vmatprep.subr.mxu0 0.0
    %2244 = vmatpush2.msra.mxu0 0.0
    %2245 = vmatprep.subr.mxu0 0.0
    %2246 = vmatpush2.msra.mxu0 0.0
    %2247 = vmatprep.subr.mxu0 0.0
    %2248 = vmatpush2.msra.mxu0 0.0
    %2249 = vmatprep.subr.mxu0 0.0
    %2250 = vmatpush2.msra.mxu0 0.0
    %2251 = vmatprep.subr.mxu0 0.0
    %2252 = vmatpush2.msra.mxu0 0.0
    %2253 = vmatprep.subr.mxu0 0.0
    %2254 = vmatpush2.msra.mxu0 0.0
    %2255 = vmatprep.mubr.f32.mxu0 0.0
    %2256 = vmatmul.mubr.f32.gmra.mxu0 %v2098
    %v2257 = vpop.f32.mrf.mxu0
    %v2258 = vadd.f32 %v2189, %v2257
    %v2259 = vpop.f32.mrf.mxu0
    %2260 = vmatprep.mubr.f32.mxu0 0.0
    %2261 = vmatmul.mubr.f32.gmra.mxu0 %v2101
    %v2262 = vpop.f32.mrf.mxu0
    %v2263 = vadd.f32 %v2189, %v2262
    %v2264 = vpop.f32.mrf.mxu0
    %2265 = vdwg.mxu0
    %v2266 = vld [vmem:[%s17] sm:$0xff]
    %v2267 = vld [vmem:[%s17 + $0x8] sm:$0xff]
    %v2268 = vld [vmem:[%s17 + $0x10] sm:$0xff]
    %v2269 = vld [vmem:[%s17 + $0x18] sm:$0xff]
    %v2270 = vld [vmem:[%s17 + $0x20] sm:$0xff]
    %v2271 = vld [vmem:[%s17 + $0x28] sm:$0xff]
    %v2272 = vld [vmem:[%s18] sm:$0x1]
    %v2274 = vlaneseq
    %v2275 = vshrl.u32 %v2274, 7
    %v2276 = vsub.s32 0, %v2275
    %v2277 = vrot.slane %v2272, %v2276
    %2279 = vmatprep.subr.mxu0 0.0
    %2280 = vmatpush1.msra.mxu0 0.0
    %2281 = vmatprep.subr.mxu0 0.0
    %2282 = vmatpush1.msra.mxu0 0.0
    %2283 = vmatprep.subr.mxu0 0.0
    %2284 = vmatpush1.msra.mxu0 0.0
    %2285 = vmatprep.subr.mxu0 0.0
    %2286 = vmatpush1.msra.mxu0 0.0
    %2287 = vmatprep.subr.mxu0 0.0
    %2288 = vmatpush1.msra.mxu0 0.0
    %2289 = vmatprep.subr.mxu0 0.0
    %2290 = vmatpush1.msra.mxu0 0.0
    %2291 = vmatprep.subr.mxu0 0.0
    %2292 = vmatpush1.msra.mxu0 0.0
    %2293 = vmatprep.subr.mxu0 0.0
    %2294 = vmatpush1.msra.mxu0 0.0
    %2295 = vmatprep.subr.mxu0 0.0
    %2296 = vmatpush1.msra.mxu0 0.0
    %2297 = vmatprep.subr.mxu0 0.0
    %2298 = vmatpush1.msra.mxu0 0.0
    %2299 = vmatprep.subr.mxu0 0.0
    %2300 = vmatpush1.msra.mxu0 %v2271
    %2301 = vmatprep.subr.mxu0 0.0
    %2302 = vmatpush1.msra.mxu0 %v2270
    %2303 = vmatprep.subr.mxu0 0.0
    %2304 = vmatpush1.msra.mxu0 %v2269
    %2305 = vmatprep.subr.mxu0 0.0
    %2306 = vmatpush1.msra.mxu0 %v2268
    %2307 = vmatprep.subr.mxu0 0.0
    %2308 = vmatpush1.msra.mxu0 %v2267
    %2309 = vmatprep.subr.mxu0 0.0
    %2310 = vmatpush1.msra.mxu0 %v2266
    %2311 = vmatprep.subr.mxu0 0.0
    %2312 = vmatpush2.msra.mxu0 0.0
    %2313 = vmatprep.subr.mxu0 0.0
    %2314 = vmatpush2.msra.mxu0 0.0
    %2315 = vmatprep.subr.mxu0 0.0
    %2316 = vmatpush2.msra.mxu0 0.0
    %2317 = vmatprep.subr.mxu0 0.0
    %2318 = vmatpush2.msra.mxu0 0.0
    %2319 = vmatprep.subr.mxu0 0.0
    %2320 = vmatpush2.msra.mxu0 0.0
    %2321 = vmatprep.subr.mxu0 0.0
    %2322 = vmatpush2.msra.mxu0 0.0
    %2323 = vmatprep.subr.mxu0 0.0
    %2324 = vmatpush2.msra.mxu0 0.0
    %2325 = vmatprep.subr.mxu0 0.0
    %2326 = vmatpush2.msra.mxu0 0.0
    %2327 = vmatprep.subr.mxu0 0.0
    %2328 = vmatpush2.msra.mxu0 0.0
    %2329 = vmatprep.subr.mxu0 0.0
    %2330 = vmatpush2.msra.mxu0 0.0
    %2331 = vmatprep.subr.mxu0 0.0
    %2332 = vmatpush2.msra.mxu0 0.0
    %2333 = vmatprep.subr.mxu0 0.0
    %2334 = vmatpush2.msra.mxu0 0.0
    %2335 = vmatprep.subr.mxu0 0.0
    %2336 = vmatpush2.msra.mxu0 0.0
    %2337 = vmatprep.subr.mxu0 0.0
    %2338 = vmatpush2.msra.mxu0 0.0
    %2339 = vmatprep.subr.mxu0 0.0
    %2340 = vmatpush2.msra.mxu0 0.0
    %2341 = vmatprep.subr.mxu0 0.0
    %2342 = vmatpush2.msra.mxu0 0.0
    %2343 = vmatprep.mubr.f32.mxu0 0.0
    %2344 = vmatmul.mubr.f32.gmra.mxu0 %v2098
    %v2345 = vpop.f32.mrf.mxu0
    %v2346 = vadd.f32 %v2277, %v2345
    %v2347 = vpop.f32.mrf.mxu0
    %2348 = vmatprep.mubr.f32.mxu0 0.0
    %2349 = vmatmul.mubr.f32.gmra.mxu0 %v2101
    %v2350 = vpop.f32.mrf.mxu0
    %v2351 = vadd.f32 %v2277, %v2350
    %v2352 = vpop.f32.mrf.mxu0
    %2353 = vdwg.mxu0
    %v2354 = vmul.f32 %v2170, %v2258
    %v2355 = vmul.f32 %v2175, %v2263
    %vm2356 = vcmask 130048
    %v2357 = vsel %vm2356, %v2354, 0.0
    %2358 = vadd.xlane.f32.xlu0 %v2357
    %v2359 = vpop.xlane.xlu0 %2358
    %v2360 = vsel %vm2356, %v2355, 0.0
    %2361 = vadd.xlane.f32.xlu0 %v2360
    %v2362 = vpop.xlane.xlu0 %2361
    %2365 = vrot.lane.b32.xlu0 %v2258, 112
    %v2366 = vpop.permute.xlu0 %2365
    %2367 = vrot.lane.b32.xlu0 %v2263, 112
    %v2368 = vpop.permute.xlu0 %2367
    %v2371 = vmul.f32 %v2170, %v2366
    %v2372 = vmul.f32 %v2175, %v2368
    %v2373 = vsel %vm2356, %v2371, 0.0
    %2374 = vadd.xlane.f32.xlu0 %v2373
    %v2375 = vpop.xlane.xlu0 %2374
    %v2376 = vsel %vm2356, %v2372, 0.0
    %2377 = vadd.xlane.f32.xlu0 %v2376
    %v2378 = vpop.xlane.xlu0 %2377
    %2379 = vrot.lane.b32.xlu0 %v2258, 96
    %v2380 = vpop.permute.xlu0 %2379
    %2381 = vrot.lane.b32.xlu0 %v2263, 96
    %v2382 = vpop.permute.xlu0 %2381
    %v2385 = vmul.f32 %v2170, %v2380
    %v2386 = vmul.f32 %v2175, %v2382
    %v2387 = vsel %vm2356, %v2385, 0.0
    %2388 = vadd.xlane.f32.xlu0 %v2387
    %v2389 = vpop.xlane.xlu0 %2388
    %v2390 = vsel %vm2356, %v2386, 0.0
    %2391 = vadd.xlane.f32.xlu0 %v2390
    %v2392 = vpop.xlane.xlu0 %2391
    %vm2393 = vcmask 7168
    %v2394 = vsel %vm2393, %v2359, %v2375
    %v2395 = vsel %vm2393, %v2362, %v2378
    %vm2396 = vcmask 15360
    %v2397 = vsel %vm2396, %v2394, %v2389
    %v2398 = vsel %vm2396, %v2395, %v2392
    %v2399 = vmul.f32 %v2397, 0.25
    %v2400 = vmul.f32 %v2398, 0.25
    %vm2401 = vcmask 23552
    %v2402 = vsel %vm2401, %v2399, -inf
    %2403 = vmax.xlane.f32.xlu0 %v2402
    %v2404 = vpop.xlane.xlu0 %2403
    %v2405 = vsel %vm2401, %v2400, -inf
    %2406 = vmax.xlane.f32.xlu0 %v2405
    %v2407 = vpop.xlane.xlu0 %2406
    %v2408 = vsub.f32 %v2399, %v2404
    %v2409 = vsub.f32 %v2400, %v2407
    %v2410 = vmul.f32 %v2408, 1.442695
    %v2411 = vpow.pop %v2410
    %v2412 = vmul.f32 %v2409, 1.442695
    %v2413 = vpow.pop %v2412
    %v2414 = vsel %vm2401, %v2411, 0.0
    %2415 = vadd.xlane.f32.xlu0 %v2414
    %v2416 = vpop.xlane.xlu0 %2415
    %v2417 = vsel %vm2401, %v2413, 0.0
    %2418 = vadd.xlane.f32.xlu0 %v2417
    %v2419 = vpop.xlane.xlu0 %2418
    %v2420 = vrcp.pop %v2416
    %v2421 = vrcp.pop %v2419
    %v2422 = vmul.f32 %v2411, %v2420
    %v2423 = vmul.f32 %v2413, %v2421
    %2425 = vset.pattern.permute.xlu0 0
    %2426 = vperm.xlu0 %2425, %v2422
    %v2427 = vpop.permute.xlu0 %2426
    %2430 = vset.pattern.permute.xlu0 0
    %2431 = vperm.xlu0 %2430, %v2423
    %v2432 = vpop.permute.xlu0 %2431
    %v2434 = vmul.f32 %v2427, %v2346
    %v2435 = vmul.f32 %v2432, %v2351
    %2436 = vset.pattern.permute.xlu0 1
    %2437 = vperm.xlu0 %2436, %v2422
    %v2438 = vpop.permute.xlu0 %2437
    %2440 = vset.pattern.permute.xlu0 1
    %2441 = vperm.xlu0 %2440, %v2423
    %v2442 = vpop.permute.xlu0 %2441
    %v2444 = vmul.f32 %v2438, %v2346
    %v2445 = vmul.f32 %v2442, %v2351
    %2448 = vrot.lane.b32.xlu0 %v2444, 112
    %v2449 = vpop.permute.xlu0 %2448
    %2450 = vrot.lane.b32.xlu0 %v2445, 112
    %v2451 = vpop.permute.xlu0 %2450
    %v2454 = vadd.f32 %v2434, %v2449
    %v2455 = vadd.f32 %v2435, %v2451
    %2456 = vset.pattern.permute.xlu0 2
    %2457 = vperm.xlu0 %2456, %v2422
    %v2458 = vpop.permute.xlu0 %2457
    %2460 = vset.pattern.permute.xlu0 2
    %2461 = vperm.xlu0 %2460, %v2423
    %v2462 = vpop.permute.xlu0 %2461
    %v2464 = vmul.f32 %v2458, %v2346
    %v2465 = vmul.f32 %v2462, %v2351
    %2468 = vrot.lane.b32.xlu0 %v2464, 96
    %v2469 = vpop.permute.xlu0 %2468
    %2470 = vrot.lane.b32.xlu0 %v2465, 96
    %v2471 = vpop.permute.xlu0 %2470
    %v2474 = vadd.f32 %v2454, %v2469
    %v2475 = vadd.f32 %v2455, %v2471
    %2476 = vrot.lane.b32.xlu0 %v2258, 16
    %v2477 = vpop.permute.xlu0 %2476
    %2478 = vrot.lane.b32.xlu0 %v2263, 16
    %v2479 = vpop.permute.xlu0 %2478
    %v2482 = vmul.f32 %v2170, %v2477
    %v2483 = vmul.f32 %v2175, %v2479
    %2486 = vrot.lane.b32.xlu0 %v2482, 112
    %v2487 = vpop.permute.xlu0 %2486
    %2488 = vrot.lane.b32.xlu0 %v2483, 112
    %v2489 = vpop.permute.xlu0 %2488
    %v2492 = vsel %vm2356, %v2487, 0.0
    %2493 = vadd.xlane.f32.xlu0 %v2492
    %v2494 = vpop.xlane.xlu0 %2493
    %v2495 = vsel %vm2356, %v2489, 0.0
    %2496 = vadd.xlane.f32.xlu0 %v2495
    %v2497 = vpop.xlane.xlu0 %2496
    %2500 = vrot.lane.b32.xlu0 %v2354, 112
    %v2501 = vpop.permute.xlu0 %2500
    %2502 = vrot.lane.b32.xlu0 %v2355, 112
    %v2503 = vpop.permute.xlu0 %2502
    %v2506 = vsel %vm2356, %v2501, 0.0
    %2507 = vadd.xlane.f32.xlu0 %v2506
    %v2508 = vpop.xlane.xlu0 %2507
    %v2509 = vsel %vm2356, %v2503, 0.0
    %2510 = vadd.xlane.f32.xlu0 %v2509
    %v2511 = vpop.xlane.xlu0 %2510
    %2514 = vrot.lane.b32.xlu0 %v2371, 112
    %v2515 = vpop.permute.xlu0 %2514
    %2516 = vrot.lane.b32.xlu0 %v2372, 112
    %v2517 = vpop.permute.xlu0 %2516
    %v2520 = vsel %vm2356, %v2515, 0.0
    %2521 = vadd.xlane.f32.xlu0 %v2520
    %v2522 = vpop.xlane.xlu0 %2521
    %v2523 = vsel %vm2356, %v2517, 0.0
    %2524 = vadd.xlane.f32.xlu0 %v2523
    %v2525 = vpop.xlane.xlu0 %2524
    %v2526 = vsel %vm2393, %v2494, %v2508
    %v2527 = vsel %vm2393, %v2497, %v2511
    %v2528 = vsel %vm2396, %v2526, %v2522
    %v2529 = vsel %vm2396, %v2527, %v2525
    %v2530 = vmul.f32 %v2528, 0.25
    %v2531 = vmul.f32 %v2529, 0.25
    %v2532 = vsel %vm2401, %v2530, -inf
    %2533 = vmax.xlane.f32.xlu0 %v2532
    %v2534 = vpop.xlane.xlu0 %2533
    %v2535 = vsel %vm2401, %v2531, -inf
    %2536 = vmax.xlane.f32.xlu0 %v2535
    %v2537 = vpop.xlane.xlu0 %2536
    %v2538 = vsub.f32 %v2530, %v2534
    %v2539 = vsub.f32 %v2531, %v2537
    %v2540 = vmul.f32 %v2538, 1.442695
    %v2541 = vpow.pop %v2540
    %v2542 = vmul.f32 %v2539, 1.442695
    %v2543 = vpow.pop %v2542
    %v2544 = vsel %vm2401, %v2541, 0.0
    %2545 = vadd.xlane.f32.xlu0 %v2544
    %v2546 = vpop.xlane.xlu0 %2545
    %v2547 = vsel %vm2401, %v2543, 0.0
    %2548 = vadd.xlane.f32.xlu0 %v2547
    %v2549 = vpop.xlane.xlu0 %2548
    %v2550 = vrcp.pop %v2546
    %v2551 = vrcp.pop %v2549
    %v2552 = vmul.f32 %v2541, %v2550
    %v2553 = vmul.f32 %v2543, %v2551
    %2555 = vset.pattern.permute.xlu0 0
    %2556 = vperm.xlu0 %2555, %v2552
    %v2557 = vpop.permute.xlu0 %2556
    %2560 = vset.pattern.permute.xlu0 0
    %2561 = vperm.xlu0 %2560, %v2553
    %v2562 = vpop.permute.xlu0 %2561
    %v2564 = vmul.f32 %v2557, %v2346
    %v2565 = vmul.f32 %v2562, %v2351
    %2566 = vset.pattern.permute.xlu0 1
    %2567 = vperm.xlu0 %2566, %v2552
    %v2568 = vpop.permute.xlu0 %2567
    %2570 = vset.pattern.permute.xlu0 1
    %2571 = vperm.xlu0 %2570, %v2553
    %v2572 = vpop.permute.xlu0 %2571
    %v2574 = vmul.f32 %v2568, %v2346
    %v2575 = vmul.f32 %v2572, %v2351
    %2578 = vrot.lane.b32.xlu0 %v2574, 112
    %v2579 = vpop.permute.xlu0 %2578
    %2580 = vrot.lane.b32.xlu0 %v2575, 112
    %v2581 = vpop.permute.xlu0 %2580
    %v2584 = vadd.f32 %v2564, %v2579
    %v2585 = vadd.f32 %v2565, %v2581
    %2586 = vset.pattern.permute.xlu0 2
    %2587 = vperm.xlu0 %2586, %v2552
    %v2588 = vpop.permute.xlu0 %2587
    %2590 = vset.pattern.permute.xlu0 2
    %2591 = vperm.xlu0 %2590, %v2553
    %v2592 = vpop.permute.xlu0 %2591
    %v2594 = vmul.f32 %v2588, %v2346
    %v2595 = vmul.f32 %v2592, %v2351
    %2598 = vrot.lane.b32.xlu0 %v2594, 96
    %v2599 = vpop.permute.xlu0 %2598
    %2600 = vrot.lane.b32.xlu0 %v2595, 96
    %v2601 = vpop.permute.xlu0 %2600
    %v2604 = vadd.f32 %v2584, %v2599
    %v2605 = vadd.f32 %v2585, %v2601
    %2606 = vrot.lane.b32.xlu0 %v2258, 32
    %v2607 = vpop.permute.xlu0 %2606
    %2608 = vrot.lane.b32.xlu0 %v2263, 32
    %v2609 = vpop.permute.xlu0 %2608
    %v2612 = vmul.f32 %v2170, %v2607
    %v2613 = vmul.f32 %v2175, %v2609
    %2616 = vrot.lane.b32.xlu0 %v2612, 96
    %v2617 = vpop.permute.xlu0 %2616
    %2618 = vrot.lane.b32.xlu0 %v2613, 96
    %v2619 = vpop.permute.xlu0 %2618
    %v2622 = vsel %vm2356, %v2617, 0.0
    %2623 = vadd.xlane.f32.xlu0 %v2622
    %v2624 = vpop.xlane.xlu0 %2623
    %v2625 = vsel %vm2356, %v2619, 0.0
    %2626 = vadd.xlane.f32.xlu0 %v2625
    %v2627 = vpop.xlane.xlu0 %2626
    %2628 = vrot.lane.b32.xlu0 %v2482, 96
    %v2629 = vpop.permute.xlu0 %2628
    %2630 = vrot.lane.b32.xlu0 %v2483, 96
    %v2631 = vpop.permute.xlu0 %2630
    %v2634 = vsel %vm2356, %v2629, 0.0
    %2635 = vadd.xlane.f32.xlu0 %v2634
    %v2636 = vpop.xlane.xlu0 %2635
    %v2637 = vsel %vm2356, %v2631, 0.0
    %2638 = vadd.xlane.f32.xlu0 %v2637
    %v2639 = vpop.xlane.xlu0 %2638
    %2640 = vrot.lane.b32.xlu0 %v2354, 96
    %v2641 = vpop.permute.xlu0 %2640
    %2642 = vrot.lane.b32.xlu0 %v2355, 96
    %v2643 = vpop.permute.xlu0 %2642
    %v2646 = vsel %vm2356, %v2641, 0.0
    %2647 = vadd.xlane.f32.xlu0 %v2646
    %v2648 = vpop.xlane.xlu0 %2647
    %v2649 = vsel %vm2356, %v2643, 0.0
    %2650 = vadd.xlane.f32.xlu0 %v2649
    %v2651 = vpop.xlane.xlu0 %2650
    %v2652 = vsel %vm2393, %v2624, %v2636
    %v2653 = vsel %vm2393, %v2627, %v2639
    %v2654 = vsel %vm2396, %v2652, %v2648
    %v2655 = vsel %vm2396, %v2653, %v2651
    %v2656 = vmul.f32 %v2654, 0.25
    %v2657 = vmul.f32 %v2655, 0.25
    %v2658 = vsel %vm2401, %v2656, -inf
    %2659 = vmax.xlane.f32.xlu0 %v2658
    %v2660 = vpop.xlane.xlu0 %2659
    %v2661 = vsel %vm2401, %v2657, -inf
    %2662 = vmax.xlane.f32.xlu0 %v2661
    %v2663 = vpop.xlane.xlu0 %2662
    %v2664 = vsub.f32 %v2656, %v2660
    %v2665 = vsub.f32 %v2657, %v2663
    %v2666 = vmul.f32 %v2664, 1.442695
    %v2667 = vpow.pop %v2666
    %v2668 = vmul.f32 %v2665, 1.442695
    %v2669 = vpow.pop %v2668
    %v2670 = vsel %vm2401, %v2667, 0.0
    %2671 = vadd.xlane.f32.xlu0 %v2670
    %v2672 = vpop.xlane.xlu0 %2671
    %v2673 = vsel %vm2401, %v2669, 0.0
    %2674 = vadd.xlane.f32.xlu0 %v2673
    %v2675 = vpop.xlane.xlu0 %2674
    %v2676 = vrcp.pop %v2672
    %v2677 = vrcp.pop %v2675
    %v2678 = vmul.f32 %v2667, %v2676
    %v2679 = vmul.f32 %v2669, %v2677
    %2681 = vset.pattern.permute.xlu0 0
    %2682 = vperm.xlu0 %2681, %v2678
    %v2683 = vpop.permute.xlu0 %2682
    %2686 = vset.pattern.permute.xlu0 0
    %2687 = vperm.xlu0 %2686, %v2679
    %v2688 = vpop.permute.xlu0 %2687
    %v2690 = vmul.f32 %v2683, %v2346
    %v2691 = vmul.f32 %v2688, %v2351
    %2692 = vset.pattern.permute.xlu0 1
    %2693 = vperm.xlu0 %2692, %v2678
    %v2694 = vpop.permute.xlu0 %2693
    %2696 = vset.pattern.permute.xlu0 1
    %2697 = vperm.xlu0 %2696, %v2679
    %v2698 = vpop.permute.xlu0 %2697
    %v2700 = vmul.f32 %v2694, %v2346
    %v2701 = vmul.f32 %v2698, %v2351
    %2704 = vrot.lane.b32.xlu0 %v2700, 112
    %v2705 = vpop.permute.xlu0 %2704
    %2706 = vrot.lane.b32.xlu0 %v2701, 112
    %v2707 = vpop.permute.xlu0 %2706
    %v2710 = vadd.f32 %v2690, %v2705
    %v2711 = vadd.f32 %v2691, %v2707
    %2712 = vset.pattern.permute.xlu0 2
    %2713 = vperm.xlu0 %2712, %v2678
    %v2714 = vpop.permute.xlu0 %2713
    %2716 = vset.pattern.permute.xlu0 2
    %2717 = vperm.xlu0 %2716, %v2679
    %v2718 = vpop.permute.xlu0 %2717
    %v2720 = vmul.f32 %v2714, %v2346
    %v2721 = vmul.f32 %v2718, %v2351
    %2724 = vrot.lane.b32.xlu0 %v2720, 96
    %v2725 = vpop.permute.xlu0 %2724
    %2726 = vrot.lane.b32.xlu0 %v2721, 96
    %v2727 = vpop.permute.xlu0 %2726
    %v2730 = vadd.f32 %v2710, %v2725
    %v2731 = vadd.f32 %v2711, %v2727
    %2734 = vrot.lane.b32.xlu0 %v2604, 16
    %v2735 = vpop.permute.xlu0 %2734
    %2736 = vrot.lane.b32.xlu0 %v2605, 16
    %v2737 = vpop.permute.xlu0 %2736
    %2742 = vrot.lane.b32.xlu0 %v2730, 32
    %v2743 = vpop.permute.xlu0 %2742
    %2744 = vrot.lane.b32.xlu0 %v2731, 32
    %v2745 = vpop.permute.xlu0 %2744
    %v2748 = vsel %vm2356, %v2474, %v2735
    %v2749 = vsel %vm2356, %v2475, %v2737
    %v2750 = vsel %vm253, %v2748, %v2743
    %v2751 = vsel %vm253, %v2749, %v2745
    %v2752 = vld [vmem:[#allocation3 + $0x10] sm:$0xff]
    %v2753 = vld [vmem:[#allocation3 + $0x18] sm:$0xff]
    %s2754 = scalar_lea.vmem %s7, 32
    %v2755 = vld [vmem:[%s2754] sm:$0xff]
    %v2756 = vld [vmem:[%s2754 + $0x8] sm:$0xff]
    %v2757 = vld [vmem:[%s2754 + $0x10] sm:$0xff]
    %v2758 = vld [vmem:[%s2754 + $0x18] sm:$0xff]
    %s2759 = scalar_lea.vmem %s8, 1
    %v2760 = vld [vmem:[%s2759] sm:$0x1]
    %v2762 = vlaneseq
    %v2763 = vshrl.u32 %v2762, 7
    %v2764 = vsub.s32 0, %v2763
    %v2765 = vrot.slane %v2760, %v2764
    %v2768 = vsel %vm253, %v2752, 0
    %v2771 = vsel %vm253, %v2753, 0
    %2773 = vmatprep.subr.mxu0 0.0
    %2774 = vmatpush1.msra.mxu0 0.0
    %2775 = vmatprep.subr.mxu0 0.0
    %2776 = vmatpush1.msra.mxu0 0.0
    %2777 = vmatprep.subr.mxu0 0.0
    %2778 = vmatpush1.msra.mxu0 0.0
    %2779 = vmatprep.subr.mxu0 0.0
    %2780 = vmatpush1.msra.mxu0 0.0
    %2781 = vmatprep.subr.mxu0 0.0
    %2782 = vmatpush1.msra.mxu0 0.0
    %2783 = vmatprep.subr.mxu0 0.0
    %2784 = vmatpush1.msra.mxu0 0.0
    %2785 = vmatprep.subr.mxu0 0.0
    %2786 = vmatpush1.msra.mxu0 0.0
    %2787 = vmatprep.subr.mxu0 0.0
    %2788 = vmatpush1.msra.mxu0 0.0
    %2789 = vmatprep.subr.mxu0 0.0
    %2790 = vmatpush1.msra.mxu0 0.0
    %2791 = vmatprep.subr.mxu0 0.0
    %2792 = vmatpush1.msra.mxu0 0.0
    %2793 = vmatprep.subr.mxu0 0.0
    %2794 = vmatpush1.msra.mxu0 0.0
    %2795 = vmatprep.subr.mxu0 0.0
    %2796 = vmatpush1.msra.mxu0 0.0
    %2797 = vmatprep.subr.mxu0 0.0
    %2798 = vmatpush1.msra.mxu0 %v2758
    %2799 = vmatprep.subr.mxu0 0.0
    %2800 = vmatpush1.msra.mxu0 %v2757
    %2801 = vmatprep.subr.mxu0 0.0
    %2802 = vmatpush1.msra.mxu0 %v2756
    %2803 = vmatprep.subr.mxu0 0.0
    %2804 = vmatpush1.msra.mxu0 %v2755
    %2805 = vmatprep.subr.mxu0 0.0
    %2806 = vmatpush2.msra.mxu0 0.0
    %2807 = vmatprep.subr.mxu0 0.0
    %2808 = vmatpush2.msra.mxu0 0.0
    %2809 = vmatprep.subr.mxu0 0.0
    %2810 = vmatpush2.msra.mxu0 0.0
    %2811 = vmatprep.subr.mxu0 0.0
    %2812 = vmatpush2.msra.mxu0 0.0
    %2813 = vmatprep.subr.mxu0 0.0
    %2814 = vmatpush2.msra.mxu0 0.0
    %2815 = vmatprep.subr.mxu0 0.0
    %2816 = vmatpush2.msra.mxu0 0.0
    %2817 = vmatprep.subr.mxu0 0.0
    %2818 = vmatpush2.msra.mxu0 0.0
    %2819 = vmatprep.subr.mxu0 0.0
    %2820 = vmatpush2.msra.mxu0 0.0
    %2821 = vmatprep.subr.mxu0 0.0
    %2822 = vmatpush2.msra.mxu0 0.0
    %2823 = vmatprep.subr.mxu0 0.0
    %2824 = vmatpush2.msra.mxu0 0.0
    %2825 = vmatprep.subr.mxu0 0.0
    %2826 = vmatpush2.msra.mxu0 0.0
    %2827 = vmatprep.subr.mxu0 0.0
    %2828 = vmatpush2.msra.mxu0 0.0
    %2829 = vmatprep.subr.mxu0 0.0
    %2830 = vmatpush2.msra.mxu0 0.0
    %2831 = vmatprep.subr.mxu0 0.0
    %2832 = vmatpush2.msra.mxu0 0.0
    %2833 = vmatprep.subr.mxu0 0.0
    %2834 = vmatpush2.msra.mxu0 0.0
    %2835 = vmatprep.subr.mxu0 0.0
    %2836 = vmatpush2.msra.mxu0 0.0
    %2837 = vmatprep.mubr.f32.mxu0 0.0
    %2838 = vmatmul.mubr.f32.gmra.mxu0 %v2768
    %v2839 = vpop.f32.mrf.mxu0
    %v2840 = vadd.f32 %v2765, %v2839
    %v2841 = vpop.f32.mrf.mxu0
    %2842 = vmatprep.mubr.f32.mxu0 0.0
    %2843 = vmatmul.mubr.f32.gmra.mxu0 %v2771
    %v2844 = vpop.f32.mrf.mxu0
    %v2845 = vadd.f32 %v2765, %v2844
    %v2846 = vpop.f32.mrf.mxu0
    %2847 = vdwg.mxu0
    %v2848 = vtanh.pop %v2840
    %v2849 = vtanh.pop %v2845
    %s2850 = scalar_lea.vmem %s9, 576
    %v2851 = vld [vmem:[%s2850] sm:$0xff]
    %v2852 = vld [vmem:[%s2850 + $0x8] sm:$0xff]
    %v2853 = vld [vmem:[%s2850 + $0x10] sm:$0xff]
    %v2854 = vld [vmem:[%s2850 + $0x18] sm:$0xff]
    %v2855 = vld [vmem:[%s2850 + $0x20] sm:$0xff]
    %v2856 = vld [vmem:[%s2850 + $0x28] sm:$0xff]
    %v2857 = vld [vmem:[%s2850 + $0x30] sm:$0xff]
    %v2858 = vld [vmem:[%s2850 + $0x38] sm:$0xff]
    %v2859 = vld [vmem:[%s2850 + $0x40] sm:$0xff]
    %v2860 = vld [vmem:[%s2850 + $0x48] sm:$0xff]
    %v2861 = vld [vmem:[%s2850 + $0x50] sm:$0xff]
    %v2862 = vld [vmem:[%s2850 + $0x58] sm:$0xff]
    %v2863 = vld [vmem:[%s2850 + $0x60] sm:$0xff]
    %v2864 = vld [vmem:[%s2850 + $0x68] sm:$0xff]
    %v2865 = vld [vmem:[%s2850 + $0x70] sm:$0xff]
    %v2866 = vld [vmem:[%s2850 + $0x78] sm:$0xff]
    %v2867 = vld [vmem:[%s2850 + $0x80] sm:$0xff]
    %v2868 = vld [vmem:[%s2850 + $0x88] sm:$0xff]
    %v2869 = vld [vmem:[%s2850 + $0x90] sm:$0xff]
    %v2870 = vld [vmem:[%s2850 + $0x98] sm:$0xff]
    %v2871 = vld [vmem:[%s2850 + $0xa0] sm:$0xff]
    %v2872 = vld [vmem:[%s2850 + $0xa8] sm:$0xff]
    %v2873 = vld [vmem:[%s2850 + $0xb0] sm:$0xff]
    %v2874 = vld [vmem:[%s2850 + $0xb8] sm:$0xff]
    %v2875 = vld [vmem:[%s2850 + $0xc0] sm:$0xff]
    %v2876 = vld [vmem:[%s2850 + $0xc8] sm:$0xff]
    %v2877 = vld [vmem:[%s2850 + $0xd0] sm:$0xff]
    %v2878 = vld [vmem:[%s2850 + $0xd8] sm:$0xff]
    %v2879 = vld [vmem:[%s2850 + $0xe0] sm:$0xff]
    %v2880 = vld [vmem:[%s2850 + $0xe8] sm:$0xff]
    %v2881 = vld [vmem:[%s2850 + $0xf0] sm:$0xff]
    %v2882 = vld [vmem:[%s2850 + $0xf8] sm:$0xff]
    %v2883 = vld [vmem:[%s2850 + $0x100] sm:$0xff]
    %v2884 = vld [vmem:[%s2850 + $0x108] sm:$0xff]
    %v2885 = vld [vmem:[%s2850 + $0x110] sm:$0xff]
    %v2886 = vld [vmem:[%s2850 + $0x118] sm:$0xff]
    %v2887 = vld [vmem:[%s2850 + $0x120] sm:$0xff]
    %v2888 = vld [vmem:[%s2850 + $0x128] sm:$0xff]
    %v2889 = vld [vmem:[%s2850 + $0x130] sm:$0xff]
    %v2890 = vld [vmem:[%s2850 + $0x138] sm:$0xff]
    %v2891 = vld [vmem:[%s2850 + $0x140] sm:$0xff]
    %v2892 = vld [vmem:[%s2850 + $0x148] sm:$0xff]
    %v2893 = vld [vmem:[%s2850 + $0x150] sm:$0xff]
    %v2894 = vld [vmem:[%s2850 + $0x158] sm:$0xff]
    %v2895 = vld [vmem:[%s2850 + $0x160] sm:$0xff]
    %v2896 = vld [vmem:[%s2850 + $0x168] sm:$0xff]
    %v2897 = vld [vmem:[%s2850 + $0x170] sm:$0xff]
    %v2898 = vld [vmem:[%s2850 + $0x178] sm:$0xff]
    %v2899 = vld [vmem:[%s2850 + $0x180] sm:$0xff]
    %v2900 = vld [vmem:[%s2850 + $0x188] sm:$0xff]
    %v2901 = vld [vmem:[%s2850 + $0x190] sm:$0xff]
    %v2902 = vld [vmem:[%s2850 + $0x198] sm:$0xff]
    %v2903 = vld [vmem:[%s2850 + $0x1a0] sm:$0xff]
    %v2904 = vld [vmem:[%s2850 + $0x1a8] sm:$0xff]
    %v2905 = vld [vmem:[%s2850 + $0x1b0] sm:$0xff]
    %v2906 = vld [vmem:[%s2850 + $0x1b8] sm:$0xff]
    %v2907 = vld [vmem:[%s2850 + $0x1c0] sm:$0xff]
    %v2908 = vld [vmem:[%s2850 + $0x1c8] sm:$0xff]
    %v2909 = vld [vmem:[%s2850 + $0x1d0] sm:$0xff]
    %v2910 = vld [vmem:[%s2850 + $0x1d8] sm:$0xff]
    %v2911 = vld [vmem:[%s2850 + $0x1e0] sm:$0xff]
    %v2912 = vld [vmem:[%s2850 + $0x1e8] sm:$0xff]
    %v2913 = vld [vmem:[%s2850 + $0x1f0] sm:$0xff]
    %v2914 = vld [vmem:[%s2850 + $0x1f8] sm:$0xff]
    %v2915 = vld [vmem:[%s2850 + $0x200] sm:$0xff]
    %v2916 = vld [vmem:[%s2850 + $0x208] sm:$0xff]
    %v2917 = vld [vmem:[%s2850 + $0x210] sm:$0xff]
    %v2918 = vld [vmem:[%s2850 + $0x218] sm:$0xff]
    %v2919 = vld [vmem:[%s2850 + $0x220] sm:$0xff]
    %v2920 = vld [vmem:[%s2850 + $0x228] sm:$0xff]
    %v2921 = vld [vmem:[%s2850 + $0x230] sm:$0xff]
    %v2922 = vld [vmem:[%s2850 + $0x238] sm:$0xff]
    %s2923 = scalar_lea.vmem %s10, 6
    %v2924 = vld [vmem:[%s2923] sm:$0x3f]
    %v2926 = vlaneseq
    %v2927 = vshrl.u32 %v2926, 7
    %v2928 = vsub.s32 0, %v2927
    %v2929 = vrot.slane %v2924, %v2928
    %v2930 = vlaneseq
    %v2931 = vshrl.u32 %v2930, 7
    %v2932 = vsub.s32 1, %v2931
    %v2933 = vrot.slane %v2924, %v2932
    %v2934 = vlaneseq
    %v2935 = vshrl.u32 %v2934, 7
    %v2936 = vsub.s32 2, %v2935
    %v2937 = vrot.slane %v2924, %v2936
    %v2938 = vlaneseq
    %v2939 = vshrl.u32 %v2938, 7
    %v2940 = vsub.s32 3, %v2939
    %v2941 = vrot.slane %v2924, %v2940
    %v2942 = vlaneseq
    %v2943 = vshrl.u32 %v2942, 7
    %v2944 = vsub.s32 4, %v2943
    %v2945 = vrot.slane %v2924, %v2944
    %v2946 = vlaneseq
    %v2947 = vshrl.u32 %v2946, 7
    %v2948 = vsub.s32 5, %v2947
    %v2949 = vrot.slane %v2924, %v2948
    %v2957 = vsel %vm1505, %v2848, 0
    %v2960 = vsel %vm1505, %v2849, 0
    %2962 = vmatprep.subr.mxu0 0.0
    %2963 = vmatpush1.msra.mxu0 0.0
    %2964 = vmatprep.subr.mxu0 0.0
    %2965 = vmatpush1.msra.mxu0 0.0
    %2966 = vmatprep.subr.mxu0 0.0
    %2967 = vmatpush1.msra.mxu0 0.0
    %2968 = vmatprep.subr.mxu0 0.0
    %2969 = vmatpush1.msra.mxu0 0.0
    %2970 = vmatprep.subr.mxu0 %v2918
    %2971 = vmatpush1.msra.mxu0 %v2917
    %2972 = vmatprep.subr.mxu0 %v2912
    %2973 = vmatpush1.msra.mxu0 %v2911
    %2974 = vmatprep.subr.mxu0 %v2906
    %2975 = vmatpush1.msra.mxu0 %v2905
    %2976 = vmatprep.subr.mxu0 %v2900
    %2977 = vmatpush1.msra.mxu0 %v2899
    %2978 = vmatprep.subr.mxu0 %v2894
    %2979 = vmatpush1.msra.mxu0 %v2893
    %2980 = vmatprep.subr.mxu0 %v2888
    %2981 = vmatpush1.msra.mxu0 %v2887
    %2982 = vmatprep.subr.mxu0 %v2882
    %2983 = vmatpush1.msra.mxu0 %v2881
    %2984 = vmatprep.subr.mxu0 %v2876
    %2985 = vmatpush1.msra.mxu0 %v2875
    %2986 = vmatprep.subr.mxu0 %v2870
    %2987 = vmatpush1.msra.mxu0 %v2869
    %2988 = vmatprep.subr.mxu0 %v2864
    %2989 = vmatpush1.msra.mxu0 %v2863
    %2990 = vmatprep.subr.mxu0 %v2858
    %2991 = vmatpush1.msra.mxu0 %v2857
    %2992 = vmatprep.subr.mxu0 %v2852
    %2993 = vmatpush1.msra.mxu0 %v2851
    %2994 = vmatprep.subr.mxu0 0.0
    %2995 = vmatpush2.msra.mxu0 0.0
    %2996 = vmatprep.subr.mxu0 0.0
    %2997 = vmatpush2.msra.mxu0 0.0
    %2998 = vmatprep.subr.mxu0 0.0
    %2999 = vmatpush2.msra.mxu0 0.0
    %3000 = vmatprep.subr.mxu0 0.0
    %3001 = vmatpush2.msra.mxu0 0.0
    %3002 = vmatprep.subr.mxu0 0.0
    %3003 = vmatpush2.msra.mxu0 0.0
    %3004 = vmatprep.subr.mxu0 0.0
    %3005 = vmatpush2.msra.mxu0 0.0
    %3006 = vmatprep.subr.mxu0 0.0
    %3007 = vmatpush2.msra.mxu0 0.0
    %3008 = vmatprep.subr.mxu0 0.0
    %3009 = vmatpush2.msra.mxu0 0.0
    %3010 = vmatprep.subr.mxu0 0.0
    %3011 = vmatpush2.msra.mxu0 0.0
    %3012 = vmatprep.subr.mxu0 0.0
    %3013 = vmatpush2.msra.mxu0 0.0
    %3014 = vmatprep.subr.mxu0 0.0
    %3015 = vmatpush2.msra.mxu0 0.0
    %3016 = vmatprep.subr.mxu0 0.0
    %3017 = vmatpush2.msra.mxu0 0.0
    %3018 = vmatprep.subr.mxu0 0.0
    %3019 = vmatpush2.msra.mxu0 0.0
    %3020 = vmatprep.subr.mxu0 0.0
    %3021 = vmatpush2.msra.mxu0 0.0
    %3022 = vmatprep.subr.mxu0 0.0
    %3023 = vmatpush2.msra.mxu0 0.0
    %3024 = vmatprep.subr.mxu0 0.0
    %3025 = vmatpush2.msra.mxu0 0.0
    %3026 = vmatprep.mubr.f32.mxu0 0.0
    %3027 = vmatmul.mubr.f32.gmra.mxu0 %v2957
    %v3028 = vpop.f32.mrf.mxu0
    %v3029 = vadd.f32 %v2929, %v3028
    %v3030 = vpop.f32.mrf.mxu0
    %v3031 = vadd.f32 %v2933, %v3030
    %3032 = vmatprep.mubr.f32.mxu0 0.0
    %3033 = vmatmul.mubr.f32.gmra.mxu0 %v2960
    %v3034 = vpop.f32.mrf.mxu0
    %v3035 = vadd.f32 %v2929, %v3034
    %v3036 = vpop.f32.mrf.mxu0
    %v3037 = vadd.f32 %v2933, %v3036
    %3038 = vdwg.mxu0
    %3039 = vmatprep.subr.mxu0 0.0
    %3040 = vmatpush1.msra.mxu0 0.0
    %3041 = vmatprep.subr.mxu0 0.0
    %3042 = vmatpush1.msra.mxu0 0.0
    %3043 = vmatprep.subr.mxu0 0.0
    %3044 = vmatpush1.msra.mxu0 0.0
    %3045 = vmatprep.subr.mxu0 0.0
    %3046 = vmatpush1.msra.mxu0 0.0
    %3047 = vmatprep.subr.mxu0 %v2920
    %3048 = vmatpush1.msra.mxu0 %v2919
    %3049 = vmatprep.subr.mxu0 %v2914
    %3050 = vmatpush1.msra.mxu0 %v2913
    %3051 = vmatprep.subr.mxu0 %v2908
    %3052 = vmatpush1.msra.mxu0 %v2907
    %3053 = vmatprep.subr.mxu0 %v2902
    %3054 = vmatpush1.msra.mxu0 %v2901
    %3055 = vmatprep.subr.mxu0 %v2896
    %3056 = vmatpush1.msra.mxu0 %v2895
    %3057 = vmatprep.subr.mxu0 %v2890
    %3058 = vmatpush1.msra.mxu0 %v2889
    %3059 = vmatprep.subr.mxu0 %v2884
    %3060 = vmatpush1.msra.mxu0 %v2883
    %3061 = vmatprep.subr.mxu0 %v2878
    %3062 = vmatpush1.msra.mxu0 %v2877
    %3063 = vmatprep.subr.mxu0 %v2872
    %3064 = vmatpush1.msra.mxu0 %v2871
    %3065 = vmatprep.subr.mxu0 %v2866
    %3066 = vmatpush1.msra.mxu0 %v2865
    %3067 = vmatprep.subr.mxu0 %v2860
    %3068 = vmatpush1.msra.mxu0 %v2859
    %3069 = vmatprep.subr.mxu0 %v2854
    %3070 = vmatpush1.msra.mxu0 %v2853
    %3071 = vmatprep.subr.mxu0 0.0
    %3072 = vmatpush2.msra.mxu0 0.0
    %3073 = vmatprep.subr.mxu0 0.0
    %3074 = vmatpush2.msra.mxu0 0.0
    %3075 = vmatprep.subr.mxu0 0.0
    %3076 = vmatpush2.msra.mxu0 0.0
    %3077 = vmatprep.subr.mxu0 0.0
    %3078 = vmatpush2.msra.mxu0 0.0
    %3079 = vmatprep.subr.mxu0 0.0
    %3080 = vmatpush2.msra.mxu0 0.0
    %3081 = vmatprep.subr.mxu0 0.0
    %3082 = vmatpush2.msra.mxu0 0.0
    %3083 = vmatprep.subr.mxu0 0.0
    %3084 = vmatpush2.msra.mxu0 0.0
    %3085 = vmatprep.subr.mxu0 0.0
    %3086 = vmatpush2.msra.mxu0 0.0
    %3087 = vmatprep.subr.mxu0 0.0
    %3088 = vmatpush2.msra.mxu0 0.0
    %3089 = vmatprep.subr.mxu0 0.0
    %3090 = vmatpush2.msra.mxu0 0.0
    %3091 = vmatprep.subr.mxu0 0.0
    %3092 = vmatpush2.msra.mxu0 0.0
    %3093 = vmatprep.subr.mxu0 0.0
    %3094 = vmatpush2.msra.mxu0 0.0
    %3095 = vmatprep.subr.mxu0 0.0
    %3096 = vmatpush2.msra.mxu0 0.0
    %3097 = vmatprep.subr.mxu0 0.0
    %3098 = vmatpush2.msra.mxu0 0.0
    %3099 = vmatprep.subr.mxu0 0.0
    %3100 = vmatpush2.msra.mxu0 0.0
    %3101 = vmatprep.subr.mxu0 0.0
    %3102 = vmatpush2.msra.mxu0 0.0
    %3103 = vmatprep.mubr.f32.mxu0 0.0
    %3104 = vmatmul.mubr.f32.gmra.mxu0 %v2957
    %v3105 = vpop.f32.mrf.mxu0
    %v3106 = vadd.f32 %v2937, %v3105
    %v3107 = vpop.f32.mrf.mxu0
    %v3108 = vadd.f32 %v2941, %v3107
    %3109 = vmatprep.mubr.f32.mxu0 0.0
    %3110 = vmatmul.mubr.f32.gmra.mxu0 %v2960
    %v3111 = vpop.f32.mrf.mxu0
    %v3112 = vadd.f32 %v2937, %v3111
    %v3113 = vpop.f32.mrf.mxu0
    %v3114 = vadd.f32 %v2941, %v3113
    %3115 = vdwg.mxu0
    %3116 = vmatprep.subr.mxu0 0.0
    %3117 = vmatpush1.msra.mxu0 0.0
    %3118 = vmatprep.subr.mxu0 0.0
    %3119 = vmatpush1.msra.mxu0 0.0
    %3120 = vmatprep.subr.mxu0 0.0
    %3121 = vmatpush1.msra.mxu0 0.0
    %3122 = vmatprep.subr.mxu0 0.0
    %3123 = vmatpush1.msra.mxu0 0.0
    %3124 = vmatprep.subr.mxu0 %v2922
    %3125 = vmatpush1.msra.mxu0 %v2921
    %3126 = vmatprep.subr.mxu0 %v2916
    %3127 = vmatpush1.msra.mxu0 %v2915
    %3128 = vmatprep.subr.mxu0 %v2910
    %3129 = vmatpush1.msra.mxu0 %v2909
    %3130 = vmatprep.subr.mxu0 %v2904
    %3131 = vmatpush1.msra.mxu0 %v2903
    %3132 = vmatprep.subr.mxu0 %v2898
    %3133 = vmatpush1.msra.mxu0 %v2897
    %3134 = vmatprep.subr.mxu0 %v2892
    %3135 = vmatpush1.msra.mxu0 %v2891
    %3136 = vmatprep.subr.mxu0 %v2886
    %3137 = vmatpush1.msra.mxu0 %v2885
    %3138 = vmatprep.subr.mxu0 %v2880
    %3139 = vmatpush1.msra.mxu0 %v2879
    %3140 = vmatprep.subr.mxu0 %v2874
    %3141 = vmatpush1.msra.mxu0 %v2873
    %3142 = vmatprep.subr.mxu0 %v2868
    %3143 = vmatpush1.msra.mxu0 %v2867
    %3144 = vmatprep.subr.mxu0 %v2862
    %3145 = vmatpush1.msra.mxu0 %v2861
    %3146 = vmatprep.subr.mxu0 %v2856
    %3147 = vmatpush1.msra.mxu0 %v2855
    %3148 = vmatprep.subr.mxu0 0.0
    %3149 = vmatpush2.msra.mxu0 0.0
    %3150 = vmatprep.subr.mxu0 0.0
    %3151 = vmatpush2.msra.mxu0 0.0
    %3152 = vmatprep.subr.mxu0 0.0
    %3153 = vmatpush2.msra.mxu0 0.0
    %3154 = vmatprep.subr.mxu0 0.0
    %3155 = vmatpush2.msra.mxu0 0.0
    %3156 = vmatprep.subr.mxu0 0.0
    %3157 = vmatpush2.msra.mxu0 0.0
    %3158 = vmatprep.subr.mxu0 0.0
    %3159 = vmatpush2.msra.mxu0 0.0
    %3160 = vmatprep.subr.mxu0 0.0
    %3161 = vmatpush2.msra.mxu0 0.0
    %3162 = vmatprep.subr.mxu0 0.0
    %3163 = vmatpush2.msra.mxu0 0.0
    %3164 = vmatprep.subr.mxu0 0.0
    %3165 = vmatpush2.msra.mxu0 0.0
    %3166 = vmatprep.subr.mxu0 0.0
    %3167 = vmatpush2.msra.mxu0 0.0
    %3168 = vmatprep.subr.mxu0 0.0
    %3169 = vmatpush2.msra.mxu0 0.0
    %3170 = vmatprep.subr.mxu0 0.0
    %3171 = vmatpush2.msra.mxu0 0.0
    %3172 = vmatprep.subr.mxu0 0.0
    %3173 = vmatpush2.msra.mxu0 0.0
    %3174 = vmatprep.subr.mxu0 0.0
    %3175 = vmatpush2.msra.mxu0 0.0
    %3176 = vmatprep.subr.mxu0 0.0
    %3177 = vmatpush2.msra.mxu0 0.0
    %3178 = vmatprep.subr.mxu0 0.0
    %3179 = vmatpush2.msra.mxu0 0.0
    %3180 = vmatprep.mubr.f32.mxu0 0.0
    %3181 = vmatmul.mubr.f32.gmra.mxu0 %v2957
    %v3182 = vpop.f32.mrf.mxu0
    %v3183 = vadd.f32 %v2945, %v3182
    %v3184 = vpop.f32.mrf.mxu0
    %v3185 = vadd.f32 %v2949, %v3184
    %3186 = vmatprep.mubr.f32.mxu0 0.0
    %3187 = vmatmul.mubr.f32.gmra.mxu0 %v2960
    %v3188 = vpop.f32.mrf.mxu0
    %v3189 = vadd.f32 %v2945, %v3188
    %v3190 = vpop.f32.mrf.mxu0
    %v3191 = vadd.f32 %v2949, %v3190
    %3192 = vdwg.mxu0
    %v3193 = vtanh.pop %v3029
    %v3194 = vtanh.pop %v3031
    %v3195 = vtanh.pop %v3106
    %v3196 = vtanh.pop %v3108
    %v3197 = vtanh.pop %v3183
    %v3198 = vtanh.pop %v3185
    %v3199 = vtanh.pop %v3035
    %v3200 = vtanh.pop %v3037
    %v3201 = vtanh.pop %v3112
    %v3202 = vtanh.pop %v3114
    %v3203 = vtanh.pop %v3189
    %v3204 = vtanh.pop %v3191
    %s3205 = scalar_lea.vmem %s11, 768
    %v3206 = vld [vmem:[%s3205] sm:$0xff]
    %v3207 = vld [vmem:[%s3205 + $0x8] sm:$0xff]
    %v3208 = vld [vmem:[%s3205 + $0x10] sm:$0xff]
    %v3209 = vld [vmem:[%s3205 + $0x18] sm:$0xff]
    %v3210 = vld [vmem:[%s3205 + $0x20] sm:$0xff]
    %v3211 = vld [vmem:[%s3205 + $0x28] sm:$0xff]
    %v3212 = vld [vmem:[%s3205 + $0x30] sm:$0xff]
    %v3213 = vld [vmem:[%s3205 + $0x38] sm:$0xff]
    %v3214 = vld [vmem:[%s3205 + $0x40] sm:$0xff]
    %v3215 = vld [vmem:[%s3205 + $0x48] sm:$0xff]
    %v3216 = vld [vmem:[%s3205 + $0x50] sm:$0xff]
    %v3217 = vld [vmem:[%s3205 + $0x58] sm:$0xff]
    %v3218 = vld [vmem:[%s3205 + $0x60] sm:$0xff]
    %v3219 = vld [vmem:[%s3205 + $0x68] sm:$0xff]
    %v3220 = vld [vmem:[%s3205 + $0x70] sm:$0xff]
    %v3221 = vld [vmem:[%s3205 + $0x78] sm:$0xff]
    %v3222 = vld [vmem:[%s3205 + $0x80] sm:$0xff]
    %v3223 = vld [vmem:[%s3205 + $0x88] sm:$0xff]
    %v3224 = vld [vmem:[%s3205 + $0x90] sm:$0xff]
    %v3225 = vld [vmem:[%s3205 + $0x98] sm:$0xff]
    %v3226 = vld [vmem:[%s3205 + $0xa0] sm:$0xff]
    %v3227 = vld [vmem:[%s3205 + $0xa8] sm:$0xff]
    %v3228 = vld [vmem:[%s3205 + $0xb0] sm:$0xff]
    %v3229 = vld [vmem:[%s3205 + $0xb8] sm:$0xff]
    %v3230 = vld [vmem:[%s3205 + $0xc0] sm:$0xff]
    %v3231 = vld [vmem:[%s3205 + $0xc8] sm:$0xff]
    %v3232 = vld [vmem:[%s3205 + $0xd0] sm:$0xff]
    %v3233 = vld [vmem:[%s3205 + $0xd8] sm:$0xff]
    %v3234 = vld [vmem:[%s3205 + $0xe0] sm:$0xff]
    %v3235 = vld [vmem:[%s3205 + $0xe8] sm:$0xff]
    %v3236 = vld [vmem:[%s3205 + $0xf0] sm:$0xff]
    %v3237 = vld [vmem:[%s3205 + $0xf8] sm:$0xff]
    %v3238 = vld [vmem:[%s3205 + $0x100] sm:$0xff]
    %v3239 = vld [vmem:[%s3205 + $0x108] sm:$0xff]
    %v3240 = vld [vmem:[%s3205 + $0x110] sm:$0xff]
    %v3241 = vld [vmem:[%s3205 + $0x118] sm:$0xff]
    %v3242 = vld [vmem:[%s3205 + $0x120] sm:$0xff]
    %v3243 = vld [vmem:[%s3205 + $0x128] sm:$0xff]
    %v3244 = vld [vmem:[%s3205 + $0x130] sm:$0xff]
    %v3245 = vld [vmem:[%s3205 + $0x138] sm:$0xff]
    %v3246 = vld [vmem:[%s3205 + $0x140] sm:$0xff]
    %v3247 = vld [vmem:[%s3205 + $0x148] sm:$0xff]
    %v3248 = vld [vmem:[%s3205 + $0x150] sm:$0xff]
    %v3249 = vld [vmem:[%s3205 + $0x158] sm:$0xff]
    %v3250 = vld [vmem:[%s3205 + $0x160] sm:$0xff]
    %v3251 = vld [vmem:[%s3205 + $0x168] sm:$0xff]
    %v3252 = vld [vmem:[%s3205 + $0x170] sm:$0xff]
    %v3253 = vld [vmem:[%s3205 + $0x178] sm:$0xff]
    %v3254 = vld [vmem:[%s3205 + $0x180] sm:$0xff]
    %v3255 = vld [vmem:[%s3205 + $0x188] sm:$0xff]
    %v3256 = vld [vmem:[%s3205 + $0x190] sm:$0xff]
    %v3257 = vld [vmem:[%s3205 + $0x198] sm:$0xff]
    %v3258 = vld [vmem:[%s3205 + $0x1a0] sm:$0xff]
    %v3259 = vld [vmem:[%s3205 + $0x1a8] sm:$0xff]
    %v3260 = vld [vmem:[%s3205 + $0x1b0] sm:$0xff]
    %v3261 = vld [vmem:[%s3205 + $0x1b8] sm:$0xff]
    %v3262 = vld [vmem:[%s3205 + $0x1c0] sm:$0xff]
    %v3263 = vld [vmem:[%s3205 + $0x1c8] sm:$0xff]
    %v3264 = vld [vmem:[%s3205 + $0x1d0] sm:$0xff]
    %v3265 = vld [vmem:[%s3205 + $0x1d8] sm:$0xff]
    %v3266 = vld [vmem:[%s3205 + $0x1e0] sm:$0xff]
    %v3267 = vld [vmem:[%s3205 + $0x1e8] sm:$0xff]
    %v3268 = vld [vmem:[%s3205 + $0x1f0] sm:$0xff]
    %v3269 = vld [vmem:[%s3205 + $0x1f8] sm:$0xff]
    %v3270 = vld [vmem:[%s3205 + $0x200] sm:$0xff]
    %v3271 = vld [vmem:[%s3205 + $0x208] sm:$0xff]
    %v3272 = vld [vmem:[%s3205 + $0x210] sm:$0xff]
    %v3273 = vld [vmem:[%s3205 + $0x218] sm:$0xff]
    %v3274 = vld [vmem:[%s3205 + $0x220] sm:$0xff]
    %v3275 = vld [vmem:[%s3205 + $0x228] sm:$0xff]
    %v3276 = vld [vmem:[%s3205 + $0x230] sm:$0xff]
    %v3277 = vld [vmem:[%s3205 + $0x238] sm:$0xff]
    %v3278 = vld [vmem:[%s3205 + $0x240] sm:$0xff]
    %v3279 = vld [vmem:[%s3205 + $0x248] sm:$0xff]
    %v3280 = vld [vmem:[%s3205 + $0x250] sm:$0xff]
    %v3281 = vld [vmem:[%s3205 + $0x258] sm:$0xff]
    %v3282 = vld [vmem:[%s3205 + $0x260] sm:$0xff]
    %v3283 = vld [vmem:[%s3205 + $0x268] sm:$0xff]
    %v3284 = vld [vmem:[%s3205 + $0x270] sm:$0xff]
    %v3285 = vld [vmem:[%s3205 + $0x278] sm:$0xff]
    %v3286 = vld [vmem:[%s3205 + $0x280] sm:$0xff]
    %v3287 = vld [vmem:[%s3205 + $0x288] sm:$0xff]
    %v3288 = vld [vmem:[%s3205 + $0x290] sm:$0xff]
    %v3289 = vld [vmem:[%s3205 + $0x298] sm:$0xff]
    %v3290 = vld [vmem:[%s3205 + $0x2a0] sm:$0xff]
    %v3291 = vld [vmem:[%s3205 + $0x2a8] sm:$0xff]
    %v3292 = vld [vmem:[%s3205 + $0x2b0] sm:$0xff]
    %v3293 = vld [vmem:[%s3205 + $0x2b8] sm:$0xff]
    %v3294 = vld [vmem:[%s3205 + $0x2c0] sm:$0xff]
    %v3295 = vld [vmem:[%s3205 + $0x2c8] sm:$0xff]
    %v3296 = vld [vmem:[%s3205 + $0x2d0] sm:$0xff]
    %v3297 = vld [vmem:[%s3205 + $0x2d8] sm:$0xff]
    %v3298 = vld [vmem:[%s3205 + $0x2e0] sm:$0xff]
    %v3299 = vld [vmem:[%s3205 + $0x2e8] sm:$0xff]
    %v3300 = vld [vmem:[%s3205 + $0x2f0] sm:$0xff]
    %v3301 = vld [vmem:[%s3205 + $0x2f8] sm:$0xff]
    %s3302 = scalar_lea.vmem %s12, 1
    %v3303 = vld [vmem:[%s3302] sm:$0x1]
    %v3305 = vlaneseq
    %v3306 = vshrl.u32 %v3305, 7
    %v3307 = vsub.s32 0, %v3306
    %v3308 = vrot.slane %v3303, %v3307
    %3310 = vmatprep.subr.mxu0 0.0
    %3311 = vmatpush1.msra.mxu0 %v3221
    %3312 = vmatprep.subr.mxu0 0.0
    %3313 = vmatpush1.msra.mxu0 %v3220
    %3314 = vmatprep.subr.mxu0 0.0
    %3315 = vmatpush1.msra.mxu0 %v3219
    %3316 = vmatprep.subr.mxu0 0.0
    %3317 = vmatpush1.msra.mxu0 %v3218
    %3318 = vmatprep.subr.mxu0 0.0
    %3319 = vmatpush1.msra.mxu0 %v3217
    %3320 = vmatprep.subr.mxu0 0.0
    %3321 = vmatpush1.msra.mxu0 %v3216
    %3322 = vmatprep.subr.mxu0 0.0
    %3323 = vmatpush1.msra.mxu0 %v3215
    %3324 = vmatprep.subr.mxu0 0.0
    %3325 = vmatpush1.msra.mxu0 %v3214
    %3326 = vmatprep.subr.mxu0 0.0
    %3327 = vmatpush1.msra.mxu0 %v3213
    %3328 = vmatprep.subr.mxu0 0.0
    %3329 = vmatpush1.msra.mxu0 %v3212
    %3330 = vmatprep.subr.mxu0 0.0
    %3331 = vmatpush1.msra.mxu0 %v3211
    %3332 = vmatprep.subr.mxu0 0.0
    %3333 = vmatpush1.msra.mxu0 %v3210
    %3334 = vmatprep.subr.mxu0 0.0
    %3335 = vmatpush1.msra.mxu0 %v3209
    %3336 = vmatprep.subr.mxu0 0.0
    %3337 = vmatpush1.msra.mxu0 %v3208
    %3338 = vmatprep.subr.mxu0 0.0
    %3339 = vmatpush1.msra.mxu0 %v3207
    %3340 = vmatprep.subr.mxu0 0.0
    %3341 = vmatpush1.msra.mxu0 %v3206
    %3342 = vmatprep.subr.mxu0 0.0
    %3343 = vmatpush2.msra.mxu0 %v3237
    %3344 = vmatprep.subr.mxu0 0.0
    %3345 = vmatpush2.msra.mxu0 %v3236
    %3346 = vmatprep.subr.mxu0 0.0
    %3347 = vmatpush2.msra.mxu0 %v3235
    %3348 = vmatprep.subr.mxu0 0.0
    %3349 = vmatpush2.msra.mxu0 %v3234
    %3350 = vmatprep.subr.mxu0 0.0
    %3351 = vmatpush2.msra.mxu0 %v3233
    %3352 = vmatprep.subr.mxu0 0.0
    %3353 = vmatpush2.msra.mxu0 %v3232
    %3354 = vmatprep.subr.mxu0 0.0
    %3355 = vmatpush2.msra.mxu0 %v3231
    %3356 = vmatprep.subr.mxu0 0.0
    %3357 = vmatpush2.msra.mxu0 %v3230
    %3358 = vmatprep.subr.mxu0 0.0
    %3359 = vmatpush2.msra.mxu0 %v3229
    %3360 = vmatprep.subr.mxu0 0.0
    %3361 = vmatpush2.msra.mxu0 %v3228
    %3362 = vmatprep.subr.mxu0 0.0
    %3363 = vmatpush2.msra.mxu0 %v3227
    %3364 = vmatprep.subr.mxu0 0.0
    %3365 = vmatpush2.msra.mxu0 %v3226
    %3366 = vmatprep.subr.mxu0 0.0
    %3367 = vmatpush2.msra.mxu0 %v3225
    %3368 = vmatprep.subr.mxu0 0.0
    %3369 = vmatpush2.msra.mxu0 %v3224
    %3370 = vmatprep.subr.mxu0 0.0
    %3371 = vmatpush2.msra.mxu0 %v3223
    %3372 = vmatprep.subr.mxu0 0.0
    %3373 = vmatpush2.msra.mxu0 %v3222
    %3374 = vmatprep.mubr.f32.mxu0 %v3194
    %3375 = vmatmul.mubr.f32.gmra.mxu0 %v3193
    %v3376 = vpop.f32.mrf.mxu0
    %v3377 = vadd.f32 %v3308, %v3376
    %v3378 = vpop.f32.mrf.mxu0
    %3379 = vmatprep.mubr.f32.mxu0 %v3200
    %3380 = vmatmul.mubr.f32.gmra.mxu0 %v3199
    %v3381 = vpop.f32.mrf.mxu0
    %v3382 = vadd.f32 %v3308, %v3381
    %v3383 = vpop.f32.mrf.mxu0
    %3384 = vdwg.mxu0
    %3385 = vmatprep.subr.mxu0 0.0
    %3386 = vmatpush1.msra.mxu0 %v3253
    %3387 = vmatprep.subr.mxu0 0.0
    %3388 = vmatpush1.msra.mxu0 %v3252
    %3389 = vmatprep.subr.mxu0 0.0
    %3390 = vmatpush1.msra.mxu0 %v3251
    %3391 = vmatprep.subr.mxu0 0.0
    %3392 = vmatpush1.msra.mxu0 %v3250
    %3393 = vmatprep.subr.mxu0 0.0
    %3394 = vmatpush1.msra.mxu0 %v3249
    %3395 = vmatprep.subr.mxu0 0.0
    %3396 = vmatpush1.msra.mxu0 %v3248
    %3397 = vmatprep.subr.mxu0 0.0
    %3398 = vmatpush1.msra.mxu0 %v3247
    %3399 = vmatprep.subr.mxu0 0.0
    %3400 = vmatpush1.msra.mxu0 %v3246
    %3401 = vmatprep.subr.mxu0 0.0
    %3402 = vmatpush1.msra.mxu0 %v3245
    %3403 = vmatprep.subr.mxu0 0.0
    %3404 = vmatpush1.msra.mxu0 %v3244
    %3405 = vmatprep.subr.mxu0 0.0
    %3406 = vmatpush1.msra.mxu0 %v3243
    %3407 = vmatprep.subr.mxu0 0.0
    %3408 = vmatpush1.msra.mxu0 %v3242
    %3409 = vmatprep.subr.mxu0 0.0
    %3410 = vmatpush1.msra.mxu0 %v3241
    %3411 = vmatprep.subr.mxu0 0.0
    %3412 = vmatpush1.msra.mxu0 %v3240
    %3413 = vmatprep.subr.mxu0 0.0
    %3414 = vmatpush1.msra.mxu0 %v3239
    %3415 = vmatprep.subr.mxu0 0.0
    %3416 = vmatpush1.msra.mxu0 %v3238
    %3417 = vmatprep.subr.mxu0 0.0
    %3418 = vmatpush2.msra.mxu0 %v3269
    %3419 = vmatprep.subr.mxu0 0.0
    %3420 = vmatpush2.msra.mxu0 %v3268
    %3421 = vmatprep.subr.mxu0 0.0
    %3422 = vmatpush2.msra.mxu0 %v3267
    %3423 = vmatprep.subr.mxu0 0.0
    %3424 = vmatpush2.msra.mxu0 %v3266
    %3425 = vmatprep.subr.mxu0 0.0
    %3426 = vmatpush2.msra.mxu0 %v3265
    %3427 = vmatprep.subr.mxu0 0.0
    %3428 = vmatpush2.msra.mxu0 %v3264
    %3429 = vmatprep.subr.mxu0 0.0
    %3430 = vmatpush2.msra.mxu0 %v3263
    %3431 = vmatprep.subr.mxu0 0.0
    %3432 = vmatpush2.msra.mxu0 %v3262
    %3433 = vmatprep.subr.mxu0 0.0
    %3434 = vmatpush2.msra.mxu0 %v3261
    %3435 = vmatprep.subr.mxu0 0.0
    %3436 = vmatpush2.msra.mxu0 %v3260
    %3437 = vmatprep.subr.mxu0 0.0
    %3438 = vmatpush2.msra.mxu0 %v3259
    %3439 = vmatprep.subr.mxu0 0.0
    %3440 = vmatpush2.msra.mxu0 %v3258
    %3441 = vmatprep.subr.mxu0 0.0
    %3442 = vmatpush2.msra.mxu0 %v3257
    %3443 = vmatprep.subr.mxu0 0.0
    %3444 = vmatpush2.msra.mxu0 %v3256
    %3445 = vmatprep.subr.mxu0 0.0
    %3446 = vmatpush2.msra.mxu0 %v3255
    %3447 = vmatprep.subr.mxu0 0.0
    %3448 = vmatpush2.msra.mxu0 %v3254
    %3449 = vmatprep.mubr.f32.mxu0 %v3196
    %3450 = vmatmul.mubr.f32.gmra.mxu0 %v3195
    %v3451 = vpop.f32.mrf.mxu0
    %v3452 = vadd.f32 %v3377, %v3451
    %v3453 = vpop.f32.mrf.mxu0
    %3454 = vmatprep.mubr.f32.mxu0 %v3202
    %3455 = vmatmul.mubr.f32.gmra.mxu0 %v3201
    %v3456 = vpop.f32.mrf.mxu0
    %v3457 = vadd.f32 %v3382, %v3456
    %v3458 = vpop.f32.mrf.mxu0
    %3459 = vdwg.mxu0
    %3460 = vmatprep.subr.mxu0 0.0
    %3461 = vmatpush1.msra.mxu0 %v3285
    %3462 = vmatprep.subr.mxu0 0.0
    %3463 = vmatpush1.msra.mxu0 %v3284
    %3464 = vmatprep.subr.mxu0 0.0
    %3465 = vmatpush1.msra.mxu0 %v3283
    %3466 = vmatprep.subr.mxu0 0.0
    %3467 = vmatpush1.msra.mxu0 %v3282
    %3468 = vmatprep.subr.mxu0 0.0
    %3469 = vmatpush1.msra.mxu0 %v3281
    %3470 = vmatprep.subr.mxu0 0.0
    %3471 = vmatpush1.msra.mxu0 %v3280
    %3472 = vmatprep.subr.mxu0 0.0
    %3473 = vmatpush1.msra.mxu0 %v3279
    %3474 = vmatprep.subr.mxu0 0.0
    %3475 = vmatpush1.msra.mxu0 %v3278
    %3476 = vmatprep.subr.mxu0 0.0
    %3477 = vmatpush1.msra.mxu0 %v3277
    %3478 = vmatprep.subr.mxu0 0.0
    %3479 = vmatpush1.msra.mxu0 %v3276
    %3480 = vmatprep.subr.mxu0 0.0
    %3481 = vmatpush1.msra.mxu0 %v3275
    %3482 = vmatprep.subr.mxu0 0.0
    %3483 = vmatpush1.msra.mxu0 %v3274
    %3484 = vmatprep.subr.mxu0 0.0
    %3485 = vmatpush1.msra.mxu0 %v3273
    %3486 = vmatprep.subr.mxu0 0.0
    %3487 = vmatpush1.msra.mxu0 %v3272
    %3488 = vmatprep.subr.mxu0 0.0
    %3489 = vmatpush1.msra.mxu0 %v3271
    %3490 = vmatprep.subr.mxu0 0.0
    %3491 = vmatpush1.msra.mxu0 %v3270
    %3492 = vmatprep.subr.mxu0 0.0
    %3493 = vmatpush2.msra.mxu0 %v3301
    %3494 = vmatprep.subr.mxu0 0.0
    %3495 = vmatpush2.msra.mxu0 %v3300
    %3496 = vmatprep.subr.mxu0 0.0
    %3497 = vmatpush2.msra.mxu0 %v3299
    %3498 = vmatprep.subr.mxu0 0.0
    %3499 = vmatpush2.msra.mxu0 %v3298
    %3500 = vmatprep.subr.mxu0 0.0
    %3501 = vmatpush2.msra.mxu0 %v3297
    %3502 = vmatprep.subr.mxu0 0.0
    %3503 = vmatpush2.msra.mxu0 %v3296
    %3504 = vmatprep.subr.mxu0 0.0
    %3505 = vmatpush2.msra.mxu0 %v3295
    %3506 = vmatprep.subr.mxu0 0.0
    %3507 = vmatpush2.msra.mxu0 %v3294
    %3508 = vmatprep.subr.mxu0 0.0
    %3509 = vmatpush2.msra.mxu0 %v3293
    %3510 = vmatprep.subr.mxu0 0.0
    %3511 = vmatpush2.msra.mxu0 %v3292
    %3512 = vmatprep.subr.mxu0 0.0
    %3513 = vmatpush2.msra.mxu0 %v3291
    %3514 = vmatprep.subr.mxu0 0.0
    %3515 = vmatpush2.msra.mxu0 %v3290
    %3516 = vmatprep.subr.mxu0 0.0
    %3517 = vmatpush2.msra.mxu0 %v3289
    %3518 = vmatprep.subr.mxu0 0.0
    %3519 = vmatpush2.msra.mxu0 %v3288
    %3520 = vmatprep.subr.mxu0 0.0
    %3521 = vmatpush2.msra.mxu0 %v3287
    %3522 = vmatprep.subr.mxu0 0.0
    %3523 = vmatpush2.msra.mxu0 %v3286
    %3524 = vmatprep.mubr.f32.mxu0 %v3198
    %3525 = vmatmul.mubr.f32.gmra.mxu0 %v3197
    %v3526 = vpop.f32.mrf.mxu0
    %v3527 = vadd.f32 %v3452, %v3526
    %v3528 = vpop.f32.mrf.mxu0
    %3529 = vmatprep.mubr.f32.mxu0 %v3204
    %3530 = vmatmul.mubr.f32.gmra.mxu0 %v3203
    %v3531 = vpop.f32.mrf.mxu0
    %v3532 = vadd.f32 %v3457, %v3531
    %v3533 = vpop.f32.mrf.mxu0
    %3534 = vdwg.mxu0
    %v3536 = vsel %vm2096, %v3527, 0
    %v3539 = vsel %vm2096, %v3532, 0
    %3541 = vmatprep.subr.mxu0 0.0
    %3542 = vmatpush1.msra.mxu0 0.0
    %3543 = vmatprep.subr.mxu0 0.0
    %3544 = vmatpush1.msra.mxu0 0.0
    %3545 = vmatprep.subr.mxu0 0.0
    %3546 = vmatpush1.msra.mxu0 0.0
    %3547 = vmatprep.subr.mxu0 0.0
    %3548 = vmatpush1.msra.mxu0 0.0
    %3549 = vmatprep.subr.mxu0 0.0
    %3550 = vmatpush1.msra.mxu0 0.0
    %3551 = vmatprep.subr.mxu0 0.0
    %3552 = vmatpush1.msra.mxu0 0.0
    %3553 = vmatprep.subr.mxu0 0.0
    %3554 = vmatpush1.msra.mxu0 0.0
    %3555 = vmatprep.subr.mxu0 0.0
    %3556 = vmatpush1.msra.mxu0 0.0
    %3557 = vmatprep.subr.mxu0 0.0
    %3558 = vmatpush1.msra.mxu0 0.0
    %3559 = vmatprep.subr.mxu0 0.0
    %3560 = vmatpush1.msra.mxu0 0.0
    %3561 = vmatprep.subr.mxu0 0.0
    %3562 = vmatpush1.msra.mxu0 %v2088
    %3563 = vmatprep.subr.mxu0 0.0
    %3564 = vmatpush1.msra.mxu0 %v2087
    %3565 = vmatprep.subr.mxu0 0.0
    %3566 = vmatpush1.msra.mxu0 %v2086
    %3567 = vmatprep.subr.mxu0 0.0
    %3568 = vmatpush1.msra.mxu0 %v2085
    %3569 = vmatprep.subr.mxu0 0.0
    %3570 = vmatpush1.msra.mxu0 %v2084
    %3571 = vmatprep.subr.mxu0 0.0
    %3572 = vmatpush1.msra.mxu0 %v2083
    %3573 = vmatprep.subr.mxu0 0.0
    %3574 = vmatpush2.msra.mxu0 0.0
    %3575 = vmatprep.subr.mxu0 0.0
    %3576 = vmatpush2.msra.mxu0 0.0
    %3577 = vmatprep.subr.mxu0 0.0
    %3578 = vmatpush2.msra.mxu0 0.0
    %3579 = vmatprep.subr.mxu0 0.0
    %3580 = vmatpush2.msra.mxu0 0.0
    %3581 = vmatprep.subr.mxu0 0.0
    %3582 = vmatpush2.msra.mxu0 0.0
    %3583 = vmatprep.subr.mxu0 0.0
    %3584 = vmatpush2.msra.mxu0 0.0
    %3585 = vmatprep.subr.mxu0 0.0
    %3586 = vmatpush2.msra.mxu0 0.0
    %3587 = vmatprep.subr.mxu0 0.0
    %3588 = vmatpush2.msra.mxu0 0.0
    %3589 = vmatprep.subr.mxu0 0.0
    %3590 = vmatpush2.msra.mxu0 0.0
    %3591 = vmatprep.subr.mxu0 0.0
    %3592 = vmatpush2.msra.mxu0 0.0
    %3593 = vmatprep.subr.mxu0 0.0
    %3594 = vmatpush2.msra.mxu0 0.0
    %3595 = vmatprep.subr.mxu0 0.0
    %3596 = vmatpush2.msra.mxu0 0.0
    %3597 = vmatprep.subr.mxu0 0.0
    %3598 = vmatpush2.msra.mxu0 0.0
    %3599 = vmatprep.subr.mxu0 0.0
    %3600 = vmatpush2.msra.mxu0 0.0
    %3601 = vmatprep.subr.mxu0 0.0
    %3602 = vmatpush2.msra.mxu0 0.0
    %3603 = vmatprep.subr.mxu0 0.0
    %3604 = vmatpush2.msra.mxu0 0.0
    %3605 = vmatprep.mubr.f32.mxu0 0.0
    %3606 = vmatmul.mubr.f32.gmra.mxu0 %v3536
    %v3607 = vpop.f32.mrf.mxu0
    %v3608 = vadd.f32 %v2094, %v3607
    %v3609 = vpop.f32.mrf.mxu0
    %3610 = vmatprep.mubr.f32.mxu0 0.0
    %3611 = vmatmul.mubr.f32.gmra.mxu0 %v3539
    %v3612 = vpop.f32.mrf.mxu0
    %v3613 = vadd.f32 %v2094, %v3612
    %v3614 = vpop.f32.mrf.mxu0
    %3615 = vdwg.mxu0
    %3616 = vmatprep.subr.mxu0 0.0
    %3617 = vmatpush1.msra.mxu0 0.0
    %3618 = vmatprep.subr.mxu0 0.0
    %3619 = vmatpush1.msra.mxu0 0.0
    %3620 = vmatprep.subr.mxu0 0.0
    %3621 = vmatpush1.msra.mxu0 0.0
    %3622 = vmatprep.subr.mxu0 0.0
    %3623 = vmatpush1.msra.mxu0 0.0
    %3624 = vmatprep.subr.mxu0 0.0
    %3625 = vmatpush1.msra.mxu0 0.0
    %3626 = vmatprep.subr.mxu0 0.0
    %3627 = vmatpush1.msra.mxu0 0.0
    %3628 = vmatprep.subr.mxu0 0.0
    %3629 = vmatpush1.msra.mxu0 0.0
    %3630 = vmatprep.subr.mxu0 0.0
    %3631 = vmatpush1.msra.mxu0 0.0
    %3632 = vmatprep.subr.mxu0 0.0
    %3633 = vmatpush1.msra.mxu0 0.0
    %3634 = vmatprep.subr.mxu0 0.0
    %3635 = vmatpush1.msra.mxu0 0.0
    %3636 = vmatprep.subr.mxu0 0.0
    %3637 = vmatpush1.msra.mxu0 %v2183
    %3638 = vmatprep.subr.mxu0 0.0
    %3639 = vmatpush1.msra.mxu0 %v2182
    %3640 = vmatprep.subr.mxu0 0.0
    %3641 = vmatpush1.msra.mxu0 %v2181
    %3642 = vmatprep.subr.mxu0 0.0
    %3643 = vmatpush1.msra.mxu0 %v2180
    %3644 = vmatprep.subr.mxu0 0.0
    %3645 = vmatpush1.msra.mxu0 %v2179
    %3646 = vmatprep.subr.mxu0 0.0
    %3647 = vmatpush1.msra.mxu0 %v2178
    %3648 = vmatprep.subr.mxu0 0.0
    %3649 = vmatpush2.msra.mxu0 0.0
    %3650 = vmatprep.subr.mxu0 0.0
    %3651 = vmatpush2.msra.mxu0 0.0
    %3652 = vmatprep.subr.mxu0 0.0
    %3653 = vmatpush2.msra.mxu0 0.0
    %3654 = vmatprep.subr.mxu0 0.0
    %3655 = vmatpush2.msra.mxu0 0.0
    %3656 = vmatprep.subr.mxu0 0.0
    %3657 = vmatpush2.msra.mxu0 0.0
    %3658 = vmatprep.subr.mxu0 0.0
    %3659 = vmatpush2.msra.mxu0 0.0
    %3660 = vmatprep.subr.mxu0 0.0
    %3661 = vmatpush2.msra.mxu0 0.0
    %3662 = vmatprep.subr.mxu0 0.0
    %3663 = vmatpush2.msra.mxu0 0.0
    %3664 = vmatprep.subr.mxu0 0.0
    %3665 = vmatpush2.msra.mxu0 0.0
    %3666 = vmatprep.subr.mxu0 0.0
    %3667 = vmatpush2.msra.mxu0 0.0
    %3668 = vmatprep.subr.mxu0 0.0
    %3669 = vmatpush2.msra.mxu0 0.0
    %3670 = vmatprep.subr.mxu0 0.0
    %3671 = vmatpush2.msra.mxu0 0.0
    %3672 = vmatprep.subr.mxu0 0.0
    %3673 = vmatpush2.msra.mxu0 0.0
    %3674 = vmatprep.subr.mxu0 0.0
    %3675 = vmatpush2.msra.mxu0 0.0
    %3676 = vmatprep.subr.mxu0 0.0
    %3677 = vmatpush2.msra.mxu0 0.0
    %3678 = vmatprep.subr.mxu0 0.0
    %3679 = vmatpush2.msra.mxu0 0.0
    %3680 = vmatprep.mubr.f32.mxu0 0.0
    %3681 = vmatmul.mubr.f32.gmra.mxu0 %v3536
    %v3682 = vpop.f32.mrf.mxu0
    %v3683 = vadd.f32 %v2189, %v3682
    %v3684 = vpop.f32.mrf.mxu0
    %3685 = vmatprep.mubr.f32.mxu0 0.0
    %3686 = vmatmul.mubr.f32.gmra.mxu0 %v3539
    %v3687 = vpop.f32.mrf.mxu0
    %v3688 = vadd.f32 %v2189, %v3687
    %v3689 = vpop.f32.mrf.mxu0
    %3690 = vdwg.mxu0
    %3691 = vmatprep.subr.mxu0 0.0
    %3692 = vmatpush1.msra.mxu0 0.0
    %3693 = vmatprep.subr.mxu0 0.0
    %3694 = vmatpush1.msra.mxu0 0.0
    %3695 = vmatprep.subr.mxu0 0.0
    %3696 = vmatpush1.msra.mxu0 0.0
    %3697 = vmatprep.subr.mxu0 0.0
    %3698 = vmatpush1.msra.mxu0 0.0
    %3699 = vmatprep.subr.mxu0 0.0
    %3700 = vmatpush1.msra.mxu0 0.0
    %3701 = vmatprep.subr.mxu0 0.0
    %3702 = vmatpush1.msra.mxu0 0.0
    %3703 = vmatprep.subr.mxu0 0.0
    %3704 = vmatpush1.msra.mxu0 0.0
    %3705 = vmatprep.subr.mxu0 0.0
    %3706 = vmatpush1.msra.mxu0 0.0
    %3707 = vmatprep.subr.mxu0 0.0
    %3708 = vmatpush1.msra.mxu0 0.0
    %3709 = vmatprep.subr.mxu0 0.0
    %3710 = vmatpush1.msra.mxu0 0.0
    %3711 = vmatprep.subr.mxu0 0.0
    %3712 = vmatpush1.msra.mxu0 %v2271
    %3713 = vmatprep.subr.mxu0 0.0
    %3714 = vmatpush1.msra.mxu0 %v2270
    %3715 = vmatprep.subr.mxu0 0.0
    %3716 = vmatpush1.msra.mxu0 %v2269
    %3717 = vmatprep.subr.mxu0 0.0
    %3718 = vmatpush1.msra.mxu0 %v2268
    %3719 = vmatprep.subr.mxu0 0.0
    %3720 = vmatpush1.msra.mxu0 %v2267
    %3721 = vmatprep.subr.mxu0 0.0
    %3722 = vmatpush1.msra.mxu0 %v2266
    %3723 = vmatprep.subr.mxu0 0.0
    %3724 = vmatpush2.msra.mxu0 0.0
    %3725 = vmatprep.subr.mxu0 0.0
    %3726 = vmatpush2.msra.mxu0 0.0
    %3727 = vmatprep.subr.mxu0 0.0
    %3728 = vmatpush2.msra.mxu0 0.0
    %3729 = vmatprep.subr.mxu0 0.0
    %3730 = vmatpush2.msra.mxu0 0.0
    %3731 = vmatprep.subr.mxu0 0.0
    %3732 = vmatpush2.msra.mxu0 0.0
    %3733 = vmatprep.subr.mxu0 0.0
    %3734 = vmatpush2.msra.mxu0 0.0
    %3735 = vmatprep.subr.mxu0 0.0
    %3736 = vmatpush2.msra.mxu0 0.0
    %3737 = vmatprep.subr.mxu0 0.0
    %3738 = vmatpush2.msra.mxu0 0.0
    %3739 = vmatprep.subr.mxu0 0.0
    %3740 = vmatpush2.msra.mxu0 0.0
    %3741 = vmatprep.subr.mxu0 0.0
    %3742 = vmatpush2.msra.mxu0 0.0
    %3743 = vmatprep.subr.mxu0 0.0
    %3744 = vmatpush2.msra.mxu0 0.0
    %3745 = vmatprep.subr.mxu0 0.0
    %3746 = vmatpush2.msra.mxu0 0.0
    %3747 = vmatprep.subr.mxu0 0.0
    %3748 = vmatpush2.msra.mxu0 0.0
    %3749 = vmatprep.subr.mxu0 0.0
    %3750 = vmatpush2.msra.mxu0 0.0
    %3751 = vmatprep.subr.mxu0 0.0
    %3752 = vmatpush2.msra.mxu0 0.0
    %3753 = vmatprep.subr.mxu0 0.0
    %3754 = vmatpush2.msra.mxu0 0.0
    %3755 = vmatprep.mubr.f32.mxu0 0.0
    %3756 = vmatmul.mubr.f32.gmra.mxu0 %v3536
    %v3757 = vpop.f32.mrf.mxu0
    %v3758 = vadd.f32 %v2277, %v3757
    %v3759 = vpop.f32.mrf.mxu0
    %3760 = vmatprep.mubr.f32.mxu0 0.0
    %3761 = vmatmul.mubr.f32.gmra.mxu0 %v3539
    %v3762 = vpop.f32.mrf.mxu0
    %v3763 = vadd.f32 %v2277, %v3762
    %v3764 = vpop.f32.mrf.mxu0
    %3765 = vdwg.mxu0
    %v3766 = vmul.f32 %v3608, %v3683
    %v3767 = vmul.f32 %v3613, %v3688
    %v3768 = vsel %vm2356, %v3766, 0.0
    %3769 = vadd.xlane.f32.xlu0 %v3768
    %v3770 = vpop.xlane.xlu0 %3769
    %v3771 = vsel %vm2356, %v3767, 0.0
    %3772 = vadd.xlane.f32.xlu0 %v3771
    %v3773 = vpop.xlane.xlu0 %3772
    %3776 = vrot.lane.b32.xlu0 %v3683, 112
    %v3777 = vpop.permute.xlu0 %3776
    %3778 = vrot.lane.b32.xlu0 %v3688, 112
    %v3779 = vpop.permute.xlu0 %3778
    %v3782 = vmul.f32 %v3608, %v3777
    %v3783 = vmul.f32 %v3613, %v3779
    %v3784 = vsel %vm2356, %v3782, 0.0
    %3785 = vadd.xlane.f32.xlu0 %v3784
    %v3786 = vpop.xlane.xlu0 %3785
    %v3787 = vsel %vm2356, %v3783, 0.0
    %3788 = vadd.xlane.f32.xlu0 %v3787
    %v3789 = vpop.xlane.xlu0 %3788
    %3790 = vrot.lane.b32.xlu0 %v3683, 96
    %v3791 = vpop.permute.xlu0 %3790
    %3792 = vrot.lane.b32.xlu0 %v3688, 96
    %v3793 = vpop.permute.xlu0 %3792
    %v3796 = vmul.f32 %v3608, %v3791
    %v3797 = vmul.f32 %v3613, %v3793
    %v3798 = vsel %vm2356, %v3796, 0.0
    %3799 = vadd.xlane.f32.xlu0 %v3798
    %v3800 = vpop.xlane.xlu0 %3799
    %v3801 = vsel %vm2356, %v3797, 0.0
    %3802 = vadd.xlane.f32.xlu0 %v3801
    %v3803 = vpop.xlane.xlu0 %3802
    %v3804 = vsel %vm2393, %v3770, %v3786
    %v3805 = vsel %vm2393, %v3773, %v3789
    %v3806 = vsel %vm2396, %v3804, %v3800
    %v3807 = vsel %vm2396, %v3805, %v3803
    %v3808 = vmul.f32 %v3806, 0.25
    %v3809 = vmul.f32 %v3807, 0.25
    %v3810 = vsel %vm2401, %v3808, -inf
    %3811 = vmax.xlane.f32.xlu0 %v3810
    %v3812 = vpop.xlane.xlu0 %3811
    %v3813 = vsel %vm2401, %v3809, -inf
    %3814 = vmax.xlane.f32.xlu0 %v3813
    %v3815 = vpop.xlane.xlu0 %3814
    %v3816 = vsub.f32 %v3808, %v3812
    %v3817 = vsub.f32 %v3809, %v3815
    %v3818 = vmul.f32 %v3816, 1.442695
    %v3819 = vpow.pop %v3818
    %v3820 = vmul.f32 %v3817, 1.442695
    %v3821 = vpow.pop %v3820
    %v3822 = vsel %vm2401, %v3819, 0.0
    %3823 = vadd.xlane.f32.xlu0 %v3822
    %v3824 = vpop.xlane.xlu0 %3823
    %v3825 = vsel %vm2401, %v3821, 0.0
    %3826 = vadd.xlane.f32.xlu0 %v3825
    %v3827 = vpop.xlane.xlu0 %3826
    %v3828 = vrcp.pop %v3824
    %v3829 = vrcp.pop %v3827
    %v3830 = vmul.f32 %v3819, %v3828
    %v3831 = vmul.f32 %v3821, %v3829
    %3833 = vset.pattern.permute.xlu0 0
    %3834 = vperm.xlu0 %3833, %v3830
    %v3835 = vpop.permute.xlu0 %3834
    %3838 = vset.pattern.permute.xlu0 0
    %3839 = vperm.xlu0 %3838, %v3831
    %v3840 = vpop.permute.xlu0 %3839
    %v3842 = vmul.f32 %v3835, %v3758
    %v3843 = vmul.f32 %v3840, %v3763
    %3844 = vset.pattern.permute.xlu0 1
    %3845 = vperm.xlu0 %3844, %v3830
    %v3846 = vpop.permute.xlu0 %3845
    %3848 = vset.pattern.permute.xlu0 1
    %3849 = vperm.xlu0 %3848, %v3831
    %v3850 = vpop.permute.xlu0 %3849
    %v3852 = vmul.f32 %v3846, %v3758
    %v3853 = vmul.f32 %v3850, %v3763
    %3856 = vrot.lane.b32.xlu0 %v3852, 112
    %v3857 = vpop.permute.xlu0 %3856
    %3858 = vrot.lane.b32.xlu0 %v3853, 112
    %v3859 = vpop.permute.xlu0 %3858
    %v3862 = vadd.f32 %v3842, %v3857
    %v3863 = vadd.f32 %v3843, %v3859
    %3864 = vset.pattern.permute.xlu0 2
    %3865 = vperm.xlu0 %3864, %v3830
    %v3866 = vpop.permute.xlu0 %3865
    %3868 = vset.pattern.permute.xlu0 2
    %3869 = vperm.xlu0 %3868, %v3831
    %v3870 = vpop.permute.xlu0 %3869
    %v3872 = vmul.f32 %v3866, %v3758
    %v3873 = vmul.f32 %v3870, %v3763
    %3876 = vrot.lane.b32.xlu0 %v3872, 96
    %v3877 = vpop.permute.xlu0 %3876
    %3878 = vrot.lane.b32.xlu0 %v3873, 96
    %v3879 = vpop.permute.xlu0 %3878
    %v3882 = vadd.f32 %v3862, %v3877
    %v3883 = vadd.f32 %v3863, %v3879
    %3884 = vrot.lane.b32.xlu0 %v3683, 16
    %v3885 = vpop.permute.xlu0 %3884
    %3886 = vrot.lane.b32.xlu0 %v3688, 16
    %v3887 = vpop.permute.xlu0 %3886
    %v3890 = vmul.f32 %v3608, %v3885
    %v3891 = vmul.f32 %v3613, %v3887
    %3894 = vrot.lane.b32.xlu0 %v3890, 112
    %v3895 = vpop.permute.xlu0 %3894
    %3896 = vrot.lane.b32.xlu0 %v3891, 112
    %v3897 = vpop.permute.xlu0 %3896
    %v3900 = vsel %vm2356, %v3895, 0.0
    %3901 = vadd.xlane.f32.xlu0 %v3900
    %v3902 = vpop.xlane.xlu0 %3901
    %v3903 = vsel %vm2356, %v3897, 0.0
    %3904 = vadd.xlane.f32.xlu0 %v3903
    %v3905 = vpop.xlane.xlu0 %3904
    %3908 = vrot.lane.b32.xlu0 %v3766, 112
    %v3909 = vpop.permute.xlu0 %3908
    %3910 = vrot.lane.b32.xlu0 %v3767, 112
    %v3911 = vpop.permute.xlu0 %3910
    %v3914 = vsel %vm2356, %v3909, 0.0
    %3915 = vadd.xlane.f32.xlu0 %v3914
    %v3916 = vpop.xlane.xlu0 %3915
    %v3917 = vsel %vm2356, %v3911, 0.0
    %3918 = vadd.xlane.f32.xlu0 %v3917
    %v3919 = vpop.xlane.xlu0 %3918
    %3922 = vrot.lane.b32.xlu0 %v3782, 112
    %v3923 = vpop.permute.xlu0 %3922
    %3924 = vrot.lane.b32.xlu0 %v3783, 112
    %v3925 = vpop.permute.xlu0 %3924
    %v3928 = vsel %vm2356, %v3923, 0.0
    %3929 = vadd.xlane.f32.xlu0 %v3928
    %v3930 = vpop.xlane.xlu0 %3929
    %v3931 = vsel %vm2356, %v3925, 0.0
    %3932 = vadd.xlane.f32.xlu0 %v3931
    %v3933 = vpop.xlane.xlu0 %3932
    %v3934 = vsel %vm2393, %v3902, %v3916
    %v3935 = vsel %vm2393, %v3905, %v3919
    %v3936 = vsel %vm2396, %v3934, %v3930
    %v3937 = vsel %vm2396, %v3935, %v3933
    %v3938 = vmul.f32 %v3936, 0.25
    %v3939 = vmul.f32 %v3937, 0.25
    %v3940 = vsel %vm2401, %v3938, -inf
    %3941 = vmax.xlane.f32.xlu0 %v3940
    %v3942 = vpop.xlane.xlu0 %3941
    %v3943 = vsel %vm2401, %v3939, -inf
    %3944 = vmax.xlane.f32.xlu0 %v3943
    %v3945 = vpop.xlane.xlu0 %3944
    %v3946 = vsub.f32 %v3938, %v3942
    %v3947 = vsub.f32 %v3939, %v3945
    %v3948 = vmul.f32 %v3946, 1.442695
    %v3949 = vpow.pop %v3948
    %v3950 = vmul.f32 %v3947, 1.442695
    %v3951 = vpow.pop %v3950
    %v3952 = vsel %vm2401, %v3949, 0.0
    %3953 = vadd.xlane.f32.xlu0 %v3952
    %v3954 = vpop.xlane.xlu0 %3953
    %v3955 = vsel %vm2401, %v3951, 0.0
    %3956 = vadd.xlane.f32.xlu0 %v3955
    %v3957 = vpop.xlane.xlu0 %3956
    %v3958 = vrcp.pop %v3954
    %v3959 = vrcp.pop %v3957
    %v3960 = vmul.f32 %v3949, %v3958
    %v3961 = vmul.f32 %v3951, %v3959
    %3963 = vset.pattern.permute.xlu0 0
    %3964 = vperm.xlu0 %3963, %v3960
    %v3965 = vpop.permute.xlu0 %3964
    %3968 = vset.pattern.permute.xlu0 0
    %3969 = vperm.xlu0 %3968, %v3961
    %v3970 = vpop.permute.xlu0 %3969
    %v3972 = vmul.f32 %v3965, %v3758
    %v3973 = vmul.f32 %v3970, %v3763
    %3974 = vset.pattern.permute.xlu0 1
    %3975 = vperm.xlu0 %3974, %v3960
    %v3976 = vpop.permute.xlu0 %3975
    %3978 = vset.pattern.permute.xlu0 1
    %3979 = vperm.xlu0 %3978, %v3961
    %v3980 = vpop.permute.xlu0 %3979
    %v3982 = vmul.f32 %v3976, %v3758
    %v3983 = vmul.f32 %v3980, %v3763
    %3986 = vrot.lane.b32.xlu0 %v3982, 112
    %v3987 = vpop.permute.xlu0 %3986
    %3988 = vrot.lane.b32.xlu0 %v3983, 112
    %v3989 = vpop.permute.xlu0 %3988
    %v3992 = vadd.f32 %v3972, %v3987
    %v3993 = vadd.f32 %v3973, %v3989
    %3994 = vset.pattern.permute.xlu0 2
    %3995 = vperm.xlu0 %3994, %v3960
    %v3996 = vpop.permute.xlu0 %3995
    %3998 = vset.pattern.permute.xlu0 2
    %3999 = vperm.xlu0 %3998, %v3961
    %v4000 = vpop.permute.xlu0 %3999
    %v4002 = vmul.f32 %v3996, %v3758
    %v4003 = vmul.f32 %v4000, %v3763
    %4006 = vrot.lane.b32.xlu0 %v4002, 96
    %v4007 = vpop.permute.xlu0 %4006
    %4008 = vrot.lane.b32.xlu0 %v4003, 96
    %v4009 = vpop.permute.xlu0 %4008
    %v4012 = vadd.f32 %v3992, %v4007
    %v4013 = vadd.f32 %v3993, %v4009
    %4014 = vrot.lane.b32.xlu0 %v3683, 32
    %v4015 = vpop.permute.xlu0 %4014
    %4016 = vrot.lane.b32.xlu0 %v3688, 32
    %v4017 = vpop.permute.xlu0 %4016
    %v4020 = vmul.f32 %v3608, %v4015
    %v4021 = vmul.f32 %v3613, %v4017
    %4024 = vrot.lane.b32.xlu0 %v4020, 96
    %v4025 = vpop.permute.xlu0 %4024
    %4026 = vrot.lane.b32.xlu0 %v4021, 96
    %v4027 = vpop.permute.xlu0 %4026
    %v4030 = vsel %vm2356, %v4025, 0.0
    %4031 = vadd.xlane.f32.xlu0 %v4030
    %v4032 = vpop.xlane.xlu0 %4031
    %v4033 = vsel %vm2356, %v4027, 0.0
    %4034 = vadd.xlane.f32.xlu0 %v4033
    %v4035 = vpop.xlane.xlu0 %4034
    %4036 = vrot.lane.b32.xlu0 %v3890, 96
    %v4037 = vpop.permute.xlu0 %4036
    %4038 = vrot.lane.b32.xlu0 %v3891, 96
    %v4039 = vpop.permute.xlu0 %4038
    %v4042 = vsel %vm2356, %v4037, 0.0
    %4043 = vadd.xlane.f32.xlu0 %v4042
    %v4044 = vpop.xlane.xlu0 %4043
    %v4045 = vsel %vm2356, %v4039, 0.0
    %4046 = vadd.xlane.f32.xlu0 %v4045
    %v4047 = vpop.xlane.xlu0 %4046
    %4048 = vrot.lane.b32.xlu0 %v3766, 96
    %v4049 = vpop.permute.xlu0 %4048
    %4050 = vrot.lane.b32.xlu0 %v3767, 96
    %v4051 = vpop.permute.xlu0 %4050
    %v4054 = vsel %vm2356, %v4049, 0.0
    %4055 = vadd.xlane.f32.xlu0 %v4054
    %v4056 = vpop.xlane.xlu0 %4055
    %v4057 = vsel %vm2356, %v4051, 0.0
    %4058 = vadd.xlane.f32.xlu0 %v4057
    %v4059 = vpop.xlane.xlu0 %4058
    %v4060 = vsel %vm2393, %v4032, %v4044
    %v4061 = vsel %vm2393, %v4035, %v4047
    %v4062 = vsel %vm2396, %v4060, %v4056
    %v4063 = vsel %vm2396, %v4061, %v4059
    %v4064 = vmul.f32 %v4062, 0.25
    %v4065 = vmul.f32 %v4063, 0.25
    %v4066 = vsel %vm2401, %v4064, -inf
    %4067 = vmax.xlane.f32.xlu0 %v4066
    %v4068 = vpop.xlane.xlu0 %4067
    %v4069 = vsel %vm2401, %v4065, -inf
    %4070 = vmax.xlane.f32.xlu0 %v4069
    %v4071 = vpop.xlane.xlu0 %4070
    %v4072 = vsub.f32 %v4064, %v4068
    %v4073 = vsub.f32 %v4065, %v4071
    %v4074 = vmul.f32 %v4072, 1.442695
    %v4075 = vpow.pop %v4074
    %v4076 = vmul.f32 %v4073, 1.442695
    %v4077 = vpow.pop %v4076
    %v4078 = vsel %vm2401, %v4075, 0.0
    %4079 = vadd.xlane.f32.xlu0 %v4078
    %v4080 = vpop.xlane.xlu0 %4079
    %v4081 = vsel %vm2401, %v4077, 0.0
    %4082 = vadd.xlane.f32.xlu0 %v4081
    %v4083 = vpop.xlane.xlu0 %4082
    %v4084 = vrcp.pop %v4080
    %v4085 = vrcp.pop %v4083
    %v4086 = vmul.f32 %v4075, %v4084
    %v4087 = vmul.f32 %v4077, %v4085
    %4089 = vset.pattern.permute.xlu0 0
    %4090 = vperm.xlu0 %4089, %v4086
    %v4091 = vpop.permute.xlu0 %4090
    %4094 = vset.pattern.permute.xlu0 0
    %4095 = vperm.xlu0 %4094, %v4087
    %v4096 = vpop.permute.xlu0 %4095
    %v4098 = vmul.f32 %v4091, %v3758
    %v4099 = vmul.f32 %v4096, %v3763
    %4100 = vset.pattern.permute.xlu0 1
    %4101 = vperm.xlu0 %4100, %v4086
    %v4102 = vpop.permute.xlu0 %4101
    %4104 = vset.pattern.permute.xlu0 1
    %4105 = vperm.xlu0 %4104, %v4087
    %v4106 = vpop.permute.xlu0 %4105
    %v4108 = vmul.f32 %v4102, %v3758
    %v4109 = vmul.f32 %v4106, %v3763
    %4112 = vrot.lane.b32.xlu0 %v4108, 112
    %v4113 = vpop.permute.xlu0 %4112
    %4114 = vrot.lane.b32.xlu0 %v4109, 112
    %v4115 = vpop.permute.xlu0 %4114
    %v4118 = vadd.f32 %v4098, %v4113
    %v4119 = vadd.f32 %v4099, %v4115
    %4120 = vset.pattern.permute.xlu0 2
    %4121 = vperm.xlu0 %4120, %v4086
    %v4122 = vpop.permute.xlu0 %4121
    %4124 = vset.pattern.permute.xlu0 2
    %4125 = vperm.xlu0 %4124, %v4087
    %v4126 = vpop.permute.xlu0 %4125
    %v4128 = vmul.f32 %v4122, %v3758
    %v4129 = vmul.f32 %v4126, %v3763
    %4132 = vrot.lane.b32.xlu0 %v4128, 96
    %v4133 = vpop.permute.xlu0 %4132
    %4134 = vrot.lane.b32.xlu0 %v4129, 96
    %v4135 = vpop.permute.xlu0 %4134
    %v4138 = vadd.f32 %v4118, %v4133
    %v4139 = vadd.f32 %v4119, %v4135
    %4142 = vrot.lane.b32.xlu0 %v4012, 16
    %v4143 = vpop.permute.xlu0 %4142
    %4144 = vrot.lane.b32.xlu0 %v4013, 16
    %v4145 = vpop.permute.xlu0 %4144
    %4150 = vrot.lane.b32.xlu0 %v4138, 32
    %v4151 = vpop.permute.xlu0 %4150
    %4152 = vrot.lane.b32.xlu0 %v4139, 32
    %v4153 = vpop.permute.xlu0 %4152
    %v4156 = vsel %vm2356, %v3882, %v4143
    %v4157 = vsel %vm2356, %v3883, %v4145
    %v4158 = vsel %vm253, %v4156, %v4151
    %v4159 = vsel %vm253, %v4157, %v4153
    %v4160 = vxor.u32 %v2750, 2147483648
    %v4161 = vxor.u32 %v2751, 2147483648
    %v4162 = vmul.f32 %v4160, 1.442695
    %v4163 = vpow.pop %v4162
    %v4164 = vmul.f32 %v4161, 1.442695
    %v4165 = vpow.pop %v4164
    %v4166 = vadd.f32 %v4163, 1.0
    %v4167 = vadd.f32 %v4165, 1.0
    %v4168 = vrcp.pop %v4166
    %v4169 = vmul.f32 1.0, %v4168
    %v4170 = vrcp.pop %v4167
    %v4171 = vmul.f32 1.0, %v4170
    %v4172 = vxor.u32 %v4158, 2147483648
    %v4173 = vxor.u32 %v4159, 2147483648
    %v4174 = vmul.f32 %v4172, 1.442695
    %v4175 = vpow.pop %v4174
    %v4176 = vmul.f32 %v4173, 1.442695
    %v4177 = vpow.pop %v4176
    %v4178 = vadd.f32 %v4175, 1.0
    %v4179 = vadd.f32 %v4177, 1.0
    %v4180 = vrcp.pop %v4178
    %v4181 = vmul.f32 1.0, %v4180
    %v4182 = vrcp.pop %v4179
    %v4183 = vmul.f32 1.0, %v4182
    %v4184 = vsub.f32 %v4169, %v4181
    %v4185 = vsub.f32 %v4171, %v4183
    %v4186 = vld [vmem:[%s19] sm:$0xff]
    %v4187 = vld [vmem:[%s19 + $0x8] sm:$0xff]
    %v4188 = vmul.f32 %v4184, %v4186
    %v4189 = vmul.f32 %v4185, %v4187
    %v4190 = vld [vmem:[%s20] sm:$0xff]
    %v4191 = vld [vmem:[%s20 + $0x8] sm:$0xff]
    %v4192 = vld [vmem:[%s20 + $0x10] sm:$0xff]
    %v4193 = vld [vmem:[%s20 + $0x18] sm:$0xff]
    %v4194 = vld [vmem:[%s20 + $0x20] sm:$0xff]
    %v4195 = vld [vmem:[%s20 + $0x28] sm:$0xff]
    %v4196 = vld [vmem:[%s21] sm:$0x1]
    %v4198 = vlaneseq
    %v4199 = vshrl.u32 %v4198, 7
    %v4200 = vsub.s32 0, %v4199
    %v4201 = vrot.slane %v4196, %v4200
    %v4204 = vsel %vm2096, %v4188, 0
    %v4207 = vsel %vm2096, %v4189, 0
    %4209 = vmatprep.subr.mxu0 0.0
    %4210 = vmatpush1.msra.mxu0 0.0
    %4211 = vmatprep.subr.mxu0 0.0
    %4212 = vmatpush1.msra.mxu0 0.0
    %4213 = vmatprep.subr.mxu0 0.0
    %4214 = vmatpush1.msra.mxu0 0.0
    %4215 = vmatprep.subr.mxu0 0.0
    %4216 = vmatpush1.msra.mxu0 0.0
    %4217 = vmatprep.subr.mxu0 0.0
    %4218 = vmatpush1.msra.mxu0 0.0
    %4219 = vmatprep.subr.mxu0 0.0
    %4220 = vmatpush1.msra.mxu0 0.0
    %4221 = vmatprep.subr.mxu0 0.0
    %4222 = vmatpush1.msra.mxu0 0.0
    %4223 = vmatprep.subr.mxu0 0.0
    %4224 = vmatpush1.msra.mxu0 0.0
    %4225 = vmatprep.subr.mxu0 0.0
    %4226 = vmatpush1.msra.mxu0 0.0
    %4227 = vmatprep.subr.mxu0 0.0
    %4228 = vmatpush1.msra.mxu0 0.0
    %4229 = vmatprep.subr.mxu0 0.0
    %4230 = vmatpush1.msra.mxu0 %v4195
    %4231 = vmatprep.subr.mxu0 0.0
    %4232 = vmatpush1.msra.mxu0 %v4194
    %4233 = vmatprep.subr.mxu0 0.0
    %4234 = vmatpush1.msra.mxu0 %v4193
    %4235 = vmatprep.subr.mxu0 0.0
    %4236 = vmatpush1.msra.mxu0 %v4192
    %4237 = vmatprep.subr.mxu0 0.0
    %4238 = vmatpush1.msra.mxu0 %v4191
    %4239 = vmatprep.subr.mxu0 0.0
    %4240 = vmatpush1.msra.mxu0 %v4190
    %4241 = vmatprep.subr.mxu0 0.0
    %4242 = vmatpush2.msra.mxu0 0.0
    %4243 = vmatprep.subr.mxu0 0.0
    %4244 = vmatpush2.msra.mxu0 0.0
    %4245 = vmatprep.subr.mxu0 0.0
    %4246 = vmatpush2.msra.mxu0 0.0
    %4247 = vmatprep.subr.mxu0 0.0
    %4248 = vmatpush2.msra.mxu0 0.0
    %4249 = vmatprep.subr.mxu0 0.0
    %4250 = vmatpush2.msra.mxu0 0.0
    %4251 = vmatprep.subr.mxu0 0.0
    %4252 = vmatpush2.msra.mxu0 0.0
    %4253 = vmatprep.subr.mxu0 0.0
    %4254 = vmatpush2.msra.mxu0 0.0
    %4255 = vmatprep.subr.mxu0 0.0
    %4256 = vmatpush2.msra.mxu0 0.0
    %4257 = vmatprep.subr.mxu0 0.0
    %4258 = vmatpush2.msra.mxu0 0.0
    %4259 = vmatprep.subr.mxu0 0.0
    %4260 = vmatpush2.msra.mxu0 0.0
    %4261 = vmatprep.subr.mxu0 0.0
    %4262 = vmatpush2.msra.mxu0 0.0
    %4263 = vmatprep.subr.mxu0 0.0
    %4264 = vmatpush2.msra.mxu0 0.0
    %4265 = vmatprep.subr.mxu0 0.0
    %4266 = vmatpush2.msra.mxu0 0.0
    %4267 = vmatprep.subr.mxu0 0.0
    %4268 = vmatpush2.msra.mxu0 0.0
    %4269 = vmatprep.subr.mxu0 0.0
    %4270 = vmatpush2.msra.mxu0 0.0
    %4271 = vmatprep.subr.mxu0 0.0
    %4272 = vmatpush2.msra.mxu0 0.0
    %4273 = vmatprep.mubr.f32.mxu0 0.0
    %4274 = vmatmul.mubr.f32.gmra.mxu0 %v4204
    %v4275 = vpop.f32.mrf.mxu0
    %v4276 = vadd.f32 %v4201, %v4275
    %v4277 = vpop.f32.mrf.mxu0
    %4278 = vmatprep.mubr.f32.mxu0 0.0
    %4279 = vmatmul.mubr.f32.gmra.mxu0 %v4207
    %v4280 = vpop.f32.mrf.mxu0
    %v4281 = vadd.f32 %v4201, %v4280
    %v4282 = vpop.f32.mrf.mxu0
    %4283 = vdwg.mxu0
    %v4284 = vtanh.pop %v4276
    %v4285 = vtanh.pop %v4281
    %v4286 = vld [vmem:[%s22] sm:$0xff]
    %v4287 = vld [vmem:[%s22 + $0x8] sm:$0xff]
    %v4288 = vld [vmem:[%s22 + $0x10] sm:$0xff]
    %v4289 = vld [vmem:[%s22 + $0x18] sm:$0xff]
    %v4290 = vld [vmem:[%s23] sm:$0x1]
    %v4292 = vlaneseq
    %v4293 = vshrl.u32 %v4292, 7
    %v4294 = vsub.s32 0, %v4293
    %v4295 = vrot.slane %v4290, %v4294
    %v4298 = vsel %vm253, %v4284, 0
    %v4301 = vsel %vm253, %v4285, 0
    %4303 = vmatprep.subr.mxu0 0.0
    %4304 = vmatpush1.msra.mxu0 0.0
    %4305 = vmatprep.subr.mxu0 0.0
    %4306 = vmatpush1.msra.mxu0 0.0
    %4307 = vmatprep.subr.mxu0 0.0
    %4308 = vmatpush1.msra.mxu0 0.0
    %4309 = vmatprep.subr.mxu0 0.0
    %4310 = vmatpush1.msra.mxu0 0.0
    %4311 = vmatprep.subr.mxu0 0.0
    %4312 = vmatpush1.msra.mxu0 0.0
    %4313 = vmatprep.subr.mxu0 0.0
    %4314 = vmatpush1.msra.mxu0 0.0
    %4315 = vmatprep.subr.mxu0 0.0
    %4316 = vmatpush1.msra.mxu0 0.0
    %4317 = vmatprep.subr.mxu0 0.0
    %4318 = vmatpush1.msra.mxu0 0.0
    %4319 = vmatprep.subr.mxu0 0.0
    %4320 = vmatpush1.msra.mxu0 0.0
    %4321 = vmatprep.subr.mxu0 0.0
    %4322 = vmatpush1.msra.mxu0 0.0
    %4323 = vmatprep.subr.mxu0 0.0
    %4324 = vmatpush1.msra.mxu0 0.0
    %4325 = vmatprep.subr.mxu0 0.0
    %4326 = vmatpush1.msra.mxu0 0.0
    %4327 = vmatprep.subr.mxu0 0.0
    %4328 = vmatpush1.msra.mxu0 %v4289
    %4329 = vmatprep.subr.mxu0 0.0
    %4330 = vmatpush1.msra.mxu0 %v4288
    %4331 = vmatprep.subr.mxu0 0.0
    %4332 = vmatpush1.msra.mxu0 %v4287
    %4333 = vmatprep.subr.mxu0 0.0
    %4334 = vmatpush1.msra.mxu0 %v4286
    %4335 = vmatprep.subr.mxu0 0.0
    %4336 = vmatpush2.msra.mxu0 0.0
    %4337 = vmatprep.subr.mxu0 0.0
    %4338 = vmatpush2.msra.mxu0 0.0
    %4339 = vmatprep.subr.mxu0 0.0
    %4340 = vmatpush2.msra.mxu0 0.0
    %4341 = vmatprep.subr.mxu0 0.0
    %4342 = vmatpush2.msra.mxu0 0.0
    %4343 = vmatprep.subr.mxu0 0.0
    %4344 = vmatpush2.msra.mxu0 0.0
    %4345 = vmatprep.subr.mxu0 0.0
    %4346 = vmatpush2.msra.mxu0 0.0
    %4347 = vmatprep.subr.mxu0 0.0
    %4348 = vmatpush2.msra.mxu0 0.0
    %4349 = vmatprep.subr.mxu0 0.0
    %4350 = vmatpush2.msra.mxu0 0.0
    %4351 = vmatprep.subr.mxu0 0.0
    %4352 = vmatpush2.msra.mxu0 0.0
    %4353 = vmatprep.subr.mxu0 0.0
    %4354 = vmatpush2.msra.mxu0 0.0
    %4355 = vmatprep.subr.mxu0 0.0
    %4356 = vmatpush2.msra.mxu0 0.0
    %4357 = vmatprep.subr.mxu0 0.0
    %4358 = vmatpush2.msra.mxu0 0.0
    %4359 = vmatprep.subr.mxu0 0.0
    %4360 = vmatpush2.msra.mxu0 0.0
    %4361 = vmatprep.subr.mxu0 0.0
    %4362 = vmatpush2.msra.mxu0 0.0
    %4363 = vmatprep.subr.mxu0 0.0
    %4364 = vmatpush2.msra.mxu0 0.0
    %4365 = vmatprep.subr.mxu0 0.0
    %4366 = vmatpush2.msra.mxu0 0.0
    %4367 = vmatprep.mubr.f32.mxu0 0.0
    %4368 = vmatmul.mubr.f32.gmra.mxu0 %v4298
    %v4369 = vpop.f32.mrf.mxu0
    %v4370 = vadd.f32 %v4295, %v4369
    %v4371 = vpop.f32.mrf.mxu0
    %4372 = vmatprep.mubr.f32.mxu0 0.0
    %4373 = vmatmul.mubr.f32.gmra.mxu0 %v4301
    %v4374 = vpop.f32.mrf.mxu0
    %v4375 = vadd.f32 %v4295, %v4374
    %v4376 = vpop.f32.mrf.mxu0
    %4377 = vdwg.mxu0
    %v4378 = vld [vmem:[%s24] sm:$0xff]
    %v4379 = vld [vmem:[%s24 + $0x8] sm:$0xff]
    %v4380 = vld [vmem:[%s24 + $0x10] sm:$0xff]
    %v4381 = vld [vmem:[%s24 + $0x18] sm:$0xff]
    %v4382 = vld [vmem:[%s25] sm:$0x1]
    %v4384 = vlaneseq
    %v4385 = vshrl.u32 %v4384, 7
    %v4386 = vsub.s32 0, %v4385
    %v4387 = vrot.slane %v4382, %v4386
    %v4390 = vsel %vm253, %v4370, 0
    %v4393 = vsel %vm253, %v4375, 0
    %4395 = vmatprep.subr.mxu0 0.0
    %4396 = vmatpush1.msra.mxu0 0.0
    %4397 = vmatprep.subr.mxu0 0.0
    %4398 = vmatpush1.msra.mxu0 0.0
    %4399 = vmatprep.subr.mxu0 0.0
    %4400 = vmatpush1.msra.mxu0 0.0
    %4401 = vmatprep.subr.mxu0 0.0
    %4402 = vmatpush1.msra.mxu0 0.0
    %4403 = vmatprep.subr.mxu0 0.0
    %4404 = vmatpush1.msra.mxu0 0.0
    %4405 = vmatprep.subr.mxu0 0.0
    %4406 = vmatpush1.msra.mxu0 0.0
    %4407 = vmatprep.subr.mxu0 0.0
    %4408 = vmatpush1.msra.mxu0 0.0
    %4409 = vmatprep.subr.mxu0 0.0
    %4410 = vmatpush1.msra.mxu0 0.0
    %4411 = vmatprep.subr.mxu0 0.0
    %4412 = vmatpush1.msra.mxu0 0.0
    %4413 = vmatprep.subr.mxu0 0.0
    %4414 = vmatpush1.msra.mxu0 0.0
    %4415 = vmatprep.subr.mxu0 0.0
    %4416 = vmatpush1.msra.mxu0 0.0
    %4417 = vmatprep.subr.mxu0 0.0
    %4418 = vmatpush1.msra.mxu0 0.0
    %4419 = vmatprep.subr.mxu0 0.0
    %4420 = vmatpush1.msra.mxu0 %v4381
    %4421 = vmatprep.subr.mxu0 0.0
    %4422 = vmatpush1.msra.mxu0 %v4380
    %4423 = vmatprep.subr.mxu0 0.0
    %4424 = vmatpush1.msra.mxu0 %v4379
    %4425 = vmatprep.subr.mxu0 0.0
    %4426 = vmatpush1.msra.mxu0 %v4378
    %4427 = vmatprep.subr.mxu0 0.0
    %4428 = vmatpush2.msra.mxu0 0.0
    %4429 = vmatprep.subr.mxu0 0.0
    %4430 = vmatpush2.msra.mxu0 0.0
    %4431 = vmatprep.subr.mxu0 0.0
    %4432 = vmatpush2.msra.mxu0 0.0
    %4433 = vmatprep.subr.mxu0 0.0
    %4434 = vmatpush2.msra.mxu0 0.0
    %4435 = vmatprep.subr.mxu0 0.0
    %4436 = vmatpush2.msra.mxu0 0.0
    %4437 = vmatprep.subr.mxu0 0.0
    %4438 = vmatpush2.msra.mxu0 0.0
    %4439 = vmatprep.subr.mxu0 0.0
    %4440 = vmatpush2.msra.mxu0 0.0
    %4441 = vmatprep.subr.mxu0 0.0
    %4442 = vmatpush2.msra.mxu0 0.0
    %4443 = vmatprep.subr.mxu0 0.0
    %4444 = vmatpush2.msra.mxu0 0.0
    %4445 = vmatprep.subr.mxu0 0.0
    %4446 = vmatpush2.msra.mxu0 0.0
    %4447 = vmatprep.subr.mxu0 0.0
    %4448 = vmatpush2.msra.mxu0 0.0
    %4449 = vmatprep.subr.mxu0 0.0
    %4450 = vmatpush2.msra.mxu0 0.0
    %4451 = vmatprep.subr.mxu0 0.0
    %4452 = vmatpush2.msra.mxu0 0.0
    %4453 = vmatprep.subr.mxu0 0.0
    %4454 = vmatpush2.msra.mxu0 0.0
    %4455 = vmatprep.subr.mxu0 0.0
    %4456 = vmatpush2.msra.mxu0 0.0
    %4457 = vmatprep.subr.mxu0 0.0
    %4458 = vmatpush2.msra.mxu0 0.0
    %4459 = vmatprep.mubr.f32.mxu0 0.0
    %4460 = vmatmul.mubr.f32.gmra.mxu0 %v4390
    %v4461 = vpop.f32.mrf.mxu0
    %v4462 = vadd.f32 %v4387, %v4461
    %v4463 = vpop.f32.mrf.mxu0
    %4464 = vmatprep.mubr.f32.mxu0 0.0
    %4465 = vmatmul.mubr.f32.gmra.mxu0 %v4393
    %v4466 = vpop.f32.mrf.mxu0
    %v4467 = vadd.f32 %v4387, %v4466
    %v4468 = vpop.f32.mrf.mxu0
    %4469 = vdwg.mxu0
    %4470 = vmax.xlane.f32.xlu0 %v4462
    %v4471 = vpop.xlane.xlu0 %4470
    %4472 = vmax.xlane.f32.xlu0 %v4467
    %v4473 = vpop.xlane.xlu0 %4472
    %v4474 = vsub.f32 %v4462, %v4471
    %v4475 = vsub.f32 %v4467, %v4473
    %v4476 = vmul.f32 %v4474, 1.442695
    %v4477 = vpow.pop %v4476
    %v4478 = vmul.f32 %v4475, 1.442695
    %v4479 = vpow.pop %v4478
    %4480 = vadd.xlane.f32.xlu0 %v4477
    %v4481 = vpop.xlane.xlu0 %4480
    %4482 = vadd.xlane.f32.xlu0 %v4479
    %v4483 = vpop.xlane.xlu0 %4482
    %v4484 = vrcp.pop %v4481
    %v4485 = vmul.f32 %v4477, %v4484
    %v4486 = vrcp.pop %v4483
    %v4487 = vmul.f32 %v4479, %v4486
    %4488 = vst [vmem:[%s26] sm:$0xff] %v4485
    %4489 = vst [vmem:[%s26 + $0x8] sm:$0xff] %v4487
    // Predicated region
    $region110: #{ngcf_disco_forward.1} parent=1 // pred_check
      _
    $region111: #{ngcf_disco_forward.1} parent=1 // pred_check_branch
      %4491 = sbr.rel (0) target = $region113
    $region112: #{ngcf_disco_forward.1} parent=1 // pred_region
      _
    $region113: #{ngcf_disco_forward.1} parent=1 // pred_fallthru
      _
    // Predicated region
    $region114: #{ngcf_disco_forward.1} parent=1 // pred_check
      _
    $region115: #{ngcf_disco_forward.1} parent=1 // pred_check_branch
      %4493 = sbr.rel (0) target = $region117
    $region116: #{ngcf_disco_forward.1} parent=1 // pred_region
      _
    $region117: #{ngcf_disco_forward.1} parent=1 // pred_fallthru
      _
    %4494 = vsyncpa [#allocation5], 1

</llo_original>
